<compile_context>
chip_gen: v6e
topology: v6e:2x2x1
jax: 0.10.0
libtpu: 0.0.40
codegen_flags: <defaults>
</compile_context>

<pallas_src>
import jax
import jax.numpy as jnp
from jax import lax
from jax.experimental import pallas as pl
from jax.experimental.pallas import tpu as pltpu

NEG_SLOPE = 0.01  # nn.LeakyReLU default


def _tree_sum(terms):
    """Balanced pairwise sum: breaks the serial accumulation chain (VALU ILP)."""
    terms = list(terms)
    while len(terms) > 1:
        nxt = [terms[i] + terms[i + 1] for i in range(0, len(terms) - 1, 2)]
        if len(terms) % 2:
            nxt.append(terms[-1])
        terms = nxt
    return terms[0]


# -----------------------------------------------------------------------------
# Kernel: one grid step == one batch element; all residual blocks fused.
# -----------------------------------------------------------------------------
def _make_kernel(H, W, Hp, Wp, C, K, dilations):
    KK = K * K

    def kernel(x_ref, w1_ref, b1_ref, w2_ref, b2_ref, out_ref):
        # ---- hoisted once per grid step ----
        row = lax.broadcasted_iota(jnp.int32, (Hp, Wp), 0)
        col = lax.broadcasted_iota(jnp.int32, (Hp, Wp), 1)
        valid = jnp.logical_and(row < H, col < W)

        def mask(v):
            # The padded tail must ALWAYS be zero: the roll-based column taps
            # wrap it into the valid region as the conv's 'same' zero halo.
            return jnp.where(valid, v, 0.0)

        def lrelu(v):
            return jnp.where(v > 0, v, NEG_SLOPE * v)

        def shift2d(v, dh, dw):
            # out[i, j] = v[i + dh, j + dw], zero where the source index falls
            # outside the valid (H, W) region ('same' zero halo).
            if dw != 0:
                # Lane shift: one XLU rotate; zero fill comes from the >= P_max
                # zero tail columns guaranteed by the wrapper.
                v = pltpu.roll(v, (-dw) % Wp, axis=1)
            if dh > 0:
                # Sublane-only shift of the lane-aligned plane (width stays Wp:
                # no lane-misaligned intermediates), explicit zero fill.
                v = jnp.concatenate(
                    [v[dh:, :], jnp.zeros((dh, Wp), v.dtype)], axis=0)
            elif dh < 0:
                v = jnp.concatenate(
                    [jnp.zeros((-dh, Wp), v.dtype), v[:dh, :]], axis=0)
            return v

        xb = x_ref[0]                                   # (Hp, Wp), zero tail

        for blk, (d1, d2) in enumerate(dilations):
            P1 = d1 * (K - 1) // 2
            P2 = d2 * (K - 1) // 2

            # conv1 taps: K*K shifted planes of lrelu(x), shared by all C
            # output channels (hoisted out of the channel loop).
            yp = lrelu(xb)
            taps = [shift2d(yp, kh * d1 - P1, kw * d1 - P1)
                    for kh in range(K) for kw in range(K)]

            # conv2 by linearity: S[t] = sum_ci w2[blk,ci,t] * mid_ci (no
            # shifts), each S plane shifted exactly once afterwards.  mid
            # production fused with S consumption -> no `mids` list.
            S = [None] * KK
            for ci in range(C):
                base = (blk * C + ci) * KK
                mid = _tree_sum([w1_ref[base + t] * taps[t] for t in range(KK)])
                mid = mask(lrelu(mid + b1_ref[blk * C + ci]))
                for t in range(KK):
                    contrib = w2_ref[base + t] * mid
                    S[t] = contrib if S[t] is None else S[t] + contrib

            acc2 = _tree_sum(
                [shift2d(S[kh * K + kw], kh * d2 - P2, kw * d2 - P2)
                 for kh in range(K) for kw in range(K)])

            # residual add (+ conv2 bias), re-zero the padded tail
            xb = mask(xb + acc2 + b2_ref[blk])

        out_ref[0] = xb                                  # lane-dense store

    return kernel


def res_stack2d_forward(x, params, dilation):
    """x: (B, H, W) float32.  PyTorch: unsqueeze(1) -> residual blocks -> squeeze(1)."""
    B, H, W = x.shape
    C = params[0][0].shape[0]
    K = params[0][0].shape[-1]
    n = len(params)
    assert K % 2 == 1, "padding='same' formula requires an odd kernel_size"
    assert n == len(dilation)

    p_max = max(int(d) * (K - 1) // 2 for pair in dilation for d in pair)

    # Lane-dense layout: H -> multiple of 8 sublanes, W -> multiple of 128 lanes,
    # with a zero column tail of at least p_max so roll-based taps see the
    # 'same' zero halo.
    Hp = max(8, 8 * ((H + 7) // 8))
    Wp = max(128, 128 * ((W + 127) // 128))
    if Wp - W < p_max:
        Wp += 128 * ((p_max - (Wp - W) + 127) // 128)
    assert Wp - W >= p_max and Hp >= H

    # TODO(synk): keep this padded layout across the surrounding UpsamplerBlock
    # stages so this pad and the final crop are done once, not per res-block.
    xp = jnp.pad(x.astype(jnp.float32), ((0, 0), (0, Hp - H), (0, Wp - W)))

    # All blocks' weights, flattened, ride in SMEM (they are tiny).
    w1_all = jnp.stack([p[0] for p in params]).reshape(-1).astype(jnp.float32)  # (n*C*K*K,)
    b1_all = jnp.stack([p[1] for p in params]).reshape(-1).astype(jnp.float32)  # (n*C,)
    w2_all = jnp.stack([p[2] for p in params]).reshape(-1).astype(jnp.float32)  # (n*C*K*K,)
    b2_all = jnp.stack([p[3] for p in params]).reshape(-1).astype(jnp.float32)  # (n,)

    kernel = _make_kernel(H, W, Hp, Wp, C, K,
                          tuple((int(d1), int(d2)) for (d1, d2) in dilation))

    smem = pl.BlockSpec(memory_space=pltpu.MemorySpace.SMEM)
    flops = 2 * B * n * Hp * Wp * 2 * C * K * K
    bytes_accessed = 2 * B * Hp * Wp * 4 + 4 * (w1_all.size + w2_all.size
                                                + b1_all.size + b2_all.size)

    out = pl.pallas_call(
        kernel,
        out_shape=jax.ShapeDtypeStruct((B, Hp, Wp), jnp.float32),
        grid=(B,),
        in_specs=[pl.BlockSpec((1, Hp, Wp), lambda b: (b, 0, 0)),
                  smem, smem, smem, smem],
        out_specs=pl.BlockSpec((1, Hp, Wp), lambda b: (b, 0, 0)),
        compiler_params=pltpu.CompilerParams(
            dimension_semantics=("parallel",)),
        cost_estimate=pl.CostEstimate(flops=flops, transcendentals=0,
                                      bytes_accessed=bytes_accessed),
    )(xp, w1_all, b1_all, w2_all, b2_all)

    return out[:, :H, :W]


# -----------------------------------------------------------------------------
# Parameter construction (deterministic, in-script).  Mirrors
# weight_norm(nn.Conv2d(...)): effective weight = g * v / ||v|| (norm over all
# dims except output-channel dim 0).
# -----------------------------------------------------------------------------
def _weight_norm(v, g):
    norm = jnp.sqrt(jnp.sum(v * v, axis=(1, 2, 3), keepdims=True))
    return g[:, None, None, None] * v / norm


def init_res_stack2d_params(key, kernel_size, dilation, channels_num):
    params = []
    for _ in dilation:
        key, k1, k2, k3, k4, k5, k6 = jax.random.split(key, 7)
        v1 = jax.random.normal(k1, (channels_num, 1, kernel_size, kernel_size),
                               jnp.float32) * 0.3
        g1 = 1.0 + 0.1 * jax.random.normal(k2, (channels_num,), jnp.float32)
        b1 = 0.1 * jax.random.normal(k3, (channels_num,), jnp.float32)
        v2 = jax.random.normal(k4, (1, channels_num, kernel_size, kernel_size),
                               jnp.float32) * 0.3
        g2 = 1.0 + 0.1 * jax.random.normal(k5, (1,), jnp.float32)
        b2 = 0.1 * jax.random.normal(k6, (1,), jnp.float32)
        params.append((_weight_norm(v1, g1), b1, _weight_norm(v2, g2), b2))
    return params


# -----------------------------------------------------------------------------
# Pure-JAX reference (lax.conv_general_dilated) for correctness checking.
# -----------------------------------------------------------------------------
def _conv2d_same_ref(x, w, b, dil):
    K = w.shape[-1]
    pad = dil * (K - 1) // 2
    out = jax.lax.conv_general_dilated(
        x, w, window_strides=(1, 1),
        padding=[(pad, pad), (pad, pad)],
        rhs_dilation=(dil, dil),
        dimension_numbers=('NCHW', 'OIHW', 'NCHW'),
        precision=jax.lax.Precision.HIGHEST)
    return out + b[None, :, None, None]


def _lrelu(x):
    return jnp.where(x > 0, x, NEG_SLOPE * x)


def res_stack2d_reference(x, params, dilation):
    x = x[:, None, :, :]                       # unsqueeze(1) -> NCHW
    for (w1, b1, w2, b2), (d1, d2) in zip(params, dilation):
        h = _conv2d_same_ref(_lrelu(x), w1, b1, d1)
        h = _conv2d_same_ref(_lrelu(h), w2, b2, d2)
        x = x + h
    return x[:, 0, :, :]                       # squeeze(1)


if __name__ == "__main__":
    # Small shapes consistent with the module.  H/W deliberately NOT (8,128)
    # aligned so the lane-dense padding + in-kernel masking path is exercised.
    B, H, W = 2, 12, 120
    kernel_size = 3
    dilation = ((1, 1), (3, 1), (5, 1))   # UpsamplerBlock default res_block_dilation
    channels_num = 4

    key = jax.random.PRNGKey(0)
    kx, kp = jax.random.split(key)
    x = jax.random.normal(kx, (B, H, W), jnp.float32)
    params = init_res_stack2d_params(kp, kernel_size, dilation, channels_num)

    out = res_stack2d_forward(x, params, dilation)
    out = jax.block_until_ready(out)

    ref = res_stack2d_reference(x, params, dilation)
    assert out.shape == (B, H, W)
    err = float(jnp.max(jnp.abs(out - ref)))
    assert err < 1e-4, f"Pallas output mismatch vs reference: {err}"

    print("KERNEL_OK")
</pallas_src>

<mosaic_0001>
module attributes {stable_mosaic.version = 11 : i64} {
  func.func @kernel(%arg0: i32, %arg1: memref<1x16x128xf32, #tpu.memory_space<vmem>>, %arg2: memref<108xf32, #tpu.memory_space<smem>>, %arg3: memref<12xf32, #tpu.memory_space<smem>>, %arg4: memref<108xf32, #tpu.memory_space<smem>>, %arg5: memref<3xf32, #tpu.memory_space<smem>>, %arg6: memref<1x16x128xf32, #tpu.memory_space<vmem>>) attributes {dimension_semantics = [#tpu.dimension_semantics<parallel>], iteration_bounds = array<i64: 2>, scalar_prefetch = 0 : i64, scratch_operands = 0 : i64, tpu.core_type = #tpu.core_type<tc>, window_params = [{transform_indices = @transform_0, window_bounds = array<i64: 1, 16, 128>}, {transform_indices = @transform_1, window_bounds = array<i64: 108>}, {transform_indices = @transform_2, window_bounds = array<i64: 12>}, {transform_indices = @transform_3, window_bounds = array<i64: 108>}, {transform_indices = @transform_4, window_bounds = array<i64: 3>}, {transform_indices = @transform_5, window_bounds = array<i64: 1, 16, 128>}]} {
    %0 = tpu.iota {dimensions = array<i32: 0>} : vector<16x128xi32>
    %1 = tpu.iota {dimensions = array<i32: 1>} : vector<16x128xi32>
    %c12_i32 = arith.constant 12 : i32
    %2 = vector.broadcast %c12_i32 : i32 to vector<16x128xi32>
    %3 = arith.cmpi slt, %0, %2 : vector<16x128xi32>
    %c120_i32 = arith.constant 120 : i32
    %4 = vector.broadcast %c120_i32 : i32 to vector<16x128xi32>
    %5 = arith.cmpi slt, %1, %4 : vector<16x128xi32>
    %6 = arith.andi %3, %5 : vector<16x128xi1>
    %c0 = arith.constant 0 : index
    %c0_0 = arith.constant 0 : index
    %c0_1 = arith.constant 0 : index
    %7 = vector.load %arg1[%c0, %c0_0, %c0_1] : memref<1x16x128xf32, #tpu.memory_space<vmem>>, vector<1x16x128xf32>
    %8 = vector.shape_cast %7 : vector<1x16x128xf32> to vector<16x128xf32>
    %cst = arith.constant 0.000000e+00 : f32
    %9 = vector.broadcast %cst : f32 to vector<16x128xf32>
    %10 = arith.cmpf ogt, %8, %9 : vector<16x128xf32>
    %cst_2 = arith.constant 0.00999999977 : f32
    %11 = vector.broadcast %cst_2 : f32 to vector<16x128xf32>
    %12 = arith.mulf %11, %8 : vector<16x128xf32>
    %13 = arith.select %10, %8, %12 : vector<16x128xi1>, vector<16x128xf32>
    %c1_i32 = arith.constant 1 : i32
    %14 = tpu.dynamic_rotate %13 by %c1_i32 dim 1 : vector<16x128xf32>, i32 -> vector<16x128xf32>
    %cst_3 = arith.constant 0.000000e+00 : f32
    %15 = vector.broadcast %cst_3 : f32 to vector<1x128xf32>
    %16 = vector.extract_strided_slice %14 {offsets = [0, 0], sizes = [15, 128], strides = [1, 1]} : vector<16x128xf32> to vector<15x128xf32>
    %17 = tpu.concatenate %15, %16 in 0 : vector<1x128xf32>, vector<15x128xf32> -> vector<16x128xf32>
    %cst_4 = arith.constant 0.000000e+00 : f32
    %18 = vector.broadcast %cst_4 : f32 to vector<1x128xf32>
    %19 = vector.extract_strided_slice %13 {offsets = [0, 0], sizes = [15, 128], strides = [1, 1]} : vector<16x128xf32> to vector<15x128xf32>
    %20 = tpu.concatenate %18, %19 in 0 : vector<1x128xf32>, vector<15x128xf32> -> vector<16x128xf32>
    %c127_i32 = arith.constant 127 : i32
    %21 = tpu.dynamic_rotate %13 by %c127_i32 dim 1 : vector<16x128xf32>, i32 -> vector<16x128xf32>
    %cst_5 = arith.constant 0.000000e+00 : f32
    %22 = vector.broadcast %cst_5 : f32 to vector<1x128xf32>
    %23 = vector.extract_strided_slice %21 {offsets = [0, 0], sizes = [15, 128], strides = [1, 1]} : vector<16x128xf32> to vector<15x128xf32>
    %24 = tpu.concatenate %22, %23 in 0 : vector<1x128xf32>, vector<15x128xf32> -> vector<16x128xf32>
    %c1_i32_6 = arith.constant 1 : i32
    %25 = tpu.dynamic_rotate %13 by %c1_i32_6 dim 1 : vector<16x128xf32>, i32 -> vector<16x128xf32>
    %c127_i32_7 = arith.constant 127 : i32
    %26 = tpu.dynamic_rotate %13 by %c127_i32_7 dim 1 : vector<16x128xf32>, i32 -> vector<16x128xf32>
    %c1_i32_8 = arith.constant 1 : i32
    %27 = tpu.dynamic_rotate %13 by %c1_i32_8 dim 1 : vector<16x128xf32>, i32 -> vector<16x128xf32>
    %28 = vector.extract_strided_slice %27 {offsets = [1, 0], sizes = [15, 128], strides = [1, 1]} : vector<16x128xf32> to vector<15x128xf32>
    %cst_9 = arith.constant 0.000000e+00 : f32
    %29 = vector.broadcast %cst_9 : f32 to vector<1x128xf32>
    %30 = tpu.concatenate %28, %29 in 0 : vector<15x128xf32>, vector<1x128xf32> -> vector<16x128xf32>
    %31 = vector.extract_strided_slice %13 {offsets = [1, 0], sizes = [15, 128], strides = [1, 1]} : vector<16x128xf32> to vector<15x128xf32>
    %cst_10 = arith.constant 0.000000e+00 : f32
    %32 = vector.broadcast %cst_10 : f32 to vector<1x128xf32>
    %33 = tpu.concatenate %31, %32 in 0 : vector<15x128xf32>, vector<1x128xf32> -> vector<16x128xf32>
    %c127_i32_11 = arith.constant 127 : i32
    %34 = tpu.dynamic_rotate %13 by %c127_i32_11 dim 1 : vector<16x128xf32>, i32 -> vector<16x128xf32>
    %35 = vector.extract_strided_slice %34 {offsets = [1, 0], sizes = [15, 128], strides = [1, 1]} : vector<16x128xf32> to vector<15x128xf32>
    %cst_12 = arith.constant 0.000000e+00 : f32
    %36 = vector.broadcast %cst_12 : f32 to vector<1x128xf32>
    %37 = tpu.concatenate %35, %36 in 0 : vector<15x128xf32>, vector<1x128xf32> -> vector<16x128xf32>
    %c0_13 = arith.constant 0 : index
    %38 = memref.load %arg2[%c0_13] : memref<108xf32, #tpu.memory_space<smem>>
    %39 = vector.broadcast %38 : f32 to vector<16x128xf32>
    %40 = arith.mulf %39, %17 : vector<16x128xf32>
    %c1 = arith.constant 1 : index
    %41 = memref.load %arg2[%c1] : memref<108xf32, #tpu.memory_space<smem>>
    %42 = vector.broadcast %41 : f32 to vector<16x128xf32>
    %43 = arith.mulf %42, %20 : vector<16x128xf32>
    %c2 = arith.constant 2 : index
    %44 = memref.load %arg2[%c2] : memref<108xf32, #tpu.memory_space<smem>>
    %45 = vector.broadcast %44 : f32 to vector<16x128xf32>
    %46 = arith.mulf %45, %24 : vector<16x128xf32>
    %c3 = arith.constant 3 : index
    %47 = memref.load %arg2[%c3] : memref<108xf32, #tpu.memory_space<smem>>
    %48 = vector.broadcast %47 : f32 to vector<16x128xf32>
    %49 = arith.mulf %48, %25 : vector<16x128xf32>
    %c4 = arith.constant 4 : index
    %50 = memref.load %arg2[%c4] : memref<108xf32, #tpu.memory_space<smem>>
    %51 = vector.broadcast %50 : f32 to vector<16x128xf32>
    %52 = arith.mulf %51, %13 : vector<16x128xf32>
    %c5 = arith.constant 5 : index
    %53 = memref.load %arg2[%c5] : memref<108xf32, #tpu.memory_space<smem>>
    %54 = vector.broadcast %53 : f32 to vector<16x128xf32>
    %55 = arith.mulf %54, %26 : vector<16x128xf32>
    %c6 = arith.constant 6 : index
    %56 = memref.load %arg2[%c6] : memref<108xf32, #tpu.memory_space<smem>>
    %57 = vector.broadcast %56 : f32 to vector<16x128xf32>
    %58 = arith.mulf %57, %30 : vector<16x128xf32>
    %c7 = arith.constant 7 : index
    %59 = memref.load %arg2[%c7] : memref<108xf32, #tpu.memory_space<smem>>
    %60 = vector.broadcast %59 : f32 to vector<16x128xf32>
    %61 = arith.mulf %60, %33 : vector<16x128xf32>
    %c8 = arith.constant 8 : index
    %62 = memref.load %arg2[%c8] : memref<108xf32, #tpu.memory_space<smem>>
    %63 = vector.broadcast %62 : f32 to vector<16x128xf32>
    %64 = arith.mulf %63, %37 : vector<16x128xf32>
    %65 = arith.addf %40, %43 : vector<16x128xf32>
    %66 = arith.addf %46, %49 : vector<16x128xf32>
    %67 = arith.addf %52, %55 : vector<16x128xf32>
    %68 = arith.addf %58, %61 : vector<16x128xf32>
    %69 = arith.addf %65, %66 : vector<16x128xf32>
    %70 = arith.addf %67, %68 : vector<16x128xf32>
    %71 = arith.addf %69, %70 : vector<16x128xf32>
    %72 = arith.addf %71, %64 : vector<16x128xf32>
    %c0_14 = arith.constant 0 : index
    %73 = memref.load %arg3[%c0_14] : memref<12xf32, #tpu.memory_space<smem>>
    %74 = vector.broadcast %73 : f32 to vector<16x128xf32>
    %75 = arith.addf %72, %74 : vector<16x128xf32>
    %cst_15 = arith.constant 0.000000e+00 : f32
    %76 = vector.broadcast %cst_15 : f32 to vector<16x128xf32>
    %77 = arith.cmpf ogt, %75, %76 : vector<16x128xf32>
    %cst_16 = arith.constant 0.00999999977 : f32
    %78 = vector.broadcast %cst_16 : f32 to vector<16x128xf32>
    %79 = arith.mulf %78, %75 : vector<16x128xf32>
    %80 = arith.select %77, %75, %79 : vector<16x128xi1>, vector<16x128xf32>
    %cst_17 = arith.constant 0.000000e+00 : f32
    %81 = vector.broadcast %cst_17 : f32 to vector<16x128xf32>
    %82 = arith.select %6, %80, %81 : vector<16x128xi1>, vector<16x128xf32>
    %c0_18 = arith.constant 0 : index
    %83 = memref.load %arg4[%c0_18] : memref<108xf32, #tpu.memory_space<smem>>
    %84 = vector.broadcast %83 : f32 to vector<16x128xf32>
    %85 = arith.mulf %84, %82 : vector<16x128xf32>
    %c1_19 = arith.constant 1 : index
    %86 = memref.load %arg4[%c1_19] : memref<108xf32, #tpu.memory_space<smem>>
    %87 = vector.broadcast %86 : f32 to vector<16x128xf32>
    %88 = arith.mulf %87, %82 : vector<16x128xf32>
    %c2_20 = arith.constant 2 : index
    %89 = memref.load %arg4[%c2_20] : memref<108xf32, #tpu.memory_space<smem>>
    %90 = vector.broadcast %89 : f32 to vector<16x128xf32>
    %91 = arith.mulf %90, %82 : vector<16x128xf32>
    %c3_21 = arith.constant 3 : index
    %92 = memref.load %arg4[%c3_21] : memref<108xf32, #tpu.memory_space<smem>>
    %93 = vector.broadcast %92 : f32 to vector<16x128xf32>
    %94 = arith.mulf %93, %82 : vector<16x128xf32>
    %c4_22 = arith.constant 4 : index
    %95 = memref.load %arg4[%c4_22] : memref<108xf32, #tpu.memory_space<smem>>
    %96 = vector.broadcast %95 : f32 to vector<16x128xf32>
    %97 = arith.mulf %96, %82 : vector<16x128xf32>
    %c5_23 = arith.constant 5 : index
    %98 = memref.load %arg4[%c5_23] : memref<108xf32, #tpu.memory_space<smem>>
    %99 = vector.broadcast %98 : f32 to vector<16x128xf32>
    %100 = arith.mulf %99, %82 : vector<16x128xf32>
    %c6_24 = arith.constant 6 : index
    %101 = memref.load %arg4[%c6_24] : memref<108xf32, #tpu.memory_space<smem>>
    %102 = vector.broadcast %101 : f32 to vector<16x128xf32>
    %103 = arith.mulf %102, %82 : vector<16x128xf32>
    %c7_25 = arith.constant 7 : index
    %104 = memref.load %arg4[%c7_25] : memref<108xf32, #tpu.memory_space<smem>>
    %105 = vector.broadcast %104 : f32 to vector<16x128xf32>
    %106 = arith.mulf %105, %82 : vector<16x128xf32>
    %c8_26 = arith.constant 8 : index
    %107 = memref.load %arg4[%c8_26] : memref<108xf32, #tpu.memory_space<smem>>
    %108 = vector.broadcast %107 : f32 to vector<16x128xf32>
    %109 = arith.mulf %108, %82 : vector<16x128xf32>
    %c9 = arith.constant 9 : index
    %110 = memref.load %arg2[%c9] : memref<108xf32, #tpu.memory_space<smem>>
    %111 = vector.broadcast %110 : f32 to vector<16x128xf32>
    %112 = arith.mulf %111, %17 : vector<16x128xf32>
    %c10 = arith.constant 10 : index
    %113 = memref.load %arg2[%c10] : memref<108xf32, #tpu.memory_space<smem>>
    %114 = vector.broadcast %113 : f32 to vector<16x128xf32>
    %115 = arith.mulf %114, %20 : vector<16x128xf32>
    %c11 = arith.constant 11 : index
    %116 = memref.load %arg2[%c11] : memref<108xf32, #tpu.memory_space<smem>>
    %117 = vector.broadcast %116 : f32 to vector<16x128xf32>
    %118 = arith.mulf %117, %24 : vector<16x128xf32>
    %c12 = arith.constant 12 : index
    %119 = memref.load %arg2[%c12] : memref<108xf32, #tpu.memory_space<smem>>
    %120 = vector.broadcast %119 : f32 to vector<16x128xf32>
    %121 = arith.mulf %120, %25 : vector<16x128xf32>
    %c13 = arith.constant 13 : index
    %122 = memref.load %arg2[%c13] : memref<108xf32, #tpu.memory_space<smem>>
    %123 = vector.broadcast %122 : f32 to vector<16x128xf32>
    %124 = arith.mulf %123, %13 : vector<16x128xf32>
    %c14 = arith.constant 14 : index
    %125 = memref.load %arg2[%c14] : memref<108xf32, #tpu.memory_space<smem>>
    %126 = vector.broadcast %125 : f32 to vector<16x128xf32>
    %127 = arith.mulf %126, %26 : vector<16x128xf32>
    %c15 = arith.constant 15 : index
    %128 = memref.load %arg2[%c15] : memref<108xf32, #tpu.memory_space<smem>>
    %129 = vector.broadcast %128 : f32 to vector<16x128xf32>
    %130 = arith.mulf %129, %30 : vector<16x128xf32>
    %c16 = arith.constant 16 : index
    %131 = memref.load %arg2[%c16] : memref<108xf32, #tpu.memory_space<smem>>
    %132 = vector.broadcast %131 : f32 to vector<16x128xf32>
    %133 = arith.mulf %132, %33 : vector<16x128xf32>
    %c17 = arith.constant 17 : index
    %134 = memref.load %arg2[%c17] : memref<108xf32, #tpu.memory_space<smem>>
    %135 = vector.broadcast %134 : f32 to vector<16x128xf32>
    %136 = arith.mulf %135, %37 : vector<16x128xf32>
    %137 = arith.addf %112, %115 : vector<16x128xf32>
    %138 = arith.addf %118, %121 : vector<16x128xf32>
    %139 = arith.addf %124, %127 : vector<16x128xf32>
    %140 = arith.addf %130, %133 : vector<16x128xf32>
    %141 = arith.addf %137, %138 : vector<16x128xf32>
    %142 = arith.addf %139, %140 : vector<16x128xf32>
    %143 = arith.addf %141, %142 : vector<16x128xf32>
    %144 = arith.addf %143, %136 : vector<16x128xf32>
    %c1_27 = arith.constant 1 : index
    %145 = memref.load %arg3[%c1_27] : memref<12xf32, #tpu.memory_space<smem>>
    %146 = vector.broadcast %145 : f32 to vector<16x128xf32>
    %147 = arith.addf %144, %146 : vector<16x128xf32>
    %cst_28 = arith.constant 0.000000e+00 : f32
    %148 = vector.broadcast %cst_28 : f32 to vector<16x128xf32>
    %149 = arith.cmpf ogt, %147, %148 : vector<16x128xf32>
    %cst_29 = arith.constant 0.00999999977 : f32
    %150 = vector.broadcast %cst_29 : f32 to vector<16x128xf32>
    %151 = arith.mulf %150, %147 : vector<16x128xf32>
    %152 = arith.select %149, %147, %151 : vector<16x128xi1>, vector<16x128xf32>
    %cst_30 = arith.constant 0.000000e+00 : f32
    %153 = vector.broadcast %cst_30 : f32 to vector<16x128xf32>
    %154 = arith.select %6, %152, %153 : vector<16x128xi1>, vector<16x128xf32>
    %c9_31 = arith.constant 9 : index
    %155 = memref.load %arg4[%c9_31] : memref<108xf32, #tpu.memory_space<smem>>
    %156 = vector.broadcast %155 : f32 to vector<16x128xf32>
    %157 = arith.mulf %156, %154 : vector<16x128xf32>
    %158 = arith.addf %85, %157 : vector<16x128xf32>
    %c10_32 = arith.constant 10 : index
    %159 = memref.load %arg4[%c10_32] : memref<108xf32, #tpu.memory_space<smem>>
    %160 = vector.broadcast %159 : f32 to vector<16x128xf32>
    %161 = arith.mulf %160, %154 : vector<16x128xf32>
    %162 = arith.addf %88, %161 : vector<16x128xf32>
    %c11_33 = arith.constant 11 : index
    %163 = memref.load %arg4[%c11_33] : memref<108xf32, #tpu.memory_space<smem>>
    %164 = vector.broadcast %163 : f32 to vector<16x128xf32>
    %165 = arith.mulf %164, %154 : vector<16x128xf32>
    %166 = arith.addf %91, %165 : vector<16x128xf32>
    %c12_34 = arith.constant 12 : index
    %167 = memref.load %arg4[%c12_34] : memref<108xf32, #tpu.memory_space<smem>>
    %168 = vector.broadcast %167 : f32 to vector<16x128xf32>
    %169 = arith.mulf %168, %154 : vector<16x128xf32>
    %170 = arith.addf %94, %169 : vector<16x128xf32>
    %c13_35 = arith.constant 13 : index
    %171 = memref.load %arg4[%c13_35] : memref<108xf32, #tpu.memory_space<smem>>
    %172 = vector.broadcast %171 : f32 to vector<16x128xf32>
    %173 = arith.mulf %172, %154 : vector<16x128xf32>
    %174 = arith.addf %97, %173 : vector<16x128xf32>
    %c14_36 = arith.constant 14 : index
    %175 = memref.load %arg4[%c14_36] : memref<108xf32, #tpu.memory_space<smem>>
    %176 = vector.broadcast %175 : f32 to vector<16x128xf32>
    %177 = arith.mulf %176, %154 : vector<16x128xf32>
    %178 = arith.addf %100, %177 : vector<16x128xf32>
    %c15_37 = arith.constant 15 : index
    %179 = memref.load %arg4[%c15_37] : memref<108xf32, #tpu.memory_space<smem>>
    %180 = vector.broadcast %179 : f32 to vector<16x128xf32>
    %181 = arith.mulf %180, %154 : vector<16x128xf32>
    %182 = arith.addf %103, %181 : vector<16x128xf32>
    %c16_38 = arith.constant 16 : index
    %183 = memref.load %arg4[%c16_38] : memref<108xf32, #tpu.memory_space<smem>>
    %184 = vector.broadcast %183 : f32 to vector<16x128xf32>
    %185 = arith.mulf %184, %154 : vector<16x128xf32>
    %186 = arith.addf %106, %185 : vector<16x128xf32>
    %c17_39 = arith.constant 17 : index
    %187 = memref.load %arg4[%c17_39] : memref<108xf32, #tpu.memory_space<smem>>
    %188 = vector.broadcast %187 : f32 to vector<16x128xf32>
    %189 = arith.mulf %188, %154 : vector<16x128xf32>
    %190 = arith.addf %109, %189 : vector<16x128xf32>
    %c18 = arith.constant 18 : index
    %191 = memref.load %arg2[%c18] : memref<108xf32, #tpu.memory_space<smem>>
    %192 = vector.broadcast %191 : f32 to vector<16x128xf32>
    %193 = arith.mulf %192, %17 : vector<16x128xf32>
    %c19 = arith.constant 19 : index
    %194 = memref.load %arg2[%c19] : memref<108xf32, #tpu.memory_space<smem>>
    %195 = vector.broadcast %194 : f32 to vector<16x128xf32>
    %196 = arith.mulf %195, %20 : vector<16x128xf32>
    %c20 = arith.constant 20 : index
    %197 = memref.load %arg2[%c20] : memref<108xf32, #tpu.memory_space<smem>>
    %198 = vector.broadcast %197 : f32 to vector<16x128xf32>
    %199 = arith.mulf %198, %24 : vector<16x128xf32>
    %c21 = arith.constant 21 : index
    %200 = memref.load %arg2[%c21] : memref<108xf32, #tpu.memory_space<smem>>
    %201 = vector.broadcast %200 : f32 to vector<16x128xf32>
    %202 = arith.mulf %201, %25 : vector<16x128xf32>
    %c22 = arith.constant 22 : index
    %203 = memref.load %arg2[%c22] : memref<108xf32, #tpu.memory_space<smem>>
    %204 = vector.broadcast %203 : f32 to vector<16x128xf32>
    %205 = arith.mulf %204, %13 : vector<16x128xf32>
    %c23 = arith.constant 23 : index
    %206 = memref.load %arg2[%c23] : memref<108xf32, #tpu.memory_space<smem>>
    %207 = vector.broadcast %206 : f32 to vector<16x128xf32>
    %208 = arith.mulf %207, %26 : vector<16x128xf32>
    %c24 = arith.constant 24 : index
    %209 = memref.load %arg2[%c24] : memref<108xf32, #tpu.memory_space<smem>>
    %210 = vector.broadcast %209 : f32 to vector<16x128xf32>
    %211 = arith.mulf %210, %30 : vector<16x128xf32>
    %c25 = arith.constant 25 : index
    %212 = memref.load %arg2[%c25] : memref<108xf32, #tpu.memory_space<smem>>
    %213 = vector.broadcast %212 : f32 to vector<16x128xf32>
    %214 = arith.mulf %213, %33 : vector<16x128xf32>
    %c26 = arith.constant 26 : index
    %215 = memref.load %arg2[%c26] : memref<108xf32, #tpu.memory_space<smem>>
    %216 = vector.broadcast %215 : f32 to vector<16x128xf32>
    %217 = arith.mulf %216, %37 : vector<16x128xf32>
    %218 = arith.addf %193, %196 : vector<16x128xf32>
    %219 = arith.addf %199, %202 : vector<16x128xf32>
    %220 = arith.addf %205, %208 : vector<16x128xf32>
    %221 = arith.addf %211, %214 : vector<16x128xf32>
    %222 = arith.addf %218, %219 : vector<16x128xf32>
    %223 = arith.addf %220, %221 : vector<16x128xf32>
    %224 = arith.addf %222, %223 : vector<16x128xf32>
    %225 = arith.addf %224, %217 : vector<16x128xf32>
    %c2_40 = arith.constant 2 : index
    %226 = memref.load %arg3[%c2_40] : memref<12xf32, #tpu.memory_space<smem>>
    %227 = vector.broadcast %226 : f32 to vector<16x128xf32>
    %228 = arith.addf %225, %227 : vector<16x128xf32>
    %cst_41 = arith.constant 0.000000e+00 : f32
    %229 = vector.broadcast %cst_41 : f32 to vector<16x128xf32>
    %230 = arith.cmpf ogt, %228, %229 : vector<16x128xf32>
    %cst_42 = arith.constant 0.00999999977 : f32
    %231 = vector.broadcast %cst_42 : f32 to vector<16x128xf32>
    %232 = arith.mulf %231, %228 : vector<16x128xf32>
    %233 = arith.select %230, %228, %232 : vector<16x128xi1>, vector<16x128xf32>
    %cst_43 = arith.constant 0.000000e+00 : f32
    %234 = vector.broadcast %cst_43 : f32 to vector<16x128xf32>
    %235 = arith.select %6, %233, %234 : vector<16x128xi1>, vector<16x128xf32>
    %c18_44 = arith.constant 18 : index
    %236 = memref.load %arg4[%c18_44] : memref<108xf32, #tpu.memory_space<smem>>
    %237 = vector.broadcast %236 : f32 to vector<16x128xf32>
    %238 = arith.mulf %237, %235 : vector<16x128xf32>
    %239 = arith.addf %158, %238 : vector<16x128xf32>
    %c19_45 = arith.constant 19 : index
    %240 = memref.load %arg4[%c19_45] : memref<108xf32, #tpu.memory_space<smem>>
    %241 = vector.broadcast %240 : f32 to vector<16x128xf32>
    %242 = arith.mulf %241, %235 : vector<16x128xf32>
    %243 = arith.addf %162, %242 : vector<16x128xf32>
    %c20_46 = arith.constant 20 : index
    %244 = memref.load %arg4[%c20_46] : memref<108xf32, #tpu.memory_space<smem>>
    %245 = vector.broadcast %244 : f32 to vector<16x128xf32>
    %246 = arith.mulf %245, %235 : vector<16x128xf32>
    %247 = arith.addf %166, %246 : vector<16x128xf32>
    %c21_47 = arith.constant 21 : index
    %248 = memref.load %arg4[%c21_47] : memref<108xf32, #tpu.memory_space<smem>>
    %249 = vector.broadcast %248 : f32 to vector<16x128xf32>
    %250 = arith.mulf %249, %235 : vector<16x128xf32>
    %251 = arith.addf %170, %250 : vector<16x128xf32>
    %c22_48 = arith.constant 22 : index
    %252 = memref.load %arg4[%c22_48] : memref<108xf32, #tpu.memory_space<smem>>
    %253 = vector.broadcast %252 : f32 to vector<16x128xf32>
    %254 = arith.mulf %253, %235 : vector<16x128xf32>
    %255 = arith.addf %174, %254 : vector<16x128xf32>
    %c23_49 = arith.constant 23 : index
    %256 = memref.load %arg4[%c23_49] : memref<108xf32, #tpu.memory_space<smem>>
    %257 = vector.broadcast %256 : f32 to vector<16x128xf32>
    %258 = arith.mulf %257, %235 : vector<16x128xf32>
    %259 = arith.addf %178, %258 : vector<16x128xf32>
    %c24_50 = arith.constant 24 : index
    %260 = memref.load %arg4[%c24_50] : memref<108xf32, #tpu.memory_space<smem>>
    %261 = vector.broadcast %260 : f32 to vector<16x128xf32>
    %262 = arith.mulf %261, %235 : vector<16x128xf32>
    %263 = arith.addf %182, %262 : vector<16x128xf32>
    %c25_51 = arith.constant 25 : index
    %264 = memref.load %arg4[%c25_51] : memref<108xf32, #tpu.memory_space<smem>>
    %265 = vector.broadcast %264 : f32 to vector<16x128xf32>
    %266 = arith.mulf %265, %235 : vector<16x128xf32>
    %267 = arith.addf %186, %266 : vector<16x128xf32>
    %c26_52 = arith.constant 26 : index
    %268 = memref.load %arg4[%c26_52] : memref<108xf32, #tpu.memory_space<smem>>
    %269 = vector.broadcast %268 : f32 to vector<16x128xf32>
    %270 = arith.mulf %269, %235 : vector<16x128xf32>
    %271 = arith.addf %190, %270 : vector<16x128xf32>
    %c27 = arith.constant 27 : index
    %272 = memref.load %arg2[%c27] : memref<108xf32, #tpu.memory_space<smem>>
    %273 = vector.broadcast %272 : f32 to vector<16x128xf32>
    %274 = arith.mulf %273, %17 : vector<16x128xf32>
    %c28 = arith.constant 28 : index
    %275 = memref.load %arg2[%c28] : memref<108xf32, #tpu.memory_space<smem>>
    %276 = vector.broadcast %275 : f32 to vector<16x128xf32>
    %277 = arith.mulf %276, %20 : vector<16x128xf32>
    %c29 = arith.constant 29 : index
    %278 = memref.load %arg2[%c29] : memref<108xf32, #tpu.memory_space<smem>>
    %279 = vector.broadcast %278 : f32 to vector<16x128xf32>
    %280 = arith.mulf %279, %24 : vector<16x128xf32>
    %c30 = arith.constant 30 : index
    %281 = memref.load %arg2[%c30] : memref<108xf32, #tpu.memory_space<smem>>
    %282 = vector.broadcast %281 : f32 to vector<16x128xf32>
    %283 = arith.mulf %282, %25 : vector<16x128xf32>
    %c31 = arith.constant 31 : index
    %284 = memref.load %arg2[%c31] : memref<108xf32, #tpu.memory_space<smem>>
    %285 = vector.broadcast %284 : f32 to vector<16x128xf32>
    %286 = arith.mulf %285, %13 : vector<16x128xf32>
    %c32 = arith.constant 32 : index
    %287 = memref.load %arg2[%c32] : memref<108xf32, #tpu.memory_space<smem>>
    %288 = vector.broadcast %287 : f32 to vector<16x128xf32>
    %289 = arith.mulf %288, %26 : vector<16x128xf32>
    %c33 = arith.constant 33 : index
    %290 = memref.load %arg2[%c33] : memref<108xf32, #tpu.memory_space<smem>>
    %291 = vector.broadcast %290 : f32 to vector<16x128xf32>
    %292 = arith.mulf %291, %30 : vector<16x128xf32>
    %c34 = arith.constant 34 : index
    %293 = memref.load %arg2[%c34] : memref<108xf32, #tpu.memory_space<smem>>
    %294 = vector.broadcast %293 : f32 to vector<16x128xf32>
    %295 = arith.mulf %294, %33 : vector<16x128xf32>
    %c35 = arith.constant 35 : index
    %296 = memref.load %arg2[%c35] : memref<108xf32, #tpu.memory_space<smem>>
    %297 = vector.broadcast %296 : f32 to vector<16x128xf32>
    %298 = arith.mulf %297, %37 : vector<16x128xf32>
    %299 = arith.addf %274, %277 : vector<16x128xf32>
    %300 = arith.addf %280, %283 : vector<16x128xf32>
    %301 = arith.addf %286, %289 : vector<16x128xf32>
    %302 = arith.addf %292, %295 : vector<16x128xf32>
    %303 = arith.addf %299, %300 : vector<16x128xf32>
    %304 = arith.addf %301, %302 : vector<16x128xf32>
    %305 = arith.addf %303, %304 : vector<16x128xf32>
    %306 = arith.addf %305, %298 : vector<16x128xf32>
    %c3_53 = arith.constant 3 : index
    %307 = memref.load %arg3[%c3_53] : memref<12xf32, #tpu.memory_space<smem>>
    %308 = vector.broadcast %307 : f32 to vector<16x128xf32>
    %309 = arith.addf %306, %308 : vector<16x128xf32>
    %cst_54 = arith.constant 0.000000e+00 : f32
    %310 = vector.broadcast %cst_54 : f32 to vector<16x128xf32>
    %311 = arith.cmpf ogt, %309, %310 : vector<16x128xf32>
    %cst_55 = arith.constant 0.00999999977 : f32
    %312 = vector.broadcast %cst_55 : f32 to vector<16x128xf32>
    %313 = arith.mulf %312, %309 : vector<16x128xf32>
    %314 = arith.select %311, %309, %313 : vector<16x128xi1>, vector<16x128xf32>
    %cst_56 = arith.constant 0.000000e+00 : f32
    %315 = vector.broadcast %cst_56 : f32 to vector<16x128xf32>
    %316 = arith.select %6, %314, %315 : vector<16x128xi1>, vector<16x128xf32>
    %c27_57 = arith.constant 27 : index
    %317 = memref.load %arg4[%c27_57] : memref<108xf32, #tpu.memory_space<smem>>
    %318 = vector.broadcast %317 : f32 to vector<16x128xf32>
    %319 = arith.mulf %318, %316 : vector<16x128xf32>
    %320 = arith.addf %239, %319 : vector<16x128xf32>
    %c28_58 = arith.constant 28 : index
    %321 = memref.load %arg4[%c28_58] : memref<108xf32, #tpu.memory_space<smem>>
    %322 = vector.broadcast %321 : f32 to vector<16x128xf32>
    %323 = arith.mulf %322, %316 : vector<16x128xf32>
    %324 = arith.addf %243, %323 : vector<16x128xf32>
    %c29_59 = arith.constant 29 : index
    %325 = memref.load %arg4[%c29_59] : memref<108xf32, #tpu.memory_space<smem>>
    %326 = vector.broadcast %325 : f32 to vector<16x128xf32>
    %327 = arith.mulf %326, %316 : vector<16x128xf32>
    %328 = arith.addf %247, %327 : vector<16x128xf32>
    %c30_60 = arith.constant 30 : index
    %329 = memref.load %arg4[%c30_60] : memref<108xf32, #tpu.memory_space<smem>>
    %330 = vector.broadcast %329 : f32 to vector<16x128xf32>
    %331 = arith.mulf %330, %316 : vector<16x128xf32>
    %332 = arith.addf %251, %331 : vector<16x128xf32>
    %c31_61 = arith.constant 31 : index
    %333 = memref.load %arg4[%c31_61] : memref<108xf32, #tpu.memory_space<smem>>
    %334 = vector.broadcast %333 : f32 to vector<16x128xf32>
    %335 = arith.mulf %334, %316 : vector<16x128xf32>
    %336 = arith.addf %255, %335 : vector<16x128xf32>
    %c32_62 = arith.constant 32 : index
    %337 = memref.load %arg4[%c32_62] : memref<108xf32, #tpu.memory_space<smem>>
    %338 = vector.broadcast %337 : f32 to vector<16x128xf32>
    %339 = arith.mulf %338, %316 : vector<16x128xf32>
    %340 = arith.addf %259, %339 : vector<16x128xf32>
    %c33_63 = arith.constant 33 : index
    %341 = memref.load %arg4[%c33_63] : memref<108xf32, #tpu.memory_space<smem>>
    %342 = vector.broadcast %341 : f32 to vector<16x128xf32>
    %343 = arith.mulf %342, %316 : vector<16x128xf32>
    %344 = arith.addf %263, %343 : vector<16x128xf32>
    %c34_64 = arith.constant 34 : index
    %345 = memref.load %arg4[%c34_64] : memref<108xf32, #tpu.memory_space<smem>>
    %346 = vector.broadcast %345 : f32 to vector<16x128xf32>
    %347 = arith.mulf %346, %316 : vector<16x128xf32>
    %348 = arith.addf %267, %347 : vector<16x128xf32>
    %c35_65 = arith.constant 35 : index
    %349 = memref.load %arg4[%c35_65] : memref<108xf32, #tpu.memory_space<smem>>
    %350 = vector.broadcast %349 : f32 to vector<16x128xf32>
    %351 = arith.mulf %350, %316 : vector<16x128xf32>
    %352 = arith.addf %271, %351 : vector<16x128xf32>
    %c1_i32_66 = arith.constant 1 : i32
    %353 = tpu.dynamic_rotate %320 by %c1_i32_66 dim 1 : vector<16x128xf32>, i32 -> vector<16x128xf32>
    %cst_67 = arith.constant 0.000000e+00 : f32
    %354 = vector.broadcast %cst_67 : f32 to vector<1x128xf32>
    %355 = vector.extract_strided_slice %353 {offsets = [0, 0], sizes = [15, 128], strides = [1, 1]} : vector<16x128xf32> to vector<15x128xf32>
    %356 = tpu.concatenate %354, %355 in 0 : vector<1x128xf32>, vector<15x128xf32> -> vector<16x128xf32>
    %cst_68 = arith.constant 0.000000e+00 : f32
    %357 = vector.broadcast %cst_68 : f32 to vector<1x128xf32>
    %358 = vector.extract_strided_slice %324 {offsets = [0, 0], sizes = [15, 128], strides = [1, 1]} : vector<16x128xf32> to vector<15x128xf32>
    %359 = tpu.concatenate %357, %358 in 0 : vector<1x128xf32>, vector<15x128xf32> -> vector<16x128xf32>
    %c127_i32_69 = arith.constant 127 : i32
    %360 = tpu.dynamic_rotate %328 by %c127_i32_69 dim 1 : vector<16x128xf32>, i32 -> vector<16x128xf32>
    %cst_70 = arith.constant 0.000000e+00 : f32
    %361 = vector.broadcast %cst_70 : f32 to vector<1x128xf32>
    %362 = vector.extract_strided_slice %360 {offsets = [0, 0], sizes = [15, 128], strides = [1, 1]} : vector<16x128xf32> to vector<15x128xf32>
    %363 = tpu.concatenate %361, %362 in 0 : vector<1x128xf32>, vector<15x128xf32> -> vector<16x128xf32>
    %c1_i32_71 = arith.constant 1 : i32
    %364 = tpu.dynamic_rotate %332 by %c1_i32_71 dim 1 : vector<16x128xf32>, i32 -> vector<16x128xf32>
    %c127_i32_72 = arith.constant 127 : i32
    %365 = tpu.dynamic_rotate %340 by %c127_i32_72 dim 1 : vector<16x128xf32>, i32 -> vector<16x128xf32>
    %c1_i32_73 = arith.constant 1 : i32
    %366 = tpu.dynamic_rotate %344 by %c1_i32_73 dim 1 : vector<16x128xf32>, i32 -> vector<16x128xf32>
    %367 = vector.extract_strided_slice %366 {offsets = [1, 0], sizes = [15, 128], strides = [1, 1]} : vector<16x128xf32> to vector<15x128xf32>
    %cst_74 = arith.constant 0.000000e+00 : f32
    %368 = vector.broadcast %cst_74 : f32 to vector<1x128xf32>
    %369 = tpu.concatenate %367, %368 in 0 : vector<15x128xf32>, vector<1x128xf32> -> vector<16x128xf32>
    %370 = vector.extract_strided_slice %348 {offsets = [1, 0], sizes = [15, 128], strides = [1, 1]} : vector<16x128xf32> to vector<15x128xf32>
    %cst_75 = arith.constant 0.000000e+00 : f32
    %371 = vector.broadcast %cst_75 : f32 to vector<1x128xf32>
    %372 = tpu.concatenate %370, %371 in 0 : vector<15x128xf32>, vector<1x128xf32> -> vector<16x128xf32>
    %c127_i32_76 = arith.constant 127 : i32
    %373 = tpu.dynamic_rotate %352 by %c127_i32_76 dim 1 : vector<16x128xf32>, i32 -> vector<16x128xf32>
    %374 = vector.extract_strided_slice %373 {offsets = [1, 0], sizes = [15, 128], strides = [1, 1]} : vector<16x128xf32> to vector<15x128xf32>
    %cst_77 = arith.constant 0.000000e+00 : f32
    %375 = vector.broadcast %cst_77 : f32 to vector<1x128xf32>
    %376 = tpu.concatenate %374, %375 in 0 : vector<15x128xf32>, vector<1x128xf32> -> vector<16x128xf32>
    %377 = arith.addf %356, %359 : vector<16x128xf32>
    %378 = arith.addf %363, %364 : vector<16x128xf32>
    %379 = arith.addf %336, %365 : vector<16x128xf32>
    %380 = arith.addf %369, %372 : vector<16x128xf32>
    %381 = arith.addf %377, %378 : vector<16x128xf32>
    %382 = arith.addf %379, %380 : vector<16x128xf32>
    %383 = arith.addf %381, %382 : vector<16x128xf32>
    %384 = arith.addf %383, %376 : vector<16x128xf32>
    %385 = arith.addf %8, %384 : vector<16x128xf32>
    %c0_78 = arith.constant 0 : index
    %386 = memref.load %arg5[%c0_78] : memref<3xf32, #tpu.memory_space<smem>>
    %387 = vector.broadcast %386 : f32 to vector<16x128xf32>
    %388 = arith.addf %385, %387 : vector<16x128xf32>
    %cst_79 = arith.constant 0.000000e+00 : f32
    %389 = vector.broadcast %cst_79 : f32 to vector<16x128xf32>
    %390 = arith.select %6, %388, %389 : vector<16x128xi1>, vector<16x128xf32>
    %cst_80 = arith.constant 0.000000e+00 : f32
    %391 = vector.broadcast %cst_80 : f32 to vector<16x128xf32>
    %392 = arith.cmpf ogt, %390, %391 : vector<16x128xf32>
    %cst_81 = arith.constant 0.00999999977 : f32
    %393 = vector.broadcast %cst_81 : f32 to vector<16x128xf32>
    %394 = arith.mulf %393, %390 : vector<16x128xf32>
    %395 = arith.select %392, %390, %394 : vector<16x128xi1>, vector<16x128xf32>
    %c3_i32 = arith.constant 3 : i32
    %396 = tpu.dynamic_rotate %395 by %c3_i32 dim 1 : vector<16x128xf32>, i32 -> vector<16x128xf32>
    %cst_82 = arith.constant 0.000000e+00 : f32
    %397 = vector.broadcast %cst_82 : f32 to vector<3x128xf32>
    %398 = vector.extract_strided_slice %396 {offsets = [0, 0], sizes = [13, 128], strides = [1, 1]} : vector<16x128xf32> to vector<13x128xf32>
    %399 = tpu.concatenate %397, %398 in 0 : vector<3x128xf32>, vector<13x128xf32> -> vector<16x128xf32>
    %cst_83 = arith.constant 0.000000e+00 : f32
    %400 = vector.broadcast %cst_83 : f32 to vector<3x128xf32>
    %401 = vector.extract_strided_slice %395 {offsets = [0, 0], sizes = [13, 128], strides = [1, 1]} : vector<16x128xf32> to vector<13x128xf32>
    %402 = tpu.concatenate %400, %401 in 0 : vector<3x128xf32>, vector<13x128xf32> -> vector<16x128xf32>
    %c125_i32 = arith.constant 125 : i32
    %403 = tpu.dynamic_rotate %395 by %c125_i32 dim 1 : vector<16x128xf32>, i32 -> vector<16x128xf32>
    %cst_84 = arith.constant 0.000000e+00 : f32
    %404 = vector.broadcast %cst_84 : f32 to vector<3x128xf32>
    %405 = vector.extract_strided_slice %403 {offsets = [0, 0], sizes = [13, 128], strides = [1, 1]} : vector<16x128xf32> to vector<13x128xf32>
    %406 = tpu.concatenate %404, %405 in 0 : vector<3x128xf32>, vector<13x128xf32> -> vector<16x128xf32>
    %c3_i32_85 = arith.constant 3 : i32
    %407 = tpu.dynamic_rotate %395 by %c3_i32_85 dim 1 : vector<16x128xf32>, i32 -> vector<16x128xf32>
    %c125_i32_86 = arith.constant 125 : i32
    %408 = tpu.dynamic_rotate %395 by %c125_i32_86 dim 1 : vector<16x128xf32>, i32 -> vector<16x128xf32>
    %c3_i32_87 = arith.constant 3 : i32
    %409 = tpu.dynamic_rotate %395 by %c3_i32_87 dim 1 : vector<16x128xf32>, i32 -> vector<16x128xf32>
    %410 = vector.extract_strided_slice %409 {offsets = [3, 0], sizes = [13, 128], strides = [1, 1]} : vector<16x128xf32> to vector<13x128xf32>
    %cst_88 = arith.constant 0.000000e+00 : f32
    %411 = vector.broadcast %cst_88 : f32 to vector<3x128xf32>
    %412 = tpu.concatenate %410, %411 in 0 : vector<13x128xf32>, vector<3x128xf32> -> vector<16x128xf32>
    %413 = vector.extract_strided_slice %395 {offsets = [3, 0], sizes = [13, 128], strides = [1, 1]} : vector<16x128xf32> to vector<13x128xf32>
    %cst_89 = arith.constant 0.000000e+00 : f32
    %414 = vector.broadcast %cst_89 : f32 to vector<3x128xf32>
    %415 = tpu.concatenate %413, %414 in 0 : vector<13x128xf32>, vector<3x128xf32> -> vector<16x128xf32>
    %c125_i32_90 = arith.constant 125 : i32
    %416 = tpu.dynamic_rotate %395 by %c125_i32_90 dim 1 : vector<16x128xf32>, i32 -> vector<16x128xf32>
    %417 = vector.extract_strided_slice %416 {offsets = [3, 0], sizes = [13, 128], strides = [1, 1]} : vector<16x128xf32> to vector<13x128xf32>
    %cst_91 = arith.constant 0.000000e+00 : f32
    %418 = vector.broadcast %cst_91 : f32 to vector<3x128xf32>
    %419 = tpu.concatenate %417, %418 in 0 : vector<13x128xf32>, vector<3x128xf32> -> vector<16x128xf32>
    %c36 = arith.constant 36 : index
    %420 = memref.load %arg2[%c36] : memref<108xf32, #tpu.memory_space<smem>>
    %421 = vector.broadcast %420 : f32 to vector<16x128xf32>
    %422 = arith.mulf %421, %399 : vector<16x128xf32>
    %c37 = arith.constant 37 : index
    %423 = memref.load %arg2[%c37] : memref<108xf32, #tpu.memory_space<smem>>
    %424 = vector.broadcast %423 : f32 to vector<16x128xf32>
    %425 = arith.mulf %424, %402 : vector<16x128xf32>
    %c38 = arith.constant 38 : index
    %426 = memref.load %arg2[%c38] : memref<108xf32, #tpu.memory_space<smem>>
    %427 = vector.broadcast %426 : f32 to vector<16x128xf32>
    %428 = arith.mulf %427, %406 : vector<16x128xf32>
    %c39 = arith.constant 39 : index
    %429 = memref.load %arg2[%c39] : memref<108xf32, #tpu.memory_space<smem>>
    %430 = vector.broadcast %429 : f32 to vector<16x128xf32>
    %431 = arith.mulf %430, %407 : vector<16x128xf32>
    %c40 = arith.constant 40 : index
    %432 = memref.load %arg2[%c40] : memref<108xf32, #tpu.memory_space<smem>>
    %433 = vector.broadcast %432 : f32 to vector<16x128xf32>
    %434 = arith.mulf %433, %395 : vector<16x128xf32>
    %c41 = arith.constant 41 : index
    %435 = memref.load %arg2[%c41] : memref<108xf32, #tpu.memory_space<smem>>
    %436 = vector.broadcast %435 : f32 to vector<16x128xf32>
    %437 = arith.mulf %436, %408 : vector<16x128xf32>
    %c42 = arith.constant 42 : index
    %438 = memref.load %arg2[%c42] : memref<108xf32, #tpu.memory_space<smem>>
    %439 = vector.broadcast %438 : f32 to vector<16x128xf32>
    %440 = arith.mulf %439, %412 : vector<16x128xf32>
    %c43 = arith.constant 43 : index
    %441 = memref.load %arg2[%c43] : memref<108xf32, #tpu.memory_space<smem>>
    %442 = vector.broadcast %441 : f32 to vector<16x128xf32>
    %443 = arith.mulf %442, %415 : vector<16x128xf32>
    %c44 = arith.constant 44 : index
    %444 = memref.load %arg2[%c44] : memref<108xf32, #tpu.memory_space<smem>>
    %445 = vector.broadcast %444 : f32 to vector<16x128xf32>
    %446 = arith.mulf %445, %419 : vector<16x128xf32>
    %447 = arith.addf %422, %425 : vector<16x128xf32>
    %448 = arith.addf %428, %431 : vector<16x128xf32>
    %449 = arith.addf %434, %437 : vector<16x128xf32>
    %450 = arith.addf %440, %443 : vector<16x128xf32>
    %451 = arith.addf %447, %448 : vector<16x128xf32>
    %452 = arith.addf %449, %450 : vector<16x128xf32>
    %453 = arith.addf %451, %452 : vector<16x128xf32>
    %454 = arith.addf %453, %446 : vector<16x128xf32>
    %c4_92 = arith.constant 4 : index
    %455 = memref.load %arg3[%c4_92] : memref<12xf32, #tpu.memory_space<smem>>
    %456 = vector.broadcast %455 : f32 to vector<16x128xf32>
    %457 = arith.addf %454, %456 : vector<16x128xf32>
    %cst_93 = arith.constant 0.000000e+00 : f32
    %458 = vector.broadcast %cst_93 : f32 to vector<16x128xf32>
    %459 = arith.cmpf ogt, %457, %458 : vector<16x128xf32>
    %cst_94 = arith.constant 0.00999999977 : f32
    %460 = vector.broadcast %cst_94 : f32 to vector<16x128xf32>
    %461 = arith.mulf %460, %457 : vector<16x128xf32>
    %462 = arith.select %459, %457, %461 : vector<16x128xi1>, vector<16x128xf32>
    %cst_95 = arith.constant 0.000000e+00 : f32
    %463 = vector.broadcast %cst_95 : f32 to vector<16x128xf32>
    %464 = arith.select %6, %462, %463 : vector<16x128xi1>, vector<16x128xf32>
    %c36_96 = arith.constant 36 : index
    %465 = memref.load %arg4[%c36_96] : memref<108xf32, #tpu.memory_space<smem>>
    %466 = vector.broadcast %465 : f32 to vector<16x128xf32>
    %467 = arith.mulf %466, %464 : vector<16x128xf32>
    %c37_97 = arith.constant 37 : index
    %468 = memref.load %arg4[%c37_97] : memref<108xf32, #tpu.memory_space<smem>>
    %469 = vector.broadcast %468 : f32 to vector<16x128xf32>
    %470 = arith.mulf %469, %464 : vector<16x128xf32>
    %c38_98 = arith.constant 38 : index
    %471 = memref.load %arg4[%c38_98] : memref<108xf32, #tpu.memory_space<smem>>
    %472 = vector.broadcast %471 : f32 to vector<16x128xf32>
    %473 = arith.mulf %472, %464 : vector<16x128xf32>
    %c39_99 = arith.constant 39 : index
    %474 = memref.load %arg4[%c39_99] : memref<108xf32, #tpu.memory_space<smem>>
    %475 = vector.broadcast %474 : f32 to vector<16x128xf32>
    %476 = arith.mulf %475, %464 : vector<16x128xf32>
    %c40_100 = arith.constant 40 : index
    %477 = memref.load %arg4[%c40_100] : memref<108xf32, #tpu.memory_space<smem>>
    %478 = vector.broadcast %477 : f32 to vector<16x128xf32>
    %479 = arith.mulf %478, %464 : vector<16x128xf32>
    %c41_101 = arith.constant 41 : index
    %480 = memref.load %arg4[%c41_101] : memref<108xf32, #tpu.memory_space<smem>>
    %481 = vector.broadcast %480 : f32 to vector<16x128xf32>
    %482 = arith.mulf %481, %464 : vector<16x128xf32>
    %c42_102 = arith.constant 42 : index
    %483 = memref.load %arg4[%c42_102] : memref<108xf32, #tpu.memory_space<smem>>
    %484 = vector.broadcast %483 : f32 to vector<16x128xf32>
    %485 = arith.mulf %484, %464 : vector<16x128xf32>
    %c43_103 = arith.constant 43 : index
    %486 = memref.load %arg4[%c43_103] : memref<108xf32, #tpu.memory_space<smem>>
    %487 = vector.broadcast %486 : f32 to vector<16x128xf32>
    %488 = arith.mulf %487, %464 : vector<16x128xf32>
    %c44_104 = arith.constant 44 : index
    %489 = memref.load %arg4[%c44_104] : memref<108xf32, #tpu.memory_space<smem>>
    %490 = vector.broadcast %489 : f32 to vector<16x128xf32>
    %491 = arith.mulf %490, %464 : vector<16x128xf32>
    %c45 = arith.constant 45 : index
    %492 = memref.load %arg2[%c45] : memref<108xf32, #tpu.memory_space<smem>>
    %493 = vector.broadcast %492 : f32 to vector<16x128xf32>
    %494 = arith.mulf %493, %399 : vector<16x128xf32>
    %c46 = arith.constant 46 : index
    %495 = memref.load %arg2[%c46] : memref<108xf32, #tpu.memory_space<smem>>
    %496 = vector.broadcast %495 : f32 to vector<16x128xf32>
    %497 = arith.mulf %496, %402 : vector<16x128xf32>
    %c47 = arith.constant 47 : index
    %498 = memref.load %arg2[%c47] : memref<108xf32, #tpu.memory_space<smem>>
    %499 = vector.broadcast %498 : f32 to vector<16x128xf32>
    %500 = arith.mulf %499, %406 : vector<16x128xf32>
    %c48 = arith.constant 48 : index
    %501 = memref.load %arg2[%c48] : memref<108xf32, #tpu.memory_space<smem>>
    %502 = vector.broadcast %501 : f32 to vector<16x128xf32>
    %503 = arith.mulf %502, %407 : vector<16x128xf32>
    %c49 = arith.constant 49 : index
    %504 = memref.load %arg2[%c49] : memref<108xf32, #tpu.memory_space<smem>>
    %505 = vector.broadcast %504 : f32 to vector<16x128xf32>
    %506 = arith.mulf %505, %395 : vector<16x128xf32>
    %c50 = arith.constant 50 : index
    %507 = memref.load %arg2[%c50] : memref<108xf32, #tpu.memory_space<smem>>
    %508 = vector.broadcast %507 : f32 to vector<16x128xf32>
    %509 = arith.mulf %508, %408 : vector<16x128xf32>
    %c51 = arith.constant 51 : index
    %510 = memref.load %arg2[%c51] : memref<108xf32, #tpu.memory_space<smem>>
    %511 = vector.broadcast %510 : f32 to vector<16x128xf32>
    %512 = arith.mulf %511, %412 : vector<16x128xf32>
    %c52 = arith.constant 52 : index
    %513 = memref.load %arg2[%c52] : memref<108xf32, #tpu.memory_space<smem>>
    %514 = vector.broadcast %513 : f32 to vector<16x128xf32>
    %515 = arith.mulf %514, %415 : vector<16x128xf32>
    %c53 = arith.constant 53 : index
    %516 = memref.load %arg2[%c53] : memref<108xf32, #tpu.memory_space<smem>>
    %517 = vector.broadcast %516 : f32 to vector<16x128xf32>
    %518 = arith.mulf %517, %419 : vector<16x128xf32>
    %519 = arith.addf %494, %497 : vector<16x128xf32>
    %520 = arith.addf %500, %503 : vector<16x128xf32>
    %521 = arith.addf %506, %509 : vector<16x128xf32>
    %522 = arith.addf %512, %515 : vector<16x128xf32>
    %523 = arith.addf %519, %520 : vector<16x128xf32>
    %524 = arith.addf %521, %522 : vector<16x128xf32>
    %525 = arith.addf %523, %524 : vector<16x128xf32>
    %526 = arith.addf %525, %518 : vector<16x128xf32>
    %c5_105 = arith.constant 5 : index
    %527 = memref.load %arg3[%c5_105] : memref<12xf32, #tpu.memory_space<smem>>
    %528 = vector.broadcast %527 : f32 to vector<16x128xf32>
    %529 = arith.addf %526, %528 : vector<16x128xf32>
    %cst_106 = arith.constant 0.000000e+00 : f32
    %530 = vector.broadcast %cst_106 : f32 to vector<16x128xf32>
    %531 = arith.cmpf ogt, %529, %530 : vector<16x128xf32>
    %cst_107 = arith.constant 0.00999999977 : f32
    %532 = vector.broadcast %cst_107 : f32 to vector<16x128xf32>
    %533 = arith.mulf %532, %529 : vector<16x128xf32>
    %534 = arith.select %531, %529, %533 : vector<16x128xi1>, vector<16x128xf32>
    %cst_108 = arith.constant 0.000000e+00 : f32
    %535 = vector.broadcast %cst_108 : f32 to vector<16x128xf32>
    %536 = arith.select %6, %534, %535 : vector<16x128xi1>, vector<16x128xf32>
    %c45_109 = arith.constant 45 : index
    %537 = memref.load %arg4[%c45_109] : memref<108xf32, #tpu.memory_space<smem>>
    %538 = vector.broadcast %537 : f32 to vector<16x128xf32>
    %539 = arith.mulf %538, %536 : vector<16x128xf32>
    %540 = arith.addf %467, %539 : vector<16x128xf32>
    %c46_110 = arith.constant 46 : index
    %541 = memref.load %arg4[%c46_110] : memref<108xf32, #tpu.memory_space<smem>>
    %542 = vector.broadcast %541 : f32 to vector<16x128xf32>
    %543 = arith.mulf %542, %536 : vector<16x128xf32>
    %544 = arith.addf %470, %543 : vector<16x128xf32>
    %c47_111 = arith.constant 47 : index
    %545 = memref.load %arg4[%c47_111] : memref<108xf32, #tpu.memory_space<smem>>
    %546 = vector.broadcast %545 : f32 to vector<16x128xf32>
    %547 = arith.mulf %546, %536 : vector<16x128xf32>
    %548 = arith.addf %473, %547 : vector<16x128xf32>
    %c48_112 = arith.constant 48 : index
    %549 = memref.load %arg4[%c48_112] : memref<108xf32, #tpu.memory_space<smem>>
    %550 = vector.broadcast %549 : f32 to vector<16x128xf32>
    %551 = arith.mulf %550, %536 : vector<16x128xf32>
    %552 = arith.addf %476, %551 : vector<16x128xf32>
    %c49_113 = arith.constant 49 : index
    %553 = memref.load %arg4[%c49_113] : memref<108xf32, #tpu.memory_space<smem>>
    %554 = vector.broadcast %553 : f32 to vector<16x128xf32>
    %555 = arith.mulf %554, %536 : vector<16x128xf32>
    %556 = arith.addf %479, %555 : vector<16x128xf32>
    %c50_114 = arith.constant 50 : index
    %557 = memref.load %arg4[%c50_114] : memref<108xf32, #tpu.memory_space<smem>>
    %558 = vector.broadcast %557 : f32 to vector<16x128xf32>
    %559 = arith.mulf %558, %536 : vector<16x128xf32>
    %560 = arith.addf %482, %559 : vector<16x128xf32>
    %c51_115 = arith.constant 51 : index
    %561 = memref.load %arg4[%c51_115] : memref<108xf32, #tpu.memory_space<smem>>
    %562 = vector.broadcast %561 : f32 to vector<16x128xf32>
    %563 = arith.mulf %562, %536 : vector<16x128xf32>
    %564 = arith.addf %485, %563 : vector<16x128xf32>
    %c52_116 = arith.constant 52 : index
    %565 = memref.load %arg4[%c52_116] : memref<108xf32, #tpu.memory_space<smem>>
    %566 = vector.broadcast %565 : f32 to vector<16x128xf32>
    %567 = arith.mulf %566, %536 : vector<16x128xf32>
    %568 = arith.addf %488, %567 : vector<16x128xf32>
    %c53_117 = arith.constant 53 : index
    %569 = memref.load %arg4[%c53_117] : memref<108xf32, #tpu.memory_space<smem>>
    %570 = vector.broadcast %569 : f32 to vector<16x128xf32>
    %571 = arith.mulf %570, %536 : vector<16x128xf32>
    %572 = arith.addf %491, %571 : vector<16x128xf32>
    %c54 = arith.constant 54 : index
    %573 = memref.load %arg2[%c54] : memref<108xf32, #tpu.memory_space<smem>>
    %574 = vector.broadcast %573 : f32 to vector<16x128xf32>
    %575 = arith.mulf %574, %399 : vector<16x128xf32>
    %c55 = arith.constant 55 : index
    %576 = memref.load %arg2[%c55] : memref<108xf32, #tpu.memory_space<smem>>
    %577 = vector.broadcast %576 : f32 to vector<16x128xf32>
    %578 = arith.mulf %577, %402 : vector<16x128xf32>
    %c56 = arith.constant 56 : index
    %579 = memref.load %arg2[%c56] : memref<108xf32, #tpu.memory_space<smem>>
    %580 = vector.broadcast %579 : f32 to vector<16x128xf32>
    %581 = arith.mulf %580, %406 : vector<16x128xf32>
    %c57 = arith.constant 57 : index
    %582 = memref.load %arg2[%c57] : memref<108xf32, #tpu.memory_space<smem>>
    %583 = vector.broadcast %582 : f32 to vector<16x128xf32>
    %584 = arith.mulf %583, %407 : vector<16x128xf32>
    %c58 = arith.constant 58 : index
    %585 = memref.load %arg2[%c58] : memref<108xf32, #tpu.memory_space<smem>>
    %586 = vector.broadcast %585 : f32 to vector<16x128xf32>
    %587 = arith.mulf %586, %395 : vector<16x128xf32>
    %c59 = arith.constant 59 : index
    %588 = memref.load %arg2[%c59] : memref<108xf32, #tpu.memory_space<smem>>
    %589 = vector.broadcast %588 : f32 to vector<16x128xf32>
    %590 = arith.mulf %589, %408 : vector<16x128xf32>
    %c60 = arith.constant 60 : index
    %591 = memref.load %arg2[%c60] : memref<108xf32, #tpu.memory_space<smem>>
    %592 = vector.broadcast %591 : f32 to vector<16x128xf32>
    %593 = arith.mulf %592, %412 : vector<16x128xf32>
    %c61 = arith.constant 61 : index
    %594 = memref.load %arg2[%c61] : memref<108xf32, #tpu.memory_space<smem>>
    %595 = vector.broadcast %594 : f32 to vector<16x128xf32>
    %596 = arith.mulf %595, %415 : vector<16x128xf32>
    %c62 = arith.constant 62 : index
    %597 = memref.load %arg2[%c62] : memref<108xf32, #tpu.memory_space<smem>>
    %598 = vector.broadcast %597 : f32 to vector<16x128xf32>
    %599 = arith.mulf %598, %419 : vector<16x128xf32>
    %600 = arith.addf %575, %578 : vector<16x128xf32>
    %601 = arith.addf %581, %584 : vector<16x128xf32>
    %602 = arith.addf %587, %590 : vector<16x128xf32>
    %603 = arith.addf %593, %596 : vector<16x128xf32>
    %604 = arith.addf %600, %601 : vector<16x128xf32>
    %605 = arith.addf %602, %603 : vector<16x128xf32>
    %606 = arith.addf %604, %605 : vector<16x128xf32>
    %607 = arith.addf %606, %599 : vector<16x128xf32>
    %c6_118 = arith.constant 6 : index
    %608 = memref.load %arg3[%c6_118] : memref<12xf32, #tpu.memory_space<smem>>
    %609 = vector.broadcast %608 : f32 to vector<16x128xf32>
    %610 = arith.addf %607, %609 : vector<16x128xf32>
    %cst_119 = arith.constant 0.000000e+00 : f32
    %611 = vector.broadcast %cst_119 : f32 to vector<16x128xf32>
    %612 = arith.cmpf ogt, %610, %611 : vector<16x128xf32>
    %cst_120 = arith.constant 0.00999999977 : f32
    %613 = vector.broadcast %cst_120 : f32 to vector<16x128xf32>
    %614 = arith.mulf %613, %610 : vector<16x128xf32>
    %615 = arith.select %612, %610, %614 : vector<16x128xi1>, vector<16x128xf32>
    %cst_121 = arith.constant 0.000000e+00 : f32
    %616 = vector.broadcast %cst_121 : f32 to vector<16x128xf32>
    %617 = arith.select %6, %615, %616 : vector<16x128xi1>, vector<16x128xf32>
    %c54_122 = arith.constant 54 : index
    %618 = memref.load %arg4[%c54_122] : memref<108xf32, #tpu.memory_space<smem>>
    %619 = vector.broadcast %618 : f32 to vector<16x128xf32>
    %620 = arith.mulf %619, %617 : vector<16x128xf32>
    %621 = arith.addf %540, %620 : vector<16x128xf32>
    %c55_123 = arith.constant 55 : index
    %622 = memref.load %arg4[%c55_123] : memref<108xf32, #tpu.memory_space<smem>>
    %623 = vector.broadcast %622 : f32 to vector<16x128xf32>
    %624 = arith.mulf %623, %617 : vector<16x128xf32>
    %625 = arith.addf %544, %624 : vector<16x128xf32>
    %c56_124 = arith.constant 56 : index
    %626 = memref.load %arg4[%c56_124] : memref<108xf32, #tpu.memory_space<smem>>
    %627 = vector.broadcast %626 : f32 to vector<16x128xf32>
    %628 = arith.mulf %627, %617 : vector<16x128xf32>
    %629 = arith.addf %548, %628 : vector<16x128xf32>
    %c57_125 = arith.constant 57 : index
    %630 = memref.load %arg4[%c57_125] : memref<108xf32, #tpu.memory_space<smem>>
    %631 = vector.broadcast %630 : f32 to vector<16x128xf32>
    %632 = arith.mulf %631, %617 : vector<16x128xf32>
    %633 = arith.addf %552, %632 : vector<16x128xf32>
    %c58_126 = arith.constant 58 : index
    %634 = memref.load %arg4[%c58_126] : memref<108xf32, #tpu.memory_space<smem>>
    %635 = vector.broadcast %634 : f32 to vector<16x128xf32>
    %636 = arith.mulf %635, %617 : vector<16x128xf32>
    %637 = arith.addf %556, %636 : vector<16x128xf32>
    %c59_127 = arith.constant 59 : index
    %638 = memref.load %arg4[%c59_127] : memref<108xf32, #tpu.memory_space<smem>>
    %639 = vector.broadcast %638 : f32 to vector<16x128xf32>
    %640 = arith.mulf %639, %617 : vector<16x128xf32>
    %641 = arith.addf %560, %640 : vector<16x128xf32>
    %c60_128 = arith.constant 60 : index
    %642 = memref.load %arg4[%c60_128] : memref<108xf32, #tpu.memory_space<smem>>
    %643 = vector.broadcast %642 : f32 to vector<16x128xf32>
    %644 = arith.mulf %643, %617 : vector<16x128xf32>
    %645 = arith.addf %564, %644 : vector<16x128xf32>
    %c61_129 = arith.constant 61 : index
    %646 = memref.load %arg4[%c61_129] : memref<108xf32, #tpu.memory_space<smem>>
    %647 = vector.broadcast %646 : f32 to vector<16x128xf32>
    %648 = arith.mulf %647, %617 : vector<16x128xf32>
    %649 = arith.addf %568, %648 : vector<16x128xf32>
    %c62_130 = arith.constant 62 : index
    %650 = memref.load %arg4[%c62_130] : memref<108xf32, #tpu.memory_space<smem>>
    %651 = vector.broadcast %650 : f32 to vector<16x128xf32>
    %652 = arith.mulf %651, %617 : vector<16x128xf32>
    %653 = arith.addf %572, %652 : vector<16x128xf32>
    %c63 = arith.constant 63 : index
    %654 = memref.load %arg2[%c63] : memref<108xf32, #tpu.memory_space<smem>>
    %655 = vector.broadcast %654 : f32 to vector<16x128xf32>
    %656 = arith.mulf %655, %399 : vector<16x128xf32>
    %c64 = arith.constant 64 : index
    %657 = memref.load %arg2[%c64] : memref<108xf32, #tpu.memory_space<smem>>
    %658 = vector.broadcast %657 : f32 to vector<16x128xf32>
    %659 = arith.mulf %658, %402 : vector<16x128xf32>
    %c65 = arith.constant 65 : index
    %660 = memref.load %arg2[%c65] : memref<108xf32, #tpu.memory_space<smem>>
    %661 = vector.broadcast %660 : f32 to vector<16x128xf32>
    %662 = arith.mulf %661, %406 : vector<16x128xf32>
    %c66 = arith.constant 66 : index
    %663 = memref.load %arg2[%c66] : memref<108xf32, #tpu.memory_space<smem>>
    %664 = vector.broadcast %663 : f32 to vector<16x128xf32>
    %665 = arith.mulf %664, %407 : vector<16x128xf32>
    %c67 = arith.constant 67 : index
    %666 = memref.load %arg2[%c67] : memref<108xf32, #tpu.memory_space<smem>>
    %667 = vector.broadcast %666 : f32 to vector<16x128xf32>
    %668 = arith.mulf %667, %395 : vector<16x128xf32>
    %c68 = arith.constant 68 : index
    %669 = memref.load %arg2[%c68] : memref<108xf32, #tpu.memory_space<smem>>
    %670 = vector.broadcast %669 : f32 to vector<16x128xf32>
    %671 = arith.mulf %670, %408 : vector<16x128xf32>
    %c69 = arith.constant 69 : index
    %672 = memref.load %arg2[%c69] : memref<108xf32, #tpu.memory_space<smem>>
    %673 = vector.broadcast %672 : f32 to vector<16x128xf32>
    %674 = arith.mulf %673, %412 : vector<16x128xf32>
    %c70 = arith.constant 70 : index
    %675 = memref.load %arg2[%c70] : memref<108xf32, #tpu.memory_space<smem>>
    %676 = vector.broadcast %675 : f32 to vector<16x128xf32>
    %677 = arith.mulf %676, %415 : vector<16x128xf32>
    %c71 = arith.constant 71 : index
    %678 = memref.load %arg2[%c71] : memref<108xf32, #tpu.memory_space<smem>>
    %679 = vector.broadcast %678 : f32 to vector<16x128xf32>
    %680 = arith.mulf %679, %419 : vector<16x128xf32>
    %681 = arith.addf %656, %659 : vector<16x128xf32>
    %682 = arith.addf %662, %665 : vector<16x128xf32>
    %683 = arith.addf %668, %671 : vector<16x128xf32>
    %684 = arith.addf %674, %677 : vector<16x128xf32>
    %685 = arith.addf %681, %682 : vector<16x128xf32>
    %686 = arith.addf %683, %684 : vector<16x128xf32>
    %687 = arith.addf %685, %686 : vector<16x128xf32>
    %688 = arith.addf %687, %680 : vector<16x128xf32>
    %c7_131 = arith.constant 7 : index
    %689 = memref.load %arg3[%c7_131] : memref<12xf32, #tpu.memory_space<smem>>
    %690 = vector.broadcast %689 : f32 to vector<16x128xf32>
    %691 = arith.addf %688, %690 : vector<16x128xf32>
    %cst_132 = arith.constant 0.000000e+00 : f32
    %692 = vector.broadcast %cst_132 : f32 to vector<16x128xf32>
    %693 = arith.cmpf ogt, %691, %692 : vector<16x128xf32>
    %cst_133 = arith.constant 0.00999999977 : f32
    %694 = vector.broadcast %cst_133 : f32 to vector<16x128xf32>
    %695 = arith.mulf %694, %691 : vector<16x128xf32>
    %696 = arith.select %693, %691, %695 : vector<16x128xi1>, vector<16x128xf32>
    %cst_134 = arith.constant 0.000000e+00 : f32
    %697 = vector.broadcast %cst_134 : f32 to vector<16x128xf32>
    %698 = arith.select %6, %696, %697 : vector<16x128xi1>, vector<16x128xf32>
    %c63_135 = arith.constant 63 : index
    %699 = memref.load %arg4[%c63_135] : memref<108xf32, #tpu.memory_space<smem>>
    %700 = vector.broadcast %699 : f32 to vector<16x128xf32>
    %701 = arith.mulf %700, %698 : vector<16x128xf32>
    %702 = arith.addf %621, %701 : vector<16x128xf32>
    %c64_136 = arith.constant 64 : index
    %703 = memref.load %arg4[%c64_136] : memref<108xf32, #tpu.memory_space<smem>>
    %704 = vector.broadcast %703 : f32 to vector<16x128xf32>
    %705 = arith.mulf %704, %698 : vector<16x128xf32>
    %706 = arith.addf %625, %705 : vector<16x128xf32>
    %c65_137 = arith.constant 65 : index
    %707 = memref.load %arg4[%c65_137] : memref<108xf32, #tpu.memory_space<smem>>
    %708 = vector.broadcast %707 : f32 to vector<16x128xf32>
    %709 = arith.mulf %708, %698 : vector<16x128xf32>
    %710 = arith.addf %629, %709 : vector<16x128xf32>
    %c66_138 = arith.constant 66 : index
    %711 = memref.load %arg4[%c66_138] : memref<108xf32, #tpu.memory_space<smem>>
    %712 = vector.broadcast %711 : f32 to vector<16x128xf32>
    %713 = arith.mulf %712, %698 : vector<16x128xf32>
    %714 = arith.addf %633, %713 : vector<16x128xf32>
    %c67_139 = arith.constant 67 : index
    %715 = memref.load %arg4[%c67_139] : memref<108xf32, #tpu.memory_space<smem>>
    %716 = vector.broadcast %715 : f32 to vector<16x128xf32>
    %717 = arith.mulf %716, %698 : vector<16x128xf32>
    %718 = arith.addf %637, %717 : vector<16x128xf32>
    %c68_140 = arith.constant 68 : index
    %719 = memref.load %arg4[%c68_140] : memref<108xf32, #tpu.memory_space<smem>>
    %720 = vector.broadcast %719 : f32 to vector<16x128xf32>
    %721 = arith.mulf %720, %698 : vector<16x128xf32>
    %722 = arith.addf %641, %721 : vector<16x128xf32>
    %c69_141 = arith.constant 69 : index
    %723 = memref.load %arg4[%c69_141] : memref<108xf32, #tpu.memory_space<smem>>
    %724 = vector.broadcast %723 : f32 to vector<16x128xf32>
    %725 = arith.mulf %724, %698 : vector<16x128xf32>
    %726 = arith.addf %645, %725 : vector<16x128xf32>
    %c70_142 = arith.constant 70 : index
    %727 = memref.load %arg4[%c70_142] : memref<108xf32, #tpu.memory_space<smem>>
    %728 = vector.broadcast %727 : f32 to vector<16x128xf32>
    %729 = arith.mulf %728, %698 : vector<16x128xf32>
    %730 = arith.addf %649, %729 : vector<16x128xf32>
    %c71_143 = arith.constant 71 : index
    %731 = memref.load %arg4[%c71_143] : memref<108xf32, #tpu.memory_space<smem>>
    %732 = vector.broadcast %731 : f32 to vector<16x128xf32>
    %733 = arith.mulf %732, %698 : vector<16x128xf32>
    %734 = arith.addf %653, %733 : vector<16x128xf32>
    %c1_i32_144 = arith.constant 1 : i32
    %735 = tpu.dynamic_rotate %702 by %c1_i32_144 dim 1 : vector<16x128xf32>, i32 -> vector<16x128xf32>
    %cst_145 = arith.constant 0.000000e+00 : f32
    %736 = vector.broadcast %cst_145 : f32 to vector<1x128xf32>
    %737 = vector.extract_strided_slice %735 {offsets = [0, 0], sizes = [15, 128], strides = [1, 1]} : vector<16x128xf32> to vector<15x128xf32>
    %738 = tpu.concatenate %736, %737 in 0 : vector<1x128xf32>, vector<15x128xf32> -> vector<16x128xf32>
    %cst_146 = arith.constant 0.000000e+00 : f32
    %739 = vector.broadcast %cst_146 : f32 to vector<1x128xf32>
    %740 = vector.extract_strided_slice %706 {offsets = [0, 0], sizes = [15, 128], strides = [1, 1]} : vector<16x128xf32> to vector<15x128xf32>
    %741 = tpu.concatenate %739, %740 in 0 : vector<1x128xf32>, vector<15x128xf32> -> vector<16x128xf32>
    %c127_i32_147 = arith.constant 127 : i32
    %742 = tpu.dynamic_rotate %710 by %c127_i32_147 dim 1 : vector<16x128xf32>, i32 -> vector<16x128xf32>
    %cst_148 = arith.constant 0.000000e+00 : f32
    %743 = vector.broadcast %cst_148 : f32 to vector<1x128xf32>
    %744 = vector.extract_strided_slice %742 {offsets = [0, 0], sizes = [15, 128], strides = [1, 1]} : vector<16x128xf32> to vector<15x128xf32>
    %745 = tpu.concatenate %743, %744 in 0 : vector<1x128xf32>, vector<15x128xf32> -> vector<16x128xf32>
    %c1_i32_149 = arith.constant 1 : i32
    %746 = tpu.dynamic_rotate %714 by %c1_i32_149 dim 1 : vector<16x128xf32>, i32 -> vector<16x128xf32>
    %c127_i32_150 = arith.constant 127 : i32
    %747 = tpu.dynamic_rotate %722 by %c127_i32_150 dim 1 : vector<16x128xf32>, i32 -> vector<16x128xf32>
    %c1_i32_151 = arith.constant 1 : i32
    %748 = tpu.dynamic_rotate %726 by %c1_i32_151 dim 1 : vector<16x128xf32>, i32 -> vector<16x128xf32>
    %749 = vector.extract_strided_slice %748 {offsets = [1, 0], sizes = [15, 128], strides = [1, 1]} : vector<16x128xf32> to vector<15x128xf32>
    %cst_152 = arith.constant 0.000000e+00 : f32
    %750 = vector.broadcast %cst_152 : f32 to vector<1x128xf32>
    %751 = tpu.concatenate %749, %750 in 0 : vector<15x128xf32>, vector<1x128xf32> -> vector<16x128xf32>
    %752 = vector.extract_strided_slice %730 {offsets = [1, 0], sizes = [15, 128], strides = [1, 1]} : vector<16x128xf32> to vector<15x128xf32>
    %cst_153 = arith.constant 0.000000e+00 : f32
    %753 = vector.broadcast %cst_153 : f32 to vector<1x128xf32>
    %754 = tpu.concatenate %752, %753 in 0 : vector<15x128xf32>, vector<1x128xf32> -> vector<16x128xf32>
    %c127_i32_154 = arith.constant 127 : i32
    %755 = tpu.dynamic_rotate %734 by %c127_i32_154 dim 1 : vector<16x128xf32>, i32 -> vector<16x128xf32>
    %756 = vector.extract_strided_slice %755 {offsets = [1, 0], sizes = [15, 128], strides = [1, 1]} : vector<16x128xf32> to vector<15x128xf32>
    %cst_155 = arith.constant 0.000000e+00 : f32
    %757 = vector.broadcast %cst_155 : f32 to vector<1x128xf32>
    %758 = tpu.concatenate %756, %757 in 0 : vector<15x128xf32>, vector<1x128xf32> -> vector<16x128xf32>
    %759 = arith.addf %738, %741 : vector<16x128xf32>
    %760 = arith.addf %745, %746 : vector<16x128xf32>
    %761 = arith.addf %718, %747 : vector<16x128xf32>
    %762 = arith.addf %751, %754 : vector<16x128xf32>
    %763 = arith.addf %759, %760 : vector<16x128xf32>
    %764 = arith.addf %761, %762 : vector<16x128xf32>
    %765 = arith.addf %763, %764 : vector<16x128xf32>
    %766 = arith.addf %765, %758 : vector<16x128xf32>
    %767 = arith.addf %390, %766 : vector<16x128xf32>
    %c1_156 = arith.constant 1 : index
    %768 = memref.load %arg5[%c1_156] : memref<3xf32, #tpu.memory_space<smem>>
    %769 = vector.broadcast %768 : f32 to vector<16x128xf32>
    %770 = arith.addf %767, %769 : vector<16x128xf32>
    %cst_157 = arith.constant 0.000000e+00 : f32
    %771 = vector.broadcast %cst_157 : f32 to vector<16x128xf32>
    %772 = arith.select %6, %770, %771 : vector<16x128xi1>, vector<16x128xf32>
    %cst_158 = arith.constant 0.000000e+00 : f32
    %773 = vector.broadcast %cst_158 : f32 to vector<16x128xf32>
    %774 = arith.cmpf ogt, %772, %773 : vector<16x128xf32>
    %cst_159 = arith.constant 0.00999999977 : f32
    %775 = vector.broadcast %cst_159 : f32 to vector<16x128xf32>
    %776 = arith.mulf %775, %772 : vector<16x128xf32>
    %777 = arith.select %774, %772, %776 : vector<16x128xi1>, vector<16x128xf32>
    %c5_i32 = arith.constant 5 : i32
    %778 = tpu.dynamic_rotate %777 by %c5_i32 dim 1 : vector<16x128xf32>, i32 -> vector<16x128xf32>
    %cst_160 = arith.constant 0.000000e+00 : f32
    %779 = vector.broadcast %cst_160 : f32 to vector<5x128xf32>
    %780 = vector.extract_strided_slice %778 {offsets = [0, 0], sizes = [11, 128], strides = [1, 1]} : vector<16x128xf32> to vector<11x128xf32>
    %781 = tpu.concatenate %779, %780 in 0 : vector<5x128xf32>, vector<11x128xf32> -> vector<16x128xf32>
    %cst_161 = arith.constant 0.000000e+00 : f32
    %782 = vector.broadcast %cst_161 : f32 to vector<5x128xf32>
    %783 = vector.extract_strided_slice %777 {offsets = [0, 0], sizes = [11, 128], strides = [1, 1]} : vector<16x128xf32> to vector<11x128xf32>
    %784 = tpu.concatenate %782, %783 in 0 : vector<5x128xf32>, vector<11x128xf32> -> vector<16x128xf32>
    %c123_i32 = arith.constant 123 : i32
    %785 = tpu.dynamic_rotate %777 by %c123_i32 dim 1 : vector<16x128xf32>, i32 -> vector<16x128xf32>
    %cst_162 = arith.constant 0.000000e+00 : f32
    %786 = vector.broadcast %cst_162 : f32 to vector<5x128xf32>
    %787 = vector.extract_strided_slice %785 {offsets = [0, 0], sizes = [11, 128], strides = [1, 1]} : vector<16x128xf32> to vector<11x128xf32>
    %788 = tpu.concatenate %786, %787 in 0 : vector<5x128xf32>, vector<11x128xf32> -> vector<16x128xf32>
    %c5_i32_163 = arith.constant 5 : i32
    %789 = tpu.dynamic_rotate %777 by %c5_i32_163 dim 1 : vector<16x128xf32>, i32 -> vector<16x128xf32>
    %c123_i32_164 = arith.constant 123 : i32
    %790 = tpu.dynamic_rotate %777 by %c123_i32_164 dim 1 : vector<16x128xf32>, i32 -> vector<16x128xf32>
    %c5_i32_165 = arith.constant 5 : i32
    %791 = tpu.dynamic_rotate %777 by %c5_i32_165 dim 1 : vector<16x128xf32>, i32 -> vector<16x128xf32>
    %792 = vector.extract_strided_slice %791 {offsets = [5, 0], sizes = [11, 128], strides = [1, 1]} : vector<16x128xf32> to vector<11x128xf32>
    %cst_166 = arith.constant 0.000000e+00 : f32
    %793 = vector.broadcast %cst_166 : f32 to vector<5x128xf32>
    %794 = tpu.concatenate %792, %793 in 0 : vector<11x128xf32>, vector<5x128xf32> -> vector<16x128xf32>
    %795 = vector.extract_strided_slice %777 {offsets = [5, 0], sizes = [11, 128], strides = [1, 1]} : vector<16x128xf32> to vector<11x128xf32>
    %cst_167 = arith.constant 0.000000e+00 : f32
    %796 = vector.broadcast %cst_167 : f32 to vector<5x128xf32>
    %797 = tpu.concatenate %795, %796 in 0 : vector<11x128xf32>, vector<5x128xf32> -> vector<16x128xf32>
    %c123_i32_168 = arith.constant 123 : i32
    %798 = tpu.dynamic_rotate %777 by %c123_i32_168 dim 1 : vector<16x128xf32>, i32 -> vector<16x128xf32>
    %799 = vector.extract_strided_slice %798 {offsets = [5, 0], sizes = [11, 128], strides = [1, 1]} : vector<16x128xf32> to vector<11x128xf32>
    %cst_169 = arith.constant 0.000000e+00 : f32
    %800 = vector.broadcast %cst_169 : f32 to vector<5x128xf32>
    %801 = tpu.concatenate %799, %800 in 0 : vector<11x128xf32>, vector<5x128xf32> -> vector<16x128xf32>
    %c72 = arith.constant 72 : index
    %802 = memref.load %arg2[%c72] : memref<108xf32, #tpu.memory_space<smem>>
    %803 = vector.broadcast %802 : f32 to vector<16x128xf32>
    %804 = arith.mulf %803, %781 : vector<16x128xf32>
    %c73 = arith.constant 73 : index
    %805 = memref.load %arg2[%c73] : memref<108xf32, #tpu.memory_space<smem>>
    %806 = vector.broadcast %805 : f32 to vector<16x128xf32>
    %807 = arith.mulf %806, %784 : vector<16x128xf32>
    %c74 = arith.constant 74 : index
    %808 = memref.load %arg2[%c74] : memref<108xf32, #tpu.memory_space<smem>>
    %809 = vector.broadcast %808 : f32 to vector<16x128xf32>
    %810 = arith.mulf %809, %788 : vector<16x128xf32>
    %c75 = arith.constant 75 : index
    %811 = memref.load %arg2[%c75] : memref<108xf32, #tpu.memory_space<smem>>
    %812 = vector.broadcast %811 : f32 to vector<16x128xf32>
    %813 = arith.mulf %812, %789 : vector<16x128xf32>
    %c76 = arith.constant 76 : index
    %814 = memref.load %arg2[%c76] : memref<108xf32, #tpu.memory_space<smem>>
    %815 = vector.broadcast %814 : f32 to vector<16x128xf32>
    %816 = arith.mulf %815, %777 : vector<16x128xf32>
    %c77 = arith.constant 77 : index
    %817 = memref.load %arg2[%c77] : memref<108xf32, #tpu.memory_space<smem>>
    %818 = vector.broadcast %817 : f32 to vector<16x128xf32>
    %819 = arith.mulf %818, %790 : vector<16x128xf32>
    %c78 = arith.constant 78 : index
    %820 = memref.load %arg2[%c78] : memref<108xf32, #tpu.memory_space<smem>>
    %821 = vector.broadcast %820 : f32 to vector<16x128xf32>
    %822 = arith.mulf %821, %794 : vector<16x128xf32>
    %c79 = arith.constant 79 : index
    %823 = memref.load %arg2[%c79] : memref<108xf32, #tpu.memory_space<smem>>
    %824 = vector.broadcast %823 : f32 to vector<16x128xf32>
    %825 = arith.mulf %824, %797 : vector<16x128xf32>
    %c80 = arith.constant 80 : index
    %826 = memref.load %arg2[%c80] : memref<108xf32, #tpu.memory_space<smem>>
    %827 = vector.broadcast %826 : f32 to vector<16x128xf32>
    %828 = arith.mulf %827, %801 : vector<16x128xf32>
    %829 = arith.addf %804, %807 : vector<16x128xf32>
    %830 = arith.addf %810, %813 : vector<16x128xf32>
    %831 = arith.addf %816, %819 : vector<16x128xf32>
    %832 = arith.addf %822, %825 : vector<16x128xf32>
    %833 = arith.addf %829, %830 : vector<16x128xf32>
    %834 = arith.addf %831, %832 : vector<16x128xf32>
    %835 = arith.addf %833, %834 : vector<16x128xf32>
    %836 = arith.addf %835, %828 : vector<16x128xf32>
    %c8_170 = arith.constant 8 : index
    %837 = memref.load %arg3[%c8_170] : memref<12xf32, #tpu.memory_space<smem>>
    %838 = vector.broadcast %837 : f32 to vector<16x128xf32>
    %839 = arith.addf %836, %838 : vector<16x128xf32>
    %cst_171 = arith.constant 0.000000e+00 : f32
    %840 = vector.broadcast %cst_171 : f32 to vector<16x128xf32>
    %841 = arith.cmpf ogt, %839, %840 : vector<16x128xf32>
    %cst_172 = arith.constant 0.00999999977 : f32
    %842 = vector.broadcast %cst_172 : f32 to vector<16x128xf32>
    %843 = arith.mulf %842, %839 : vector<16x128xf32>
    %844 = arith.select %841, %839, %843 : vector<16x128xi1>, vector<16x128xf32>
    %cst_173 = arith.constant 0.000000e+00 : f32
    %845 = vector.broadcast %cst_173 : f32 to vector<16x128xf32>
    %846 = arith.select %6, %844, %845 : vector<16x128xi1>, vector<16x128xf32>
    %c72_174 = arith.constant 72 : index
    %847 = memref.load %arg4[%c72_174] : memref<108xf32, #tpu.memory_space<smem>>
    %848 = vector.broadcast %847 : f32 to vector<16x128xf32>
    %849 = arith.mulf %848, %846 : vector<16x128xf32>
    %c73_175 = arith.constant 73 : index
    %850 = memref.load %arg4[%c73_175] : memref<108xf32, #tpu.memory_space<smem>>
    %851 = vector.broadcast %850 : f32 to vector<16x128xf32>
    %852 = arith.mulf %851, %846 : vector<16x128xf32>
    %c74_176 = arith.constant 74 : index
    %853 = memref.load %arg4[%c74_176] : memref<108xf32, #tpu.memory_space<smem>>
    %854 = vector.broadcast %853 : f32 to vector<16x128xf32>
    %855 = arith.mulf %854, %846 : vector<16x128xf32>
    %c75_177 = arith.constant 75 : index
    %856 = memref.load %arg4[%c75_177] : memref<108xf32, #tpu.memory_space<smem>>
    %857 = vector.broadcast %856 : f32 to vector<16x128xf32>
    %858 = arith.mulf %857, %846 : vector<16x128xf32>
    %c76_178 = arith.constant 76 : index
    %859 = memref.load %arg4[%c76_178] : memref<108xf32, #tpu.memory_space<smem>>
    %860 = vector.broadcast %859 : f32 to vector<16x128xf32>
    %861 = arith.mulf %860, %846 : vector<16x128xf32>
    %c77_179 = arith.constant 77 : index
    %862 = memref.load %arg4[%c77_179] : memref<108xf32, #tpu.memory_space<smem>>
    %863 = vector.broadcast %862 : f32 to vector<16x128xf32>
    %864 = arith.mulf %863, %846 : vector<16x128xf32>
    %c78_180 = arith.constant 78 : index
    %865 = memref.load %arg4[%c78_180] : memref<108xf32, #tpu.memory_space<smem>>
    %866 = vector.broadcast %865 : f32 to vector<16x128xf32>
    %867 = arith.mulf %866, %846 : vector<16x128xf32>
    %c79_181 = arith.constant 79 : index
    %868 = memref.load %arg4[%c79_181] : memref<108xf32, #tpu.memory_space<smem>>
    %869 = vector.broadcast %868 : f32 to vector<16x128xf32>
    %870 = arith.mulf %869, %846 : vector<16x128xf32>
    %c80_182 = arith.constant 80 : index
    %871 = memref.load %arg4[%c80_182] : memref<108xf32, #tpu.memory_space<smem>>
    %872 = vector.broadcast %871 : f32 to vector<16x128xf32>
    %873 = arith.mulf %872, %846 : vector<16x128xf32>
    %c81 = arith.constant 81 : index
    %874 = memref.load %arg2[%c81] : memref<108xf32, #tpu.memory_space<smem>>
    %875 = vector.broadcast %874 : f32 to vector<16x128xf32>
    %876 = arith.mulf %875, %781 : vector<16x128xf32>
    %c82 = arith.constant 82 : index
    %877 = memref.load %arg2[%c82] : memref<108xf32, #tpu.memory_space<smem>>
    %878 = vector.broadcast %877 : f32 to vector<16x128xf32>
    %879 = arith.mulf %878, %784 : vector<16x128xf32>
    %c83 = arith.constant 83 : index
    %880 = memref.load %arg2[%c83] : memref<108xf32, #tpu.memory_space<smem>>
    %881 = vector.broadcast %880 : f32 to vector<16x128xf32>
    %882 = arith.mulf %881, %788 : vector<16x128xf32>
    %c84 = arith.constant 84 : index
    %883 = memref.load %arg2[%c84] : memref<108xf32, #tpu.memory_space<smem>>
    %884 = vector.broadcast %883 : f32 to vector<16x128xf32>
    %885 = arith.mulf %884, %789 : vector<16x128xf32>
    %c85 = arith.constant 85 : index
    %886 = memref.load %arg2[%c85] : memref<108xf32, #tpu.memory_space<smem>>
    %887 = vector.broadcast %886 : f32 to vector<16x128xf32>
    %888 = arith.mulf %887, %777 : vector<16x128xf32>
    %c86 = arith.constant 86 : index
    %889 = memref.load %arg2[%c86] : memref<108xf32, #tpu.memory_space<smem>>
    %890 = vector.broadcast %889 : f32 to vector<16x128xf32>
    %891 = arith.mulf %890, %790 : vector<16x128xf32>
    %c87 = arith.constant 87 : index
    %892 = memref.load %arg2[%c87] : memref<108xf32, #tpu.memory_space<smem>>
    %893 = vector.broadcast %892 : f32 to vector<16x128xf32>
    %894 = arith.mulf %893, %794 : vector<16x128xf32>
    %c88 = arith.constant 88 : index
    %895 = memref.load %arg2[%c88] : memref<108xf32, #tpu.memory_space<smem>>
    %896 = vector.broadcast %895 : f32 to vector<16x128xf32>
    %897 = arith.mulf %896, %797 : vector<16x128xf32>
    %c89 = arith.constant 89 : index
    %898 = memref.load %arg2[%c89] : memref<108xf32, #tpu.memory_space<smem>>
    %899 = vector.broadcast %898 : f32 to vector<16x128xf32>
    %900 = arith.mulf %899, %801 : vector<16x128xf32>
    %901 = arith.addf %876, %879 : vector<16x128xf32>
    %902 = arith.addf %882, %885 : vector<16x128xf32>
    %903 = arith.addf %888, %891 : vector<16x128xf32>
    %904 = arith.addf %894, %897 : vector<16x128xf32>
    %905 = arith.addf %901, %902 : vector<16x128xf32>
    %906 = arith.addf %903, %904 : vector<16x128xf32>
    %907 = arith.addf %905, %906 : vector<16x128xf32>
    %908 = arith.addf %907, %900 : vector<16x128xf32>
    %c9_183 = arith.constant 9 : index
    %909 = memref.load %arg3[%c9_183] : memref<12xf32, #tpu.memory_space<smem>>
    %910 = vector.broadcast %909 : f32 to vector<16x128xf32>
    %911 = arith.addf %908, %910 : vector<16x128xf32>
    %cst_184 = arith.constant 0.000000e+00 : f32
    %912 = vector.broadcast %cst_184 : f32 to vector<16x128xf32>
    %913 = arith.cmpf ogt, %911, %912 : vector<16x128xf32>
    %cst_185 = arith.constant 0.00999999977 : f32
    %914 = vector.broadcast %cst_185 : f32 to vector<16x128xf32>
    %915 = arith.mulf %914, %911 : vector<16x128xf32>
    %916 = arith.select %913, %911, %915 : vector<16x128xi1>, vector<16x128xf32>
    %cst_186 = arith.constant 0.000000e+00 : f32
    %917 = vector.broadcast %cst_186 : f32 to vector<16x128xf32>
    %918 = arith.select %6, %916, %917 : vector<16x128xi1>, vector<16x128xf32>
    %c81_187 = arith.constant 81 : index
    %919 = memref.load %arg4[%c81_187] : memref<108xf32, #tpu.memory_space<smem>>
    %920 = vector.broadcast %919 : f32 to vector<16x128xf32>
    %921 = arith.mulf %920, %918 : vector<16x128xf32>
    %922 = arith.addf %849, %921 : vector<16x128xf32>
    %c82_188 = arith.constant 82 : index
    %923 = memref.load %arg4[%c82_188] : memref<108xf32, #tpu.memory_space<smem>>
    %924 = vector.broadcast %923 : f32 to vector<16x128xf32>
    %925 = arith.mulf %924, %918 : vector<16x128xf32>
    %926 = arith.addf %852, %925 : vector<16x128xf32>
    %c83_189 = arith.constant 83 : index
    %927 = memref.load %arg4[%c83_189] : memref<108xf32, #tpu.memory_space<smem>>
    %928 = vector.broadcast %927 : f32 to vector<16x128xf32>
    %929 = arith.mulf %928, %918 : vector<16x128xf32>
    %930 = arith.addf %855, %929 : vector<16x128xf32>
    %c84_190 = arith.constant 84 : index
    %931 = memref.load %arg4[%c84_190] : memref<108xf32, #tpu.memory_space<smem>>
    %932 = vector.broadcast %931 : f32 to vector<16x128xf32>
    %933 = arith.mulf %932, %918 : vector<16x128xf32>
    %934 = arith.addf %858, %933 : vector<16x128xf32>
    %c85_191 = arith.constant 85 : index
    %935 = memref.load %arg4[%c85_191] : memref<108xf32, #tpu.memory_space<smem>>
    %936 = vector.broadcast %935 : f32 to vector<16x128xf32>
    %937 = arith.mulf %936, %918 : vector<16x128xf32>
    %938 = arith.addf %861, %937 : vector<16x128xf32>
    %c86_192 = arith.constant 86 : index
    %939 = memref.load %arg4[%c86_192] : memref<108xf32, #tpu.memory_space<smem>>
    %940 = vector.broadcast %939 : f32 to vector<16x128xf32>
    %941 = arith.mulf %940, %918 : vector<16x128xf32>
    %942 = arith.addf %864, %941 : vector<16x128xf32>
    %c87_193 = arith.constant 87 : index
    %943 = memref.load %arg4[%c87_193] : memref<108xf32, #tpu.memory_space<smem>>
    %944 = vector.broadcast %943 : f32 to vector<16x128xf32>
    %945 = arith.mulf %944, %918 : vector<16x128xf32>
    %946 = arith.addf %867, %945 : vector<16x128xf32>
    %c88_194 = arith.constant 88 : index
    %947 = memref.load %arg4[%c88_194] : memref<108xf32, #tpu.memory_space<smem>>
    %948 = vector.broadcast %947 : f32 to vector<16x128xf32>
    %949 = arith.mulf %948, %918 : vector<16x128xf32>
    %950 = arith.addf %870, %949 : vector<16x128xf32>
    %c89_195 = arith.constant 89 : index
    %951 = memref.load %arg4[%c89_195] : memref<108xf32, #tpu.memory_space<smem>>
    %952 = vector.broadcast %951 : f32 to vector<16x128xf32>
    %953 = arith.mulf %952, %918 : vector<16x128xf32>
    %954 = arith.addf %873, %953 : vector<16x128xf32>
    %c90 = arith.constant 90 : index
    %955 = memref.load %arg2[%c90] : memref<108xf32, #tpu.memory_space<smem>>
    %956 = vector.broadcast %955 : f32 to vector<16x128xf32>
    %957 = arith.mulf %956, %781 : vector<16x128xf32>
    %c91 = arith.constant 91 : index
    %958 = memref.load %arg2[%c91] : memref<108xf32, #tpu.memory_space<smem>>
    %959 = vector.broadcast %958 : f32 to vector<16x128xf32>
    %960 = arith.mulf %959, %784 : vector<16x128xf32>
    %c92 = arith.constant 92 : index
    %961 = memref.load %arg2[%c92] : memref<108xf32, #tpu.memory_space<smem>>
    %962 = vector.broadcast %961 : f32 to vector<16x128xf32>
    %963 = arith.mulf %962, %788 : vector<16x128xf32>
    %c93 = arith.constant 93 : index
    %964 = memref.load %arg2[%c93] : memref<108xf32, #tpu.memory_space<smem>>
    %965 = vector.broadcast %964 : f32 to vector<16x128xf32>
    %966 = arith.mulf %965, %789 : vector<16x128xf32>
    %c94 = arith.constant 94 : index
    %967 = memref.load %arg2[%c94] : memref<108xf32, #tpu.memory_space<smem>>
    %968 = vector.broadcast %967 : f32 to vector<16x128xf32>
    %969 = arith.mulf %968, %777 : vector<16x128xf32>
    %c95 = arith.constant 95 : index
    %970 = memref.load %arg2[%c95] : memref<108xf32, #tpu.memory_space<smem>>
    %971 = vector.broadcast %970 : f32 to vector<16x128xf32>
    %972 = arith.mulf %971, %790 : vector<16x128xf32>
    %c96 = arith.constant 96 : index
    %973 = memref.load %arg2[%c96] : memref<108xf32, #tpu.memory_space<smem>>
    %974 = vector.broadcast %973 : f32 to vector<16x128xf32>
    %975 = arith.mulf %974, %794 : vector<16x128xf32>
    %c97 = arith.constant 97 : index
    %976 = memref.load %arg2[%c97] : memref<108xf32, #tpu.memory_space<smem>>
    %977 = vector.broadcast %976 : f32 to vector<16x128xf32>
    %978 = arith.mulf %977, %797 : vector<16x128xf32>
    %c98 = arith.constant 98 : index
    %979 = memref.load %arg2[%c98] : memref<108xf32, #tpu.memory_space<smem>>
    %980 = vector.broadcast %979 : f32 to vector<16x128xf32>
    %981 = arith.mulf %980, %801 : vector<16x128xf32>
    %982 = arith.addf %957, %960 : vector<16x128xf32>
    %983 = arith.addf %963, %966 : vector<16x128xf32>
    %984 = arith.addf %969, %972 : vector<16x128xf32>
    %985 = arith.addf %975, %978 : vector<16x128xf32>
    %986 = arith.addf %982, %983 : vector<16x128xf32>
    %987 = arith.addf %984, %985 : vector<16x128xf32>
    %988 = arith.addf %986, %987 : vector<16x128xf32>
    %989 = arith.addf %988, %981 : vector<16x128xf32>
    %c10_196 = arith.constant 10 : index
    %990 = memref.load %arg3[%c10_196] : memref<12xf32, #tpu.memory_space<smem>>
    %991 = vector.broadcast %990 : f32 to vector<16x128xf32>
    %992 = arith.addf %989, %991 : vector<16x128xf32>
    %cst_197 = arith.constant 0.000000e+00 : f32
    %993 = vector.broadcast %cst_197 : f32 to vector<16x128xf32>
    %994 = arith.cmpf ogt, %992, %993 : vector<16x128xf32>
    %cst_198 = arith.constant 0.00999999977 : f32
    %995 = vector.broadcast %cst_198 : f32 to vector<16x128xf32>
    %996 = arith.mulf %995, %992 : vector<16x128xf32>
    %997 = arith.select %994, %992, %996 : vector<16x128xi1>, vector<16x128xf32>
    %cst_199 = arith.constant 0.000000e+00 : f32
    %998 = vector.broadcast %cst_199 : f32 to vector<16x128xf32>
    %999 = arith.select %6, %997, %998 : vector<16x128xi1>, vector<16x128xf32>
    %c90_200 = arith.constant 90 : index
    %1000 = memref.load %arg4[%c90_200] : memref<108xf32, #tpu.memory_space<smem>>
    %1001 = vector.broadcast %1000 : f32 to vector<16x128xf32>
    %1002 = arith.mulf %1001, %999 : vector<16x128xf32>
    %1003 = arith.addf %922, %1002 : vector<16x128xf32>
    %c91_201 = arith.constant 91 : index
    %1004 = memref.load %arg4[%c91_201] : memref<108xf32, #tpu.memory_space<smem>>
    %1005 = vector.broadcast %1004 : f32 to vector<16x128xf32>
    %1006 = arith.mulf %1005, %999 : vector<16x128xf32>
    %1007 = arith.addf %926, %1006 : vector<16x128xf32>
    %c92_202 = arith.constant 92 : index
    %1008 = memref.load %arg4[%c92_202] : memref<108xf32, #tpu.memory_space<smem>>
    %1009 = vector.broadcast %1008 : f32 to vector<16x128xf32>
    %1010 = arith.mulf %1009, %999 : vector<16x128xf32>
    %1011 = arith.addf %930, %1010 : vector<16x128xf32>
    %c93_203 = arith.constant 93 : index
    %1012 = memref.load %arg4[%c93_203] : memref<108xf32, #tpu.memory_space<smem>>
    %1013 = vector.broadcast %1012 : f32 to vector<16x128xf32>
    %1014 = arith.mulf %1013, %999 : vector<16x128xf32>
    %1015 = arith.addf %934, %1014 : vector<16x128xf32>
    %c94_204 = arith.constant 94 : index
    %1016 = memref.load %arg4[%c94_204] : memref<108xf32, #tpu.memory_space<smem>>
    %1017 = vector.broadcast %1016 : f32 to vector<16x128xf32>
    %1018 = arith.mulf %1017, %999 : vector<16x128xf32>
    %1019 = arith.addf %938, %1018 : vector<16x128xf32>
    %c95_205 = arith.constant 95 : index
    %1020 = memref.load %arg4[%c95_205] : memref<108xf32, #tpu.memory_space<smem>>
    %1021 = vector.broadcast %1020 : f32 to vector<16x128xf32>
    %1022 = arith.mulf %1021, %999 : vector<16x128xf32>
    %1023 = arith.addf %942, %1022 : vector<16x128xf32>
    %c96_206 = arith.constant 96 : index
    %1024 = memref.load %arg4[%c96_206] : memref<108xf32, #tpu.memory_space<smem>>
    %1025 = vector.broadcast %1024 : f32 to vector<16x128xf32>
    %1026 = arith.mulf %1025, %999 : vector<16x128xf32>
    %1027 = arith.addf %946, %1026 : vector<16x128xf32>
    %c97_207 = arith.constant 97 : index
    %1028 = memref.load %arg4[%c97_207] : memref<108xf32, #tpu.memory_space<smem>>
    %1029 = vector.broadcast %1028 : f32 to vector<16x128xf32>
    %1030 = arith.mulf %1029, %999 : vector<16x128xf32>
    %1031 = arith.addf %950, %1030 : vector<16x128xf32>
    %c98_208 = arith.constant 98 : index
    %1032 = memref.load %arg4[%c98_208] : memref<108xf32, #tpu.memory_space<smem>>
    %1033 = vector.broadcast %1032 : f32 to vector<16x128xf32>
    %1034 = arith.mulf %1033, %999 : vector<16x128xf32>
    %1035 = arith.addf %954, %1034 : vector<16x128xf32>
    %c99 = arith.constant 99 : index
    %1036 = memref.load %arg2[%c99] : memref<108xf32, #tpu.memory_space<smem>>
    %1037 = vector.broadcast %1036 : f32 to vector<16x128xf32>
    %1038 = arith.mulf %1037, %781 : vector<16x128xf32>
    %c100 = arith.constant 100 : index
    %1039 = memref.load %arg2[%c100] : memref<108xf32, #tpu.memory_space<smem>>
    %1040 = vector.broadcast %1039 : f32 to vector<16x128xf32>
    %1041 = arith.mulf %1040, %784 : vector<16x128xf32>
    %c101 = arith.constant 101 : index
    %1042 = memref.load %arg2[%c101] : memref<108xf32, #tpu.memory_space<smem>>
    %1043 = vector.broadcast %1042 : f32 to vector<16x128xf32>
    %1044 = arith.mulf %1043, %788 : vector<16x128xf32>
    %c102 = arith.constant 102 : index
    %1045 = memref.load %arg2[%c102] : memref<108xf32, #tpu.memory_space<smem>>
    %1046 = vector.broadcast %1045 : f32 to vector<16x128xf32>
    %1047 = arith.mulf %1046, %789 : vector<16x128xf32>
    %c103 = arith.constant 103 : index
    %1048 = memref.load %arg2[%c103] : memref<108xf32, #tpu.memory_space<smem>>
    %1049 = vector.broadcast %1048 : f32 to vector<16x128xf32>
    %1050 = arith.mulf %1049, %777 : vector<16x128xf32>
    %c104 = arith.constant 104 : index
    %1051 = memref.load %arg2[%c104] : memref<108xf32, #tpu.memory_space<smem>>
    %1052 = vector.broadcast %1051 : f32 to vector<16x128xf32>
    %1053 = arith.mulf %1052, %790 : vector<16x128xf32>
    %c105 = arith.constant 105 : index
    %1054 = memref.load %arg2[%c105] : memref<108xf32, #tpu.memory_space<smem>>
    %1055 = vector.broadcast %1054 : f32 to vector<16x128xf32>
    %1056 = arith.mulf %1055, %794 : vector<16x128xf32>
    %c106 = arith.constant 106 : index
    %1057 = memref.load %arg2[%c106] : memref<108xf32, #tpu.memory_space<smem>>
    %1058 = vector.broadcast %1057 : f32 to vector<16x128xf32>
    %1059 = arith.mulf %1058, %797 : vector<16x128xf32>
    %c107 = arith.constant 107 : index
    %1060 = memref.load %arg2[%c107] : memref<108xf32, #tpu.memory_space<smem>>
    %1061 = vector.broadcast %1060 : f32 to vector<16x128xf32>
    %1062 = arith.mulf %1061, %801 : vector<16x128xf32>
    %1063 = arith.addf %1038, %1041 : vector<16x128xf32>
    %1064 = arith.addf %1044, %1047 : vector<16x128xf32>
    %1065 = arith.addf %1050, %1053 : vector<16x128xf32>
    %1066 = arith.addf %1056, %1059 : vector<16x128xf32>
    %1067 = arith.addf %1063, %1064 : vector<16x128xf32>
    %1068 = arith.addf %1065, %1066 : vector<16x128xf32>
    %1069 = arith.addf %1067, %1068 : vector<16x128xf32>
    %1070 = arith.addf %1069, %1062 : vector<16x128xf32>
    %c11_209 = arith.constant 11 : index
    %1071 = memref.load %arg3[%c11_209] : memref<12xf32, #tpu.memory_space<smem>>
    %1072 = vector.broadcast %1071 : f32 to vector<16x128xf32>
    %1073 = arith.addf %1070, %1072 : vector<16x128xf32>
    %cst_210 = arith.constant 0.000000e+00 : f32
    %1074 = vector.broadcast %cst_210 : f32 to vector<16x128xf32>
    %1075 = arith.cmpf ogt, %1073, %1074 : vector<16x128xf32>
    %cst_211 = arith.constant 0.00999999977 : f32
    %1076 = vector.broadcast %cst_211 : f32 to vector<16x128xf32>
    %1077 = arith.mulf %1076, %1073 : vector<16x128xf32>
    %1078 = arith.select %1075, %1073, %1077 : vector<16x128xi1>, vector<16x128xf32>
    %cst_212 = arith.constant 0.000000e+00 : f32
    %1079 = vector.broadcast %cst_212 : f32 to vector<16x128xf32>
    %1080 = arith.select %6, %1078, %1079 : vector<16x128xi1>, vector<16x128xf32>
    %c99_213 = arith.constant 99 : index
    %1081 = memref.load %arg4[%c99_213] : memref<108xf32, #tpu.memory_space<smem>>
    %1082 = vector.broadcast %1081 : f32 to vector<16x128xf32>
    %1083 = arith.mulf %1082, %1080 : vector<16x128xf32>
    %1084 = arith.addf %1003, %1083 : vector<16x128xf32>
    %c100_214 = arith.constant 100 : index
    %1085 = memref.load %arg4[%c100_214] : memref<108xf32, #tpu.memory_space<smem>>
    %1086 = vector.broadcast %1085 : f32 to vector<16x128xf32>
    %1087 = arith.mulf %1086, %1080 : vector<16x128xf32>
    %1088 = arith.addf %1007, %1087 : vector<16x128xf32>
    %c101_215 = arith.constant 101 : index
    %1089 = memref.load %arg4[%c101_215] : memref<108xf32, #tpu.memory_space<smem>>
    %1090 = vector.broadcast %1089 : f32 to vector<16x128xf32>
    %1091 = arith.mulf %1090, %1080 : vector<16x128xf32>
    %1092 = arith.addf %1011, %1091 : vector<16x128xf32>
    %c102_216 = arith.constant 102 : index
    %1093 = memref.load %arg4[%c102_216] : memref<108xf32, #tpu.memory_space<smem>>
    %1094 = vector.broadcast %1093 : f32 to vector<16x128xf32>
    %1095 = arith.mulf %1094, %1080 : vector<16x128xf32>
    %1096 = arith.addf %1015, %1095 : vector<16x128xf32>
    %c103_217 = arith.constant 103 : index
    %1097 = memref.load %arg4[%c103_217] : memref<108xf32, #tpu.memory_space<smem>>
    %1098 = vector.broadcast %1097 : f32 to vector<16x128xf32>
    %1099 = arith.mulf %1098, %1080 : vector<16x128xf32>
    %1100 = arith.addf %1019, %1099 : vector<16x128xf32>
    %c104_218 = arith.constant 104 : index
    %1101 = memref.load %arg4[%c104_218] : memref<108xf32, #tpu.memory_space<smem>>
    %1102 = vector.broadcast %1101 : f32 to vector<16x128xf32>
    %1103 = arith.mulf %1102, %1080 : vector<16x128xf32>
    %1104 = arith.addf %1023, %1103 : vector<16x128xf32>
    %c105_219 = arith.constant 105 : index
    %1105 = memref.load %arg4[%c105_219] : memref<108xf32, #tpu.memory_space<smem>>
    %1106 = vector.broadcast %1105 : f32 to vector<16x128xf32>
    %1107 = arith.mulf %1106, %1080 : vector<16x128xf32>
    %1108 = arith.addf %1027, %1107 : vector<16x128xf32>
    %c106_220 = arith.constant 106 : index
    %1109 = memref.load %arg4[%c106_220] : memref<108xf32, #tpu.memory_space<smem>>
    %1110 = vector.broadcast %1109 : f32 to vector<16x128xf32>
    %1111 = arith.mulf %1110, %1080 : vector<16x128xf32>
    %1112 = arith.addf %1031, %1111 : vector<16x128xf32>
    %c107_221 = arith.constant 107 : index
    %1113 = memref.load %arg4[%c107_221] : memref<108xf32, #tpu.memory_space<smem>>
    %1114 = vector.broadcast %1113 : f32 to vector<16x128xf32>
    %1115 = arith.mulf %1114, %1080 : vector<16x128xf32>
    %1116 = arith.addf %1035, %1115 : vector<16x128xf32>
    %c1_i32_222 = arith.constant 1 : i32
    %1117 = tpu.dynamic_rotate %1084 by %c1_i32_222 dim 1 : vector<16x128xf32>, i32 -> vector<16x128xf32>
    %cst_223 = arith.constant 0.000000e+00 : f32
    %1118 = vector.broadcast %cst_223 : f32 to vector<1x128xf32>
    %1119 = vector.extract_strided_slice %1117 {offsets = [0, 0], sizes = [15, 128], strides = [1, 1]} : vector<16x128xf32> to vector<15x128xf32>
    %1120 = tpu.concatenate %1118, %1119 in 0 : vector<1x128xf32>, vector<15x128xf32> -> vector<16x128xf32>
    %cst_224 = arith.constant 0.000000e+00 : f32
    %1121 = vector.broadcast %cst_224 : f32 to vector<1x128xf32>
    %1122 = vector.extract_strided_slice %1088 {offsets = [0, 0], sizes = [15, 128], strides = [1, 1]} : vector<16x128xf32> to vector<15x128xf32>
    %1123 = tpu.concatenate %1121, %1122 in 0 : vector<1x128xf32>, vector<15x128xf32> -> vector<16x128xf32>
    %c127_i32_225 = arith.constant 127 : i32
    %1124 = tpu.dynamic_rotate %1092 by %c127_i32_225 dim 1 : vector<16x128xf32>, i32 -> vector<16x128xf32>
    %cst_226 = arith.constant 0.000000e+00 : f32
    %1125 = vector.broadcast %cst_226 : f32 to vector<1x128xf32>
    %1126 = vector.extract_strided_slice %1124 {offsets = [0, 0], sizes = [15, 128], strides = [1, 1]} : vector<16x128xf32> to vector<15x128xf32>
    %1127 = tpu.concatenate %1125, %1126 in 0 : vector<1x128xf32>, vector<15x128xf32> -> vector<16x128xf32>
    %c1_i32_227 = arith.constant 1 : i32
    %1128 = tpu.dynamic_rotate %1096 by %c1_i32_227 dim 1 : vector<16x128xf32>, i32 -> vector<16x128xf32>
    %c127_i32_228 = arith.constant 127 : i32
    %1129 = tpu.dynamic_rotate %1104 by %c127_i32_228 dim 1 : vector<16x128xf32>, i32 -> vector<16x128xf32>
    %c1_i32_229 = arith.constant 1 : i32
    %1130 = tpu.dynamic_rotate %1108 by %c1_i32_229 dim 1 : vector<16x128xf32>, i32 -> vector<16x128xf32>
    %1131 = vector.extract_strided_slice %1130 {offsets = [1, 0], sizes = [15, 128], strides = [1, 1]} : vector<16x128xf32> to vector<15x128xf32>
    %cst_230 = arith.constant 0.000000e+00 : f32
    %1132 = vector.broadcast %cst_230 : f32 to vector<1x128xf32>
    %1133 = tpu.concatenate %1131, %1132 in 0 : vector<15x128xf32>, vector<1x128xf32> -> vector<16x128xf32>
    %1134 = vector.extract_strided_slice %1112 {offsets = [1, 0], sizes = [15, 128], strides = [1, 1]} : vector<16x128xf32> to vector<15x128xf32>
    %cst_231 = arith.constant 0.000000e+00 : f32
    %1135 = vector.broadcast %cst_231 : f32 to vector<1x128xf32>
    %1136 = tpu.concatenate %1134, %1135 in 0 : vector<15x128xf32>, vector<1x128xf32> -> vector<16x128xf32>
    %c127_i32_232 = arith.constant 127 : i32
    %1137 = tpu.dynamic_rotate %1116 by %c127_i32_232 dim 1 : vector<16x128xf32>, i32 -> vector<16x128xf32>
    %1138 = vector.extract_strided_slice %1137 {offsets = [1, 0], sizes = [15, 128], strides = [1, 1]} : vector<16x128xf32> to vector<15x128xf32>
    %cst_233 = arith.constant 0.000000e+00 : f32
    %1139 = vector.broadcast %cst_233 : f32 to vector<1x128xf32>
    %1140 = tpu.concatenate %1138, %1139 in 0 : vector<15x128xf32>, vector<1x128xf32> -> vector<16x128xf32>
    %1141 = arith.addf %1120, %1123 : vector<16x128xf32>
    %1142 = arith.addf %1127, %1128 : vector<16x128xf32>
    %1143 = arith.addf %1100, %1129 : vector<16x128xf32>
    %1144 = arith.addf %1133, %1136 : vector<16x128xf32>
    %1145 = arith.addf %1141, %1142 : vector<16x128xf32>
    %1146 = arith.addf %1143, %1144 : vector<16x128xf32>
    %1147 = arith.addf %1145, %1146 : vector<16x128xf32>
    %1148 = arith.addf %1147, %1140 : vector<16x128xf32>
    %1149 = arith.addf %772, %1148 : vector<16x128xf32>
    %c2_234 = arith.constant 2 : index
    %1150 = memref.load %arg5[%c2_234] : memref<3xf32, #tpu.memory_space<smem>>
    %1151 = vector.broadcast %1150 : f32 to vector<16x128xf32>
    %1152 = arith.addf %1149, %1151 : vector<16x128xf32>
    %cst_235 = arith.constant 0.000000e+00 : f32
    %1153 = vector.broadcast %cst_235 : f32 to vector<16x128xf32>
    %1154 = arith.select %6, %1152, %1153 : vector<16x128xi1>, vector<16x128xf32>
    %c0_236 = arith.constant 0 : index
    %c0_237 = arith.constant 0 : index
    %c0_238 = arith.constant 0 : index
    %1155 = vector.load %arg6[%c0_236, %c0_237, %c0_238] : memref<1x16x128xf32, #tpu.memory_space<vmem>>, vector<1x16x128xf32>
    %1156 = vector.shape_cast %1155 : vector<1x16x128xf32> to vector<16x128xf32>
    %1157 = vector.shape_cast %1154 : vector<16x128xf32> to vector<1x16x128xf32>
    tpu.vector_store %arg6[%c0_236, %c0_237, %c0_238], %1157 {strides = array<i32>} : memref<1x16x128xf32, #tpu.memory_space<vmem>>, vector<1x16x128xf32>,
    return
  }
  func.func @transform_0(%arg0: i32) -> (i32, i32, i32) {
    %c0_i32 = arith.constant 0 : i32
    %c0_i32_0 = arith.constant 0 : i32
    %c0_i32_1 = arith.constant 0 : i32
    return %arg0, %c0_i32, %c0_i32_0 : i32, i32, i32
  }
  func.func @transform_1(%arg0: i32) -> i32 {
    %c0_i32 = arith.constant 0 : i32
    %c0_i32_0 = arith.constant 0 : i32
    return %c0_i32 : i32
  }
  func.func @transform_2(%arg0: i32) -> i32 {
    %c0_i32 = arith.constant 0 : i32
    %c0_i32_0 = arith.constant 0 : i32
    return %c0_i32 : i32
  }
  func.func @transform_3(%arg0: i32) -> i32 {
    %c0_i32 = arith.constant 0 : i32
    %c0_i32_0 = arith.constant 0 : i32
    return %c0_i32 : i32
  }
  func.func @transform_4(%arg0: i32) -> i32 {
    %c0_i32 = arith.constant 0 : i32
    %c0_i32_0 = arith.constant 0 : i32
    return %c0_i32 : i32
  }
  func.func @transform_5(%arg0: i32) -> (i32, i32, i32) {
    %c0_i32 = arith.constant 0 : i32
    %c0_i32_0 = arith.constant 0 : i32
    %c0_i32_1 = arith.constant 0 : i32
    return %arg0, %c0_i32, %c0_i32_0 : i32, i32, i32
  }
}

</mosaic_0001>

<llo_original>
// kernel: tpu_custom_call.1
$region0: #{tpu_custom_call.1}
  #allocation0 [shape = 'u32[]', space=smem, size = 0x4, offset = 0x4, fixed_abs, tag = 'smem constant byte address 0x4 - core index']
  #allocation1 [shape = 'u32[144,128]{1,0:T(1,128)}', space=vmem, size = 0x12000, scoped, tag = 'internal scratch']
  %s0 = inlined_call_operand.hbm [shape: f32[2,16,128], index: 0, kind: input, shape index: {}]
  %s1 = inlined_call_operand.vmem [shape: f32[108], index: 1, kind: input, shape index: {}]
  %s2 = inlined_call_operand.vmem [shape: f32[12], index: 2, kind: input, shape index: {}]
  %s3 = inlined_call_operand.vmem [shape: f32[108], index: 3, kind: input, shape index: {}]
  %s4 = inlined_call_operand.vmem [shape: f32[3], index: 4, kind: input, shape index: {}]
  %s5 = inlined_call_operand.hbm [shape: f32[2,16,128], index: 5, kind: output, shape index: {}]
  %s6 = sld [smem:[#allocation0]]
  $region73: #{tpu_custom_call.1} parent=0
    _
  %s8 = ssub.s32 1, %s6
  %s9 = scalar_select 0, %s8, %s6
  $region1: #{tpu_custom_call.1} parent=0
    #allocation2 [shape = 'u8[16384]{0}', space=vmem, size = 0x4000, scoped, tag = 'input window, operand 0']
    #allocation3 [shape = 's32[2]{0}', space=sflag, size = 0x8, scoped, tag = 'scoped memory for tpu_custom_call.1']
    #allocation4 [shape = 's32[2]{0}', space=sflag, size = 0x8, scoped, tag = 'scoped memory for tpu_custom_call.1']
    #allocation5 [shape = 's32[2]{0}', space=sflag, size = 0x8, scoped, tag = 'scoped memory for tpu_custom_call.1']
    #allocation6 [shape = 'u8[512]{0}', space=smem, size = 0x200, scoped, tag = 'input window, operand 1, single buffered']
    #allocation7 [shape = 'u8[512]{0}', space=smem, size = 0x200, scoped, tag = 'input window, operand 2, single buffered']
    #allocation8 [shape = 's32[1]{0}', space=sflag, size = 0x4, scoped, tag = 'scoped memory for tpu_custom_call.1']
    #allocation9 [shape = 'u8[512]{0}', space=smem, size = 0x200, scoped, tag = 'input window, operand 3, single buffered']
    #allocation10 [shape = 'u8[512]{0}', space=smem, size = 0x200, scoped, tag = 'input window, operand 4, single buffered']
    #allocation11 [shape = 's32[1]{0}', space=sflag, size = 0x4, scoped, tag = 'scoped memory for tpu_custom_call.1']
    #allocation12 [shape = 'u8[16384]{0}', space=vmem, size = 0x4000, scoped, tag = 'output window, operand 0']
    %10 = vsyncpa [#allocation3], 0
    %s11 = scalar_lea.sflag [#allocation3], 1
    %12 = vsyncpa %s11, 0
    %13 = vsyncpa [#allocation5], 0
    %14 = vsyncpa [#allocation8], 0
    %15 = vsyncpa [#allocation11], 0
    %16 = vsyncpa [#allocation4], 0
    %s17 = scalar_lea.sflag [#allocation4], 1
    %18 = vsyncpa %s17, 0
    loop: start=0, step=1, limit=4
    $region2: #{tpu_custom_call.1} parent=1 // loop_pre_header
      _
    $region3: #{tpu_custom_call.1} parent=1 // loop_header
      %s20 = sphi 0, %s24
      %p21 = scmp.ge.s32.totalorder %s20, 4
      %s30 = sphi 0, %s32
      %s33 = sphi 0, %s30
      %s34 = sphi 0, %s33
      %s50 = sphi 0, %s34
      %s54 = sphi 0, %s54
      %s56 = sphi 0, %s54
      %s57 = sphi 0, %s56
      %s71 = sphi 0, %s57
      %s75 = sphi 0, %s75
      %s77 = sphi 0, %s75
      %s78 = sphi 0, %s77
      %s92 = sphi 0, %s78
      %s96 = sphi 0, %s96
      %s98 = sphi 0, %s96
      %s99 = sphi 0, %s98
      %s113 = sphi 0, %s99
      %s117 = sphi 0, %s117
      %s119 = sphi 0, %s117
      %s120 = sphi 0, %s119
      %s134 = sphi 0, %s120
      %s140 = sphi 0, %s142
      %s143 = sphi 0, %s140
      %s144 = sphi 0, %s143
      %s160 = sphi 0, %s144
    $region4: #{tpu_custom_call.1} parent=1 // loop_header_branch
      %23 = sbr.rel (%p21) target = $region8
    $region5: #{tpu_custom_call.1} parent=1 // loop_body
      %s25 = ssub.s32 %s20, 1
      %s26 = ssub.s32 %s20, 2
      %s27 = sadd.s32 %s20, 1
      %s28 = ssub.s32 %s20, %s27
      %p29 = scmp.eq.s32.totalorder %s28, 0
      %s31 = sadd.s32 %s30, 1
      %s32 = scalar_select %p29, %s30, %s31
      %p35 = pneg %p29
      %p36 = scmp.eq.s32.totalorder %s20, 1
      %p37 = por %p35, %p36
      %p38 = scmp.ne.s32.totalorder %s30, %s33
      %p39 = scmp.eq.s32.totalorder %s20, 0
      %p40 = por %p38, %p39
      %p41 = scmp.ne.s32.totalorder %s30, %s33
      %p42 = scmp.eq.s32.totalorder %s25, 1
      %p43 = por %p41, %p42
      %p44 = scmp.ne.s32.totalorder %s33, %s34
      %p45 = scmp.eq.s32.totalorder %s25, 0
      %p46 = por %p44, %p45
      %p47 = scmp.ne.s32.totalorder %s33, %s34
      %p48 = scmp.eq.s32.totalorder %s26, 1
      %p49 = por %p47, %p48
      %p51 = scmp.ne.s32.totalorder %s34, %s50
      %p52 = scmp.eq.s32.totalorder %s26, 0
      %p53 = por %p51, %p52
      %s55 = sadd.s32 %s54, 1
      %p58 = scmp.eq.s32.totalorder %s20, 1
      %p59 = scmp.ne.s32.totalorder %s54, %s56
      %p60 = scmp.eq.s32.totalorder %s20, 0
      %p61 = por %p59, %p60
      %p62 = scmp.ne.s32.totalorder %s54, %s56
      %p63 = scmp.eq.s32.totalorder %s25, 1
      %p64 = por %p62, %p63
      %p65 = scmp.ne.s32.totalorder %s56, %s57
      %p66 = scmp.eq.s32.totalorder %s25, 0
      %p67 = por %p65, %p66
      %p68 = scmp.ne.s32.totalorder %s56, %s57
      %p69 = scmp.eq.s32.totalorder %s26, 1
      %p70 = por %p68, %p69
      %p72 = scmp.ne.s32.totalorder %s57, %s71
      %p73 = scmp.eq.s32.totalorder %s26, 0
      %p74 = por %p72, %p73
      %s76 = sadd.s32 %s75, 1
      %p79 = scmp.eq.s32.totalorder %s20, 1
      %p80 = scmp.ne.s32.totalorder %s75, %s77
      %p81 = scmp.eq.s32.totalorder %s20, 0
      %p82 = por %p80, %p81
      %p83 = scmp.ne.s32.totalorder %s75, %s77
      %p84 = scmp.eq.s32.totalorder %s25, 1
      %p85 = por %p83, %p84
      %p86 = scmp.ne.s32.totalorder %s77, %s78
      %p87 = scmp.eq.s32.totalorder %s25, 0
      %p88 = por %p86, %p87
      %p89 = scmp.ne.s32.totalorder %s77, %s78
      %p90 = scmp.eq.s32.totalorder %s26, 1
      %p91 = por %p89, %p90
      %p93 = scmp.ne.s32.totalorder %s78, %s92
      %p94 = scmp.eq.s32.totalorder %s26, 0
      %p95 = por %p93, %p94
      %s97 = sadd.s32 %s96, 1
      %p100 = scmp.eq.s32.totalorder %s20, 1
      %p101 = scmp.ne.s32.totalorder %s96, %s98
      %p102 = scmp.eq.s32.totalorder %s20, 0
      %p103 = por %p101, %p102
      %p104 = scmp.ne.s32.totalorder %s96, %s98
      %p105 = scmp.eq.s32.totalorder %s25, 1
      %p106 = por %p104, %p105
      %p107 = scmp.ne.s32.totalorder %s98, %s99
      %p108 = scmp.eq.s32.totalorder %s25, 0
      %p109 = por %p107, %p108
      %p110 = scmp.ne.s32.totalorder %s98, %s99
      %p111 = scmp.eq.s32.totalorder %s26, 1
      %p112 = por %p110, %p111
      %p114 = scmp.ne.s32.totalorder %s99, %s113
      %p115 = scmp.eq.s32.totalorder %s26, 0
      %p116 = por %p114, %p115
      %s118 = sadd.s32 %s117, 1
      %p121 = scmp.eq.s32.totalorder %s20, 1
      %p122 = scmp.ne.s32.totalorder %s117, %s119
      %p123 = scmp.eq.s32.totalorder %s20, 0
      %p124 = por %p122, %p123
      %p125 = scmp.ne.s32.totalorder %s117, %s119
      %p126 = scmp.eq.s32.totalorder %s25, 1
      %p127 = por %p125, %p126
      %p128 = scmp.ne.s32.totalorder %s119, %s120
      %p129 = scmp.eq.s32.totalorder %s25, 0
      %p130 = por %p128, %p129
      %p131 = scmp.ne.s32.totalorder %s119, %s120
      %p132 = scmp.eq.s32.totalorder %s26, 1
      %p133 = por %p131, %p132
      %p135 = scmp.ne.s32.totalorder %s120, %s134
      %p136 = scmp.eq.s32.totalorder %s26, 0
      %p137 = por %p135, %p136
      %s138 = ssub.s32 %s20, %s27
      %p139 = scmp.eq.s32.totalorder %s138, 0
      %s141 = sadd.s32 %s140, 1
      %s142 = scalar_select %p139, %s140, %s141
      %p145 = pneg %p139
      %p146 = scmp.eq.s32.totalorder %s20, 1
      %p147 = por %p145, %p146
      %p148 = scmp.ne.s32.totalorder %s140, %s143
      %p149 = scmp.eq.s32.totalorder %s20, 0
      %p150 = por %p148, %p149
      %p151 = scmp.ne.s32.totalorder %s140, %s143
      %p152 = scmp.eq.s32.totalorder %s25, 1
      %p153 = por %p151, %p152
      %p154 = scmp.ne.s32.totalorder %s143, %s144
      %p155 = scmp.eq.s32.totalorder %s25, 0
      %p156 = por %p154, %p155
      %p157 = scmp.ne.s32.totalorder %s143, %s144
      %p158 = scmp.eq.s32.totalorder %s26, 1
      %p159 = por %p157, %p158
      %p161 = scmp.ne.s32.totalorder %s144, %s160
      %p162 = scmp.eq.s32.totalorder %s26, 0
      %p163 = por %p161, %p162
      %p164 = scmp.le.s32.totalorder 1, %s20
      %p165 = scmp.lt.s32.totalorder %s20, 3
      %p166 = pnand %p164, %p165
      %p167 = pneg %p166
      // Predicated region
      $region9: #{tpu_custom_call.1} parent=5 // pred_check
        _
      $region10: #{tpu_custom_call.1} parent=5 // pred_check_branch
        %169 = sbr.rel (%p166) target = $region12
      $region11: #{tpu_custom_call.1} parent=5 // pred_region
        %s170 = ssub.s32 %s20, 1
        // Predicated region
        $region13: #{tpu_custom_call.1} parent=11 // pred_check
          %p171 = pneg %p67
        $region14: #{tpu_custom_call.1} parent=11 // pred_check_branch
          %173 = sbr.rel (%p171) target = $region16
        $region15: #{tpu_custom_call.1} parent=11 // pred_region
          %s175 = ssub.s32 16, 16
          %176 = vsyncadd [#allocation5], %s175
          %s178 = sshll.u32 %s1, 4
          %s179 = int_to_ptr.vmem [resolvable:$true] %s178
          %181 = dma.vmem_to_smem %s179, 16, [#allocation6], [#allocation5]
        $region16: #{tpu_custom_call.1} parent=11 // pred_fallthru
          _
        // Predicated region
        $region17: #{tpu_custom_call.1} parent=11 // pred_check
          %p182 = pneg %p88
        $region18: #{tpu_custom_call.1} parent=11 // pred_check_branch
          %184 = sbr.rel (%p182) target = $region20
        $region19: #{tpu_custom_call.1} parent=11 // pred_region
          %s186 = ssub.s32 16, 16
          %187 = vsyncadd [#allocation8], %s186
          %s189 = sshll.u32 %s2, 4
          %s190 = int_to_ptr.vmem [resolvable:$true] %s189
          %192 = dma.vmem_to_smem %s190, 16, [#allocation7], [#allocation8]
        $region20: #{tpu_custom_call.1} parent=11 // pred_fallthru
          _
        // Predicated region
        $region21: #{tpu_custom_call.1} parent=11 // pred_check
          %p193 = pneg %p109
        $region22: #{tpu_custom_call.1} parent=11 // pred_check_branch
          %195 = sbr.rel (%p193) target = $region24
        $region23: #{tpu_custom_call.1} parent=11 // pred_region
          %s197 = ssub.s32 16, 16
          %198 = vsyncadd [#allocation8], %s197
          %s200 = sshll.u32 %s3, 4
          %s201 = int_to_ptr.vmem [resolvable:$true] %s200
          %203 = dma.vmem_to_smem %s201, 16, [#allocation9], [#allocation8]
        $region24: #{tpu_custom_call.1} parent=11 // pred_fallthru
          _
        // Predicated region
        $region25: #{tpu_custom_call.1} parent=11 // pred_check
          %p204 = pneg %p130
        $region26: #{tpu_custom_call.1} parent=11 // pred_check_branch
          %206 = sbr.rel (%p204) target = $region28
        $region27: #{tpu_custom_call.1} parent=11 // pred_region
          %s208 = ssub.s32 16, 16
          %209 = vsyncadd [#allocation11], %s208
          %s211 = sshll.u32 %s4, 4
          %s212 = int_to_ptr.vmem [resolvable:$true] %s211
          %214 = dma.vmem_to_smem %s212, 16, [#allocation10], [#allocation11]
        $region28: #{tpu_custom_call.1} parent=11 // pred_fallthru
          _
      $region12: #{tpu_custom_call.1} parent=5 // pred_fallthru
        _
      %p215 = scmp.lt.s32.totalorder %s20, 2
      // Predicated region
      $region29: #{tpu_custom_call.1} parent=5 // pred_check
        %p216 = pneg %p215
      $region30: #{tpu_custom_call.1} parent=5 // pred_check_branch
        %218 = sbr.rel (%p216) target = $region32
      $region31: #{tpu_custom_call.1} parent=5 // pred_region
        // Predicated region
        $region33: #{tpu_custom_call.1} parent=31 // pred_check
          %p219 = pneg %p40
        $region34: #{tpu_custom_call.1} parent=31 // pred_check_branch
          %221 = sbr.rel (%p219) target = $region36
        $region35: #{tpu_custom_call.1} parent=31 // pred_region
          %s222 = sand.u32 %s30, 1
          %s223 = scalar_lea.sflag [#allocation3], %s222
          %s224 = sand.u32 %s30, 1
          %s225 = smul.addr %s224, 16
          %s226 = scalar_lea.vmem [#allocation2], %s225
          %s228 = ssub.s32 256, 256
          %229 = vsyncadd %s223, %s228
          %s230 = smul.addr %s20, 2
          %s231 = smul.addr %s230, 128
          %s232 = scalar_lea.hbm %s0, %s231
          %s233 = sshll.u32 %s226, 4
          %s234 = int_to_ptr.vmem [resolvable:$true] %s233
          %239 = dma.hbm_to_vmem [thread:$0]  %s232, 256, %s234, %s223, 128, 128, 8
        $region36: #{tpu_custom_call.1} parent=31 // pred_fallthru
          _
      $region32: #{tpu_custom_call.1} parent=5 // pred_fallthru
        _
      %p240 = scmp.le.s32.totalorder 1, %s20
      %p241 = scmp.lt.s32.totalorder %s20, 3
      %p242 = pnand %p240, %p241
      %p243 = pneg %p242
      // Predicated region
      $region37: #{tpu_custom_call.1} parent=5 // pred_check
        _
      $region38: #{tpu_custom_call.1} parent=5 // pred_check_branch
        %245 = sbr.rel (%p242) target = $region40
      $region39: #{tpu_custom_call.1} parent=5 // pred_region
        %s246 = ssub.s32 %s20, 1
        %s247 = sand.u32 %s33, 1
        %s248 = scalar_lea.sflag [#allocation3], %s247
        %s249 = sand.u32 %s33, 1
        %s250 = smul.addr %s249, 16
        %s251 = scalar_lea.vmem [#allocation2], %s250
        // Predicated region
        $region41: #{tpu_custom_call.1} parent=39 // pred_check
          %p252 = pneg %p46
        $region42: #{tpu_custom_call.1} parent=39 // pred_check_branch
          %254 = sbr.rel (%p252) target = $region44
        $region43: #{tpu_custom_call.1} parent=39 // pred_region
          %255 = dma.done %s248, 256
        $region44: #{tpu_custom_call.1} parent=39 // pred_fallthru
          _
        // Predicated region
        $region45: #{tpu_custom_call.1} parent=39 // pred_check
          %p256 = pneg %p67
        $region46: #{tpu_custom_call.1} parent=39 // pred_check_branch
          %258 = sbr.rel (%p256) target = $region48
        $region47: #{tpu_custom_call.1} parent=39 // pred_region
          %259 = dma.done [#allocation5], 16
        $region48: #{tpu_custom_call.1} parent=39 // pred_fallthru
          _
        // Predicated region
        $region49: #{tpu_custom_call.1} parent=39 // pred_check
          %p260 = pneg %p88
        $region50: #{tpu_custom_call.1} parent=39 // pred_check_branch
          %262 = sbr.rel (%p260) target = $region52
        $region51: #{tpu_custom_call.1} parent=39 // pred_region
          %263 = dma.done [#allocation8], 16
        $region52: #{tpu_custom_call.1} parent=39 // pred_fallthru
          _
        // Predicated region
        $region53: #{tpu_custom_call.1} parent=39 // pred_check
          %p264 = pneg %p109
        $region54: #{tpu_custom_call.1} parent=39 // pred_check_branch
          %266 = sbr.rel (%p264) target = $region56
        $region55: #{tpu_custom_call.1} parent=39 // pred_region
          %267 = dma.done [#allocation8], 16
        $region56: #{tpu_custom_call.1} parent=39 // pred_fallthru
          _
        // Predicated region
        $region57: #{tpu_custom_call.1} parent=39 // pred_check
          %p268 = pneg %p130
        $region58: #{tpu_custom_call.1} parent=39 // pred_check_branch
          %270 = sbr.rel (%p268) target = $region60
        $region59: #{tpu_custom_call.1} parent=39 // pred_region
          %271 = dma.done [#allocation11], 16
        $region60: #{tpu_custom_call.1} parent=39 // pred_fallthru
          _
        %272 = sfence
        %s273 = sand.u32 %s33, 1
        %s274 = scalar_lea.sflag [#allocation3], %s273
        %s275 = sand.u32 %s33, 1
        %s276 = smul.addr %s275, 16
        %s277 = scalar_lea.vmem [#allocation2], %s276
        %p278 = pneg %p46
        %p279 = pneg %p43
        %p280 = pneg %p67
        %p281 = pneg %p64
        %p282 = pneg %p88
        %p283 = pneg %p85
        %p284 = pneg %p109
        %p285 = pneg %p106
        %p286 = pneg %p130
        %p287 = pneg %p127
        %p288 = pneg %p156
        %p289 = pneg %p153
        %s290 = sand.u32 %s143, 1
        %s291 = scalar_lea.sflag [#allocation4], %s290
        %s292 = sand.u32 %s143, 1
        %s293 = smul.addr %s292, 16
        %s294 = scalar_lea.vmem [#allocation12], %s293
        %v295 = vlaneseq
        %v296 = vshrl.u32 %v295, 7
        %v297 = vadd.s32 %v296, 8
        %v298 = vlaneseq
        %v299 = vand.u32 %v298, 127
        %vm300 = vcmp.lt.s32.totalorder %v296, 12
        %vm301 = vcmp.lt.s32.totalorder %v297, 12
        %vm302 = vcmp.lt.s32.totalorder %v299, 120
        %vm303 = vmand %vm300, %vm302
        %vm304 = vmand %vm301, %vm302
        %v305 = vld [vmem:[%s251] sm:$0xff]
        %v306 = vld [vmem:[%s251 + $0x8] sm:$0xff]
        %vm307 = vcmp.gt.f32.partialorder %v305, 0.0
        %vm308 = vcmp.gt.f32.partialorder %v306, 0.0
        %v309 = vmul.f32 %v305, 0.01
        %v310 = vmul.f32 %v306, 0.01
        %v311 = vsel %vm307, %v305, %v309
        %v312 = vsel %vm308, %v306, %v310
        %313 = vrot.lane.b32.xlu0 %v311, 1
        %v314 = vpop.permute.xlu0 %313
        %315 = vrot.lane.b32.xlu0 %v312, 1
        %v316 = vpop.permute.xlu0 %315
        %vm319 = vcmask 1040384
        %v320 = vrot.slane %v314, 7
        %v321 = vrot.slane %v316, 7
        %v322 = vsel %vm319, %v320, %v321
        %v325 = vsel %vm319, 0.0, %v320
        %v328 = vrot.slane %v311, 7
        %v329 = vrot.slane %v312, 7
        %v330 = vsel %vm319, %v328, %v329
        %v333 = vsel %vm319, 0.0, %v328
        %334 = vrot.lane.b32.xlu0 %v311, 127
        %v335 = vpop.permute.xlu0 %334
        %336 = vrot.lane.b32.xlu0 %v312, 127
        %v337 = vpop.permute.xlu0 %336
        %v340 = vrot.slane %v335, 7
        %v341 = vrot.slane %v337, 7
        %v342 = vsel %vm319, %v340, %v341
        %v345 = vsel %vm319, 0.0, %v340
        %vm346 = vcmask 1046528
        %v347 = vrot.slane %v314, 1
        %v348 = vrot.slane %v316, 1
        %v349 = vsel %vm346, %v347, %v348
        %v352 = vsel %vm346, %v348, 0.0
        %v353 = vrot.slane %v311, 1
        %v354 = vrot.slane %v312, 1
        %v355 = vsel %vm346, %v353, %v354
        %v358 = vsel %vm346, %v354, 0.0
        %v359 = vrot.slane %v335, 1
        %v360 = vrot.slane %v337, 1
        %v361 = vsel %vm346, %v359, %v360
        %v364 = vsel %vm346, %v360, 0.0
        %s365 = sld [smem:[#allocation6]]
        %v366 = vstv %s365
        %v367 = vmul.f32 %v366, %v325
        %v368 = vmul.f32 %v366, %v322
        %s369 = sld [smem:[#allocation6 + $0x1]]
        %v370 = vstv %s369
        %v371 = vmul.f32 %v370, %v333
        %v372 = vmul.f32 %v370, %v330
        %s373 = sld [smem:[#allocation6 + $0x2]]
        %v374 = vstv %s373
        %v375 = vmul.f32 %v374, %v345
        %v376 = vmul.f32 %v374, %v342
        %s377 = sld [smem:[#allocation6 + $0x3]]
        %v378 = vstv %s377
        %v379 = vmul.f32 %v378, %v314
        %v380 = vmul.f32 %v378, %v316
        %s381 = sld [smem:[#allocation6 + $0x4]]
        %v382 = vstv %s381
        %v383 = vmul.f32 %v382, %v311
        %v384 = vmul.f32 %v382, %v312
        %s385 = sld [smem:[#allocation6 + $0x5]]
        %v386 = vstv %s385
        %v387 = vmul.f32 %v386, %v335
        %v388 = vmul.f32 %v386, %v337
        %s389 = sld [smem:[#allocation6 + $0x6]]
        %v390 = vstv %s389
        %v391 = vmul.f32 %v390, %v349
        %v392 = vmul.f32 %v390, %v352
        %s393 = sld [smem:[#allocation6 + $0x7]]
        %v394 = vstv %s393
        %v395 = vmul.f32 %v394, %v355
        %v396 = vmul.f32 %v394, %v358
        %s397 = sld [smem:[#allocation6 + $0x8]]
        %v398 = vstv %s397
        %v399 = vmul.f32 %v398, %v361
        %v400 = vmul.f32 %v398, %v364
        %v401 = vadd.f32 %v367, %v371
        %v402 = vadd.f32 %v368, %v372
        %v403 = vadd.f32 %v375, %v379
        %v404 = vadd.f32 %v376, %v380
        %v405 = vadd.f32 %v383, %v387
        %v406 = vadd.f32 %v384, %v388
        %v407 = vadd.f32 %v391, %v395
        %v408 = vadd.f32 %v392, %v396
        %v409 = vadd.f32 %v401, %v403
        %v410 = vadd.f32 %v402, %v404
        %v411 = vadd.f32 %v405, %v407
        %v412 = vadd.f32 %v406, %v408
        %v413 = vadd.f32 %v409, %v411
        %v414 = vadd.f32 %v410, %v412
        %v415 = vadd.f32 %v413, %v399
        %v416 = vadd.f32 %v414, %v400
        %s417 = sld [smem:[#allocation7]]
        %v418 = vstv %s417
        %v419 = vadd.f32 %v415, %v418
        %v420 = vadd.f32 %v416, %v418
        %vm421 = vcmp.gt.f32.partialorder %v419, 0.0
        %vm422 = vcmp.gt.f32.partialorder %v420, 0.0
        %v423 = vmul.f32 %v419, 0.01
        %v424 = vmul.f32 %v420, 0.01
        %v425 = vsel %vm421, %v419, %v423
        %v426 = vsel %vm422, %v420, %v424
        %v427 = vsel %vm303, %v425, 0.0
        %v428 = vsel %vm304, %v426, 0.0
        %s429 = sld [smem:[#allocation9]]
        %v430 = vstv %s429
        %v431 = vmul.f32 %v430, %v427
        %v432 = vmul.f32 %v430, %v428
        %s433 = sld [smem:[#allocation9 + $0x1]]
        %v434 = vstv %s433
        %v435 = vmul.f32 %v434, %v427
        %v436 = vmul.f32 %v434, %v428
        %s437 = sld [smem:[#allocation9 + $0x2]]
        %v438 = vstv %s437
        %v439 = vmul.f32 %v438, %v427
        %v440 = vmul.f32 %v438, %v428
        %s441 = sld [smem:[#allocation9 + $0x3]]
        %v442 = vstv %s441
        %v443 = vmul.f32 %v442, %v427
        %v444 = vmul.f32 %v442, %v428
        %s445 = sld [smem:[#allocation9 + $0x4]]
        %v446 = vstv %s445
        %v447 = vmul.f32 %v446, %v427
        %v448 = vmul.f32 %v446, %v428
        %s449 = sld [smem:[#allocation9 + $0x5]]
        %v450 = vstv %s449
        %v451 = vmul.f32 %v450, %v427
        %v452 = vmul.f32 %v450, %v428
        %s453 = sld [smem:[#allocation9 + $0x6]]
        %v454 = vstv %s453
        %v455 = vmul.f32 %v454, %v427
        %v456 = vmul.f32 %v454, %v428
        %s457 = sld [smem:[#allocation9 + $0x7]]
        %v458 = vstv %s457
        %v459 = vmul.f32 %v458, %v427
        %v460 = vmul.f32 %v458, %v428
        %s461 = sld [smem:[#allocation9 + $0x8]]
        %v462 = vstv %s461
        %v463 = vmul.f32 %v462, %v427
        %v464 = vmul.f32 %v462, %v428
        %s465 = sld [smem:[#allocation6 + $0x9]]
        %v466 = vstv %s465
        %v467 = vmul.f32 %v466, %v325
        %v468 = vmul.f32 %v466, %v322
        %s469 = sld [smem:[#allocation6 + $0xa]]
        %v470 = vstv %s469
        %v471 = vmul.f32 %v470, %v333
        %v472 = vmul.f32 %v470, %v330
        %s473 = sld [smem:[#allocation6 + $0xb]]
        %v474 = vstv %s473
        %v475 = vmul.f32 %v474, %v345
        %v476 = vmul.f32 %v474, %v342
        %s477 = sld [smem:[#allocation6 + $0xc]]
        %v478 = vstv %s477
        %v479 = vmul.f32 %v478, %v314
        %v480 = vmul.f32 %v478, %v316
        %s481 = sld [smem:[#allocation6 + $0xd]]
        %v482 = vstv %s481
        %v483 = vmul.f32 %v482, %v311
        %v484 = vmul.f32 %v482, %v312
        %s485 = sld [smem:[#allocation6 + $0xe]]
        %v486 = vstv %s485
        %v487 = vmul.f32 %v486, %v335
        %v488 = vmul.f32 %v486, %v337
        %s489 = sld [smem:[#allocation6 + $0xf]]
        %v490 = vstv %s489
        %v491 = vmul.f32 %v490, %v349
        %v492 = vmul.f32 %v490, %v352
        %s493 = sld [smem:[#allocation6 + $0x10]]
        %v494 = vstv %s493
        %v495 = vmul.f32 %v494, %v355
        %v496 = vmul.f32 %v494, %v358
        %s497 = sld [smem:[#allocation6 + $0x11]]
        %v498 = vstv %s497
        %v499 = vmul.f32 %v498, %v361
        %v500 = vmul.f32 %v498, %v364
        %v501 = vadd.f32 %v467, %v471
        %v502 = vadd.f32 %v468, %v472
        %v503 = vadd.f32 %v475, %v479
        %v504 = vadd.f32 %v476, %v480
        %v505 = vadd.f32 %v483, %v487
        %v506 = vadd.f32 %v484, %v488
        %v507 = vadd.f32 %v491, %v495
        %v508 = vadd.f32 %v492, %v496
        %v509 = vadd.f32 %v501, %v503
        %v510 = vadd.f32 %v502, %v504
        %v511 = vadd.f32 %v505, %v507
        %v512 = vadd.f32 %v506, %v508
        %v513 = vadd.f32 %v509, %v511
        %v514 = vadd.f32 %v510, %v512
        %v515 = vadd.f32 %v513, %v499
        %v516 = vadd.f32 %v514, %v500
        %s517 = sld [smem:[#allocation7 + $0x1]]
        %v518 = vstv %s517
        %v519 = vadd.f32 %v515, %v518
        %v520 = vadd.f32 %v516, %v518
        %vm521 = vcmp.gt.f32.partialorder %v519, 0.0
        %vm522 = vcmp.gt.f32.partialorder %v520, 0.0
        %v523 = vmul.f32 %v519, 0.01
        %v524 = vmul.f32 %v520, 0.01
        %v525 = vsel %vm521, %v519, %v523
        %v526 = vsel %vm522, %v520, %v524
        %v527 = vsel %vm303, %v525, 0.0
        %v528 = vsel %vm304, %v526, 0.0
        %s529 = sld [smem:[#allocation9 + $0x9]]
        %v530 = vstv %s529
        %v531 = vmul.f32 %v530, %v527
        %v532 = vmul.f32 %v530, %v528
        %v533 = vadd.f32 %v431, %v531
        %v534 = vadd.f32 %v432, %v532
        %s535 = sld [smem:[#allocation9 + $0xa]]
        %v536 = vstv %s535
        %v537 = vmul.f32 %v536, %v527
        %v538 = vmul.f32 %v536, %v528
        %v539 = vadd.f32 %v435, %v537
        %v540 = vadd.f32 %v436, %v538
        %s541 = sld [smem:[#allocation9 + $0xb]]
        %v542 = vstv %s541
        %v543 = vmul.f32 %v542, %v527
        %v544 = vmul.f32 %v542, %v528
        %v545 = vadd.f32 %v439, %v543
        %v546 = vadd.f32 %v440, %v544
        %s547 = sld [smem:[#allocation9 + $0xc]]
        %v548 = vstv %s547
        %v549 = vmul.f32 %v548, %v527
        %v550 = vmul.f32 %v548, %v528
        %v551 = vadd.f32 %v443, %v549
        %v552 = vadd.f32 %v444, %v550
        %s553 = sld [smem:[#allocation9 + $0xd]]
        %v554 = vstv %s553
        %v555 = vmul.f32 %v554, %v527
        %v556 = vmul.f32 %v554, %v528
        %v557 = vadd.f32 %v447, %v555
        %v558 = vadd.f32 %v448, %v556
        %s559 = sld [smem:[#allocation9 + $0xe]]
        %v560 = vstv %s559
        %v561 = vmul.f32 %v560, %v527
        %v562 = vmul.f32 %v560, %v528
        %v563 = vadd.f32 %v451, %v561
        %v564 = vadd.f32 %v452, %v562
        %s565 = sld [smem:[#allocation9 + $0xf]]
        %v566 = vstv %s565
        %v567 = vmul.f32 %v566, %v527
        %v568 = vmul.f32 %v566, %v528
        %v569 = vadd.f32 %v455, %v567
        %v570 = vadd.f32 %v456, %v568
        %s571 = sld [smem:[#allocation9 + $0x10]]
        %v572 = vstv %s571
        %v573 = vmul.f32 %v572, %v527
        %v574 = vmul.f32 %v572, %v528
        %v575 = vadd.f32 %v459, %v573
        %v576 = vadd.f32 %v460, %v574
        %s577 = sld [smem:[#allocation9 + $0x11]]
        %v578 = vstv %s577
        %v579 = vmul.f32 %v578, %v527
        %v580 = vmul.f32 %v578, %v528
        %v581 = vadd.f32 %v463, %v579
        %v582 = vadd.f32 %v464, %v580
        %s583 = sld [smem:[#allocation6 + $0x12]]
        %v584 = vstv %s583
        %v585 = vmul.f32 %v584, %v325
        %v586 = vmul.f32 %v584, %v322
        %s587 = sld [smem:[#allocation6 + $0x13]]
        %v588 = vstv %s587
        %v589 = vmul.f32 %v588, %v333
        %v590 = vmul.f32 %v588, %v330
        %s591 = sld [smem:[#allocation6 + $0x14]]
        %v592 = vstv %s591
        %v593 = vmul.f32 %v592, %v345
        %v594 = vmul.f32 %v592, %v342
        %s595 = sld [smem:[#allocation6 + $0x15]]
        %v596 = vstv %s595
        %v597 = vmul.f32 %v596, %v314
        %v598 = vmul.f32 %v596, %v316
        %s599 = sld [smem:[#allocation6 + $0x16]]
        %v600 = vstv %s599
        %v601 = vmul.f32 %v600, %v311
        %v602 = vmul.f32 %v600, %v312
        %s603 = sld [smem:[#allocation6 + $0x17]]
        %v604 = vstv %s603
        %v605 = vmul.f32 %v604, %v335
        %v606 = vmul.f32 %v604, %v337
        %s607 = sld [smem:[#allocation6 + $0x18]]
        %v608 = vstv %s607
        %v609 = vmul.f32 %v608, %v349
        %v610 = vmul.f32 %v608, %v352
        %s611 = sld [smem:[#allocation6 + $0x19]]
        %v612 = vstv %s611
        %v613 = vmul.f32 %v612, %v355
        %v614 = vmul.f32 %v612, %v358
        %s615 = sld [smem:[#allocation6 + $0x1a]]
        %v616 = vstv %s615
        %v617 = vmul.f32 %v616, %v361
        %v618 = vmul.f32 %v616, %v364
        %v619 = vadd.f32 %v585, %v589
        %v620 = vadd.f32 %v586, %v590
        %v621 = vadd.f32 %v593, %v597
        %v622 = vadd.f32 %v594, %v598
        %v623 = vadd.f32 %v601, %v605
        %v624 = vadd.f32 %v602, %v606
        %v625 = vadd.f32 %v609, %v613
        %v626 = vadd.f32 %v610, %v614
        %v627 = vadd.f32 %v619, %v621
        %v628 = vadd.f32 %v620, %v622
        %v629 = vadd.f32 %v623, %v625
        %v630 = vadd.f32 %v624, %v626
        %v631 = vadd.f32 %v627, %v629
        %v632 = vadd.f32 %v628, %v630
        %v633 = vadd.f32 %v631, %v617
        %v634 = vadd.f32 %v632, %v618
        %s635 = sld [smem:[#allocation7 + $0x2]]
        %v636 = vstv %s635
        %v637 = vadd.f32 %v633, %v636
        %v638 = vadd.f32 %v634, %v636
        %vm639 = vcmp.gt.f32.partialorder %v637, 0.0
        %vm640 = vcmp.gt.f32.partialorder %v638, 0.0
        %v641 = vmul.f32 %v637, 0.01
        %v642 = vmul.f32 %v638, 0.01
        %v643 = vsel %vm639, %v637, %v641
        %v644 = vsel %vm640, %v638, %v642
        %v645 = vsel %vm303, %v643, 0.0
        %v646 = vsel %vm304, %v644, 0.0
        %s647 = sld [smem:[#allocation9 + $0x12]]
        %v648 = vstv %s647
        %v649 = vmul.f32 %v648, %v645
        %v650 = vmul.f32 %v648, %v646
        %v651 = vadd.f32 %v533, %v649
        %v652 = vadd.f32 %v534, %v650
        %s653 = sld [smem:[#allocation9 + $0x13]]
        %v654 = vstv %s653
        %v655 = vmul.f32 %v654, %v645
        %v656 = vmul.f32 %v654, %v646
        %v657 = vadd.f32 %v539, %v655
        %v658 = vadd.f32 %v540, %v656
        %s659 = sld [smem:[#allocation9 + $0x14]]
        %v660 = vstv %s659
        %v661 = vmul.f32 %v660, %v645
        %v662 = vmul.f32 %v660, %v646
        %v663 = vadd.f32 %v545, %v661
        %v664 = vadd.f32 %v546, %v662
        %s665 = sld [smem:[#allocation9 + $0x15]]
        %v666 = vstv %s665
        %v667 = vmul.f32 %v666, %v645
        %v668 = vmul.f32 %v666, %v646
        %v669 = vadd.f32 %v551, %v667
        %v670 = vadd.f32 %v552, %v668
        %s671 = sld [smem:[#allocation9 + $0x16]]
        %v672 = vstv %s671
        %v673 = vmul.f32 %v672, %v645
        %v674 = vmul.f32 %v672, %v646
        %v675 = vadd.f32 %v557, %v673
        %v676 = vadd.f32 %v558, %v674
        %s677 = sld [smem:[#allocation9 + $0x17]]
        %v678 = vstv %s677
        %v679 = vmul.f32 %v678, %v645
        %v680 = vmul.f32 %v678, %v646
        %v681 = vadd.f32 %v563, %v679
        %v682 = vadd.f32 %v564, %v680
        %s683 = sld [smem:[#allocation9 + $0x18]]
        %v684 = vstv %s683
        %v685 = vmul.f32 %v684, %v645
        %v686 = vmul.f32 %v684, %v646
        %v687 = vadd.f32 %v569, %v685
        %v688 = vadd.f32 %v570, %v686
        %s689 = sld [smem:[#allocation9 + $0x19]]
        %v690 = vstv %s689
        %v691 = vmul.f32 %v690, %v645
        %v692 = vmul.f32 %v690, %v646
        %v693 = vadd.f32 %v575, %v691
        %v694 = vadd.f32 %v576, %v692
        %s695 = sld [smem:[#allocation9 + $0x1a]]
        %v696 = vstv %s695
        %v697 = vmul.f32 %v696, %v645
        %v698 = vmul.f32 %v696, %v646
        %v699 = vadd.f32 %v581, %v697
        %v700 = vadd.f32 %v582, %v698
        %s701 = sld [smem:[#allocation6 + $0x1b]]
        %v702 = vstv %s701
        %v703 = vmul.f32 %v702, %v325
        %v704 = vmul.f32 %v702, %v322
        %s705 = sld [smem:[#allocation6 + $0x1c]]
        %v706 = vstv %s705
        %v707 = vmul.f32 %v706, %v333
        %v708 = vmul.f32 %v706, %v330
        %s709 = sld [smem:[#allocation6 + $0x1d]]
        %v710 = vstv %s709
        %v711 = vmul.f32 %v710, %v345
        %v712 = vmul.f32 %v710, %v342
        %s713 = sld [smem:[#allocation6 + $0x1e]]
        %v714 = vstv %s713
        %v715 = vmul.f32 %v714, %v314
        %v716 = vmul.f32 %v714, %v316
        %s717 = sld [smem:[#allocation6 + $0x1f]]
        %v718 = vstv %s717
        %v719 = vmul.f32 %v718, %v311
        %v720 = vmul.f32 %v718, %v312
        %s721 = sld [smem:[#allocation6 + $0x20]]
        %v722 = vstv %s721
        %v723 = vmul.f32 %v722, %v335
        %v724 = vmul.f32 %v722, %v337
        %s725 = sld [smem:[#allocation6 + $0x21]]
        %v726 = vstv %s725
        %v727 = vmul.f32 %v726, %v349
        %v728 = vmul.f32 %v726, %v352
        %s729 = sld [smem:[#allocation6 + $0x22]]
        %v730 = vstv %s729
        %v731 = vmul.f32 %v730, %v355
        %v732 = vmul.f32 %v730, %v358
        %s733 = sld [smem:[#allocation6 + $0x23]]
        %v734 = vstv %s733
        %v735 = vmul.f32 %v734, %v361
        %v736 = vmul.f32 %v734, %v364
        %v737 = vadd.f32 %v703, %v707
        %v738 = vadd.f32 %v704, %v708
        %v739 = vadd.f32 %v711, %v715
        %v740 = vadd.f32 %v712, %v716
        %v741 = vadd.f32 %v719, %v723
        %v742 = vadd.f32 %v720, %v724
        %v743 = vadd.f32 %v727, %v731
        %v744 = vadd.f32 %v728, %v732
        %v745 = vadd.f32 %v737, %v739
        %v746 = vadd.f32 %v738, %v740
        %v747 = vadd.f32 %v741, %v743
        %v748 = vadd.f32 %v742, %v744
        %v749 = vadd.f32 %v745, %v747
        %v750 = vadd.f32 %v746, %v748
        %v751 = vadd.f32 %v749, %v735
        %v752 = vadd.f32 %v750, %v736
        %s753 = sld [smem:[#allocation7 + $0x3]]
        %v754 = vstv %s753
        %v755 = vadd.f32 %v751, %v754
        %v756 = vadd.f32 %v752, %v754
        %vm757 = vcmp.gt.f32.partialorder %v755, 0.0
        %vm758 = vcmp.gt.f32.partialorder %v756, 0.0
        %v759 = vmul.f32 %v755, 0.01
        %v760 = vmul.f32 %v756, 0.01
        %v761 = vsel %vm757, %v755, %v759
        %v762 = vsel %vm758, %v756, %v760
        %v763 = vsel %vm303, %v761, 0.0
        %v764 = vsel %vm304, %v762, 0.0
        %s765 = sld [smem:[#allocation9 + $0x1b]]
        %v766 = vstv %s765
        %v767 = vmul.f32 %v766, %v763
        %v768 = vmul.f32 %v766, %v764
        %v769 = vadd.f32 %v651, %v767
        %v770 = vadd.f32 %v652, %v768
        %s771 = sld [smem:[#allocation9 + $0x1c]]
        %v772 = vstv %s771
        %v773 = vmul.f32 %v772, %v763
        %v774 = vmul.f32 %v772, %v764
        %v775 = vadd.f32 %v657, %v773
        %v776 = vadd.f32 %v658, %v774
        %s777 = sld [smem:[#allocation9 + $0x1d]]
        %v778 = vstv %s777
        %v779 = vmul.f32 %v778, %v763
        %v780 = vmul.f32 %v778, %v764
        %v781 = vadd.f32 %v663, %v779
        %v782 = vadd.f32 %v664, %v780
        %s783 = sld [smem:[#allocation9 + $0x1e]]
        %v784 = vstv %s783
        %v785 = vmul.f32 %v784, %v763
        %v786 = vmul.f32 %v784, %v764
        %v787 = vadd.f32 %v669, %v785
        %v788 = vadd.f32 %v670, %v786
        %s789 = sld [smem:[#allocation9 + $0x1f]]
        %v790 = vstv %s789
        %v791 = vmul.f32 %v790, %v763
        %v792 = vmul.f32 %v790, %v764
        %v793 = vadd.f32 %v675, %v791
        %v794 = vadd.f32 %v676, %v792
        %s795 = sld [smem:[#allocation9 + $0x20]]
        %v796 = vstv %s795
        %v797 = vmul.f32 %v796, %v763
        %v798 = vmul.f32 %v796, %v764
        %v799 = vadd.f32 %v681, %v797
        %v800 = vadd.f32 %v682, %v798
        %s801 = sld [smem:[#allocation9 + $0x21]]
        %v802 = vstv %s801
        %v803 = vmul.f32 %v802, %v763
        %v804 = vmul.f32 %v802, %v764
        %v805 = vadd.f32 %v687, %v803
        %v806 = vadd.f32 %v688, %v804
        %s807 = sld [smem:[#allocation9 + $0x22]]
        %v808 = vstv %s807
        %v809 = vmul.f32 %v808, %v763
        %v810 = vmul.f32 %v808, %v764
        %v811 = vadd.f32 %v693, %v809
        %v812 = vadd.f32 %v694, %v810
        %s813 = sld [smem:[#allocation9 + $0x23]]
        %v814 = vstv %s813
        %v815 = vmul.f32 %v814, %v763
        %v816 = vmul.f32 %v814, %v764
        %v817 = vadd.f32 %v699, %v815
        %v818 = vadd.f32 %v700, %v816
        %819 = vrot.lane.b32.xlu0 %v769, 1
        %v820 = vpop.permute.xlu0 %819
        %821 = vrot.lane.b32.xlu0 %v770, 1
        %v822 = vpop.permute.xlu0 %821
        %v825 = vrot.slane %v820, 7
        %v826 = vrot.slane %v822, 7
        %v827 = vsel %vm319, %v825, %v826
        %v830 = vsel %vm319, 0.0, %v825
        %v833 = vrot.slane %v775, 7
        %v834 = vrot.slane %v776, 7
        %v835 = vsel %vm319, %v833, %v834
        %v838 = vsel %vm319, 0.0, %v833
        %839 = vrot.lane.b32.xlu0 %v781, 127
        %v840 = vpop.permute.xlu0 %839
        %841 = vrot.lane.b32.xlu0 %v782, 127
        %v842 = vpop.permute.xlu0 %841
        %v845 = vrot.slane %v840, 7
        %v846 = vrot.slane %v842, 7
        %v847 = vsel %vm319, %v845, %v846
        %v850 = vsel %vm319, 0.0, %v845
        %851 = vrot.lane.b32.xlu0 %v787, 1
        %v852 = vpop.permute.xlu0 %851
        %853 = vrot.lane.b32.xlu0 %v788, 1
        %v854 = vpop.permute.xlu0 %853
        %855 = vrot.lane.b32.xlu0 %v799, 127
        %v856 = vpop.permute.xlu0 %855
        %857 = vrot.lane.b32.xlu0 %v800, 127
        %v858 = vpop.permute.xlu0 %857
        %859 = vrot.lane.b32.xlu0 %v805, 1
        %v860 = vpop.permute.xlu0 %859
        %861 = vrot.lane.b32.xlu0 %v806, 1
        %v862 = vpop.permute.xlu0 %861
        %v865 = vrot.slane %v860, 1
        %v866 = vrot.slane %v862, 1
        %v867 = vsel %vm346, %v865, %v866
        %v870 = vsel %vm346, %v866, 0.0
        %v873 = vrot.slane %v811, 1
        %v874 = vrot.slane %v812, 1
        %v875 = vsel %vm346, %v873, %v874
        %v878 = vsel %vm346, %v874, 0.0
        %879 = vrot.lane.b32.xlu0 %v817, 127
        %v880 = vpop.permute.xlu0 %879
        %881 = vrot.lane.b32.xlu0 %v818, 127
        %v882 = vpop.permute.xlu0 %881
        %v885 = vrot.slane %v880, 1
        %v886 = vrot.slane %v882, 1
        %v887 = vsel %vm346, %v885, %v886
        %v890 = vsel %vm346, %v886, 0.0
        %v891 = vadd.f32 %v830, %v838
        %v892 = vadd.f32 %v827, %v835
        %v893 = vadd.f32 %v850, %v852
        %v894 = vadd.f32 %v847, %v854
        %v895 = vadd.f32 %v793, %v856
        %v896 = vadd.f32 %v794, %v858
        %v897 = vadd.f32 %v867, %v875
        %v898 = vadd.f32 %v870, %v878
        %v899 = vadd.f32 %v891, %v893
        %v900 = vadd.f32 %v892, %v894
        %v901 = vadd.f32 %v895, %v897
        %v902 = vadd.f32 %v896, %v898
        %v903 = vadd.f32 %v899, %v901
        %v904 = vadd.f32 %v900, %v902
        %v905 = vadd.f32 %v903, %v887
        %v906 = vadd.f32 %v904, %v890
        %v907 = vadd.f32 %v305, %v905
        %v908 = vadd.f32 %v306, %v906
        %s909 = sld [smem:[#allocation10]]
        %v910 = vstv %s909
        %v911 = vadd.f32 %v907, %v910
        %v912 = vadd.f32 %v908, %v910
        %v913 = vsel %vm303, %v911, 0.0
        %v914 = vsel %vm304, %v912, 0.0
        %vm915 = vcmp.gt.f32.partialorder %v913, 0.0
        %vm916 = vcmp.gt.f32.partialorder %v914, 0.0
        %v917 = vmul.f32 %v913, 0.01
        %v918 = vmul.f32 %v914, 0.01
        %v919 = vsel %vm915, %v913, %v917
        %v920 = vsel %vm916, %v914, %v918
        %921 = vrot.lane.b32.xlu0 %v919, 3
        %v922 = vpop.permute.xlu0 %921
        %923 = vrot.lane.b32.xlu0 %v920, 3
        %v924 = vpop.permute.xlu0 %923
        %vm927 = vcmask 1042432
        %v928 = vrot.slane %v922, 5
        %v929 = vrot.slane %v924, 5
        %v930 = vsel %vm927, %v928, %v929
        %v933 = vsel %vm927, 0.0, %v928
        %v936 = vrot.slane %v919, 5
        %v937 = vrot.slane %v920, 5
        %v938 = vsel %vm927, %v936, %v937
        %v941 = vsel %vm927, 0.0, %v936
        %942 = vrot.lane.b32.xlu0 %v919, 125
        %v943 = vpop.permute.xlu0 %942
        %944 = vrot.lane.b32.xlu0 %v920, 125
        %v945 = vpop.permute.xlu0 %944
        %v948 = vrot.slane %v943, 5
        %v949 = vrot.slane %v945, 5
        %v950 = vsel %vm927, %v948, %v949
        %v953 = vsel %vm927, 0.0, %v948
        %vm954 = vcmask 1044480
        %v955 = vrot.slane %v922, 3
        %v956 = vrot.slane %v924, 3
        %v957 = vsel %vm954, %v955, %v956
        %v960 = vsel %vm954, %v956, 0.0
        %v961 = vrot.slane %v919, 3
        %v962 = vrot.slane %v920, 3
        %v963 = vsel %vm954, %v961, %v962
        %v966 = vsel %vm954, %v962, 0.0
        %v967 = vrot.slane %v943, 3
        %v968 = vrot.slane %v945, 3
        %v969 = vsel %vm954, %v967, %v968
        %v972 = vsel %vm954, %v968, 0.0
        %s973 = sld [smem:[#allocation6 + $0x24]]
        %v974 = vstv %s973
        %v975 = vmul.f32 %v974, %v933
        %v976 = vmul.f32 %v974, %v930
        %s977 = sld [smem:[#allocation6 + $0x25]]
        %v978 = vstv %s977
        %v979 = vmul.f32 %v978, %v941
        %v980 = vmul.f32 %v978, %v938
        %s981 = sld [smem:[#allocation6 + $0x26]]
        %v982 = vstv %s981
        %v983 = vmul.f32 %v982, %v953
        %v984 = vmul.f32 %v982, %v950
        %s985 = sld [smem:[#allocation6 + $0x27]]
        %v986 = vstv %s985
        %v987 = vmul.f32 %v986, %v922
        %v988 = vmul.f32 %v986, %v924
        %s989 = sld [smem:[#allocation6 + $0x28]]
        %v990 = vstv %s989
        %v991 = vmul.f32 %v990, %v919
        %v992 = vmul.f32 %v990, %v920
        %s993 = sld [smem:[#allocation6 + $0x29]]
        %v994 = vstv %s993
        %v995 = vmul.f32 %v994, %v943
        %v996 = vmul.f32 %v994, %v945
        %s997 = sld [smem:[#allocation6 + $0x2a]]
        %v998 = vstv %s997
        %v999 = vmul.f32 %v998, %v957
        %v1000 = vmul.f32 %v998, %v960
        %s1001 = sld [smem:[#allocation6 + $0x2b]]
        %v1002 = vstv %s1001
        %v1003 = vmul.f32 %v1002, %v963
        %v1004 = vmul.f32 %v1002, %v966
        %s1005 = sld [smem:[#allocation6 + $0x2c]]
        %v1006 = vstv %s1005
        %v1007 = vmul.f32 %v1006, %v969
        %v1008 = vmul.f32 %v1006, %v972
        %v1009 = vadd.f32 %v975, %v979
        %v1010 = vadd.f32 %v976, %v980
        %v1011 = vadd.f32 %v983, %v987
        %v1012 = vadd.f32 %v984, %v988
        %v1013 = vadd.f32 %v991, %v995
        %v1014 = vadd.f32 %v992, %v996
        %v1015 = vadd.f32 %v999, %v1003
        %v1016 = vadd.f32 %v1000, %v1004
        %v1017 = vadd.f32 %v1009, %v1011
        %v1018 = vadd.f32 %v1010, %v1012
        %v1019 = vadd.f32 %v1013, %v1015
        %v1020 = vadd.f32 %v1014, %v1016
        %v1021 = vadd.f32 %v1017, %v1019
        %v1022 = vadd.f32 %v1018, %v1020
        %v1023 = vadd.f32 %v1021, %v1007
        %v1024 = vadd.f32 %v1022, %v1008
        %s1025 = sld [smem:[#allocation7 + $0x4]]
        %v1026 = vstv %s1025
        %v1027 = vadd.f32 %v1023, %v1026
        %v1028 = vadd.f32 %v1024, %v1026
        %vm1029 = vcmp.gt.f32.partialorder %v1027, 0.0
        %vm1030 = vcmp.gt.f32.partialorder %v1028, 0.0
        %v1031 = vmul.f32 %v1027, 0.01
        %v1032 = vmul.f32 %v1028, 0.01
        %v1033 = vsel %vm1029, %v1027, %v1031
        %v1034 = vsel %vm1030, %v1028, %v1032
        %v1035 = vsel %vm303, %v1033, 0.0
        %v1036 = vsel %vm304, %v1034, 0.0
        %s1037 = sld [smem:[#allocation9 + $0x24]]
        %v1038 = vstv %s1037
        %v1039 = vmul.f32 %v1038, %v1035
        %v1040 = vmul.f32 %v1038, %v1036
        %s1041 = sld [smem:[#allocation9 + $0x25]]
        %v1042 = vstv %s1041
        %v1043 = vmul.f32 %v1042, %v1035
        %v1044 = vmul.f32 %v1042, %v1036
        %s1045 = sld [smem:[#allocation9 + $0x26]]
        %v1046 = vstv %s1045
        %v1047 = vmul.f32 %v1046, %v1035
        %v1048 = vmul.f32 %v1046, %v1036
        %s1049 = sld [smem:[#allocation9 + $0x27]]
        %v1050 = vstv %s1049
        %v1051 = vmul.f32 %v1050, %v1035
        %v1052 = vmul.f32 %v1050, %v1036
        %s1053 = sld [smem:[#allocation9 + $0x28]]
        %v1054 = vstv %s1053
        %v1055 = vmul.f32 %v1054, %v1035
        %v1056 = vmul.f32 %v1054, %v1036
        %s1057 = sld [smem:[#allocation9 + $0x29]]
        %v1058 = vstv %s1057
        %v1059 = vmul.f32 %v1058, %v1035
        %v1060 = vmul.f32 %v1058, %v1036
        %s1061 = sld [smem:[#allocation9 + $0x2a]]
        %v1062 = vstv %s1061
        %v1063 = vmul.f32 %v1062, %v1035
        %v1064 = vmul.f32 %v1062, %v1036
        %s1065 = sld [smem:[#allocation9 + $0x2b]]
        %v1066 = vstv %s1065
        %v1067 = vmul.f32 %v1066, %v1035
        %v1068 = vmul.f32 %v1066, %v1036
        %s1069 = sld [smem:[#allocation9 + $0x2c]]
        %v1070 = vstv %s1069
        %v1071 = vmul.f32 %v1070, %v1035
        %v1072 = vmul.f32 %v1070, %v1036
        %s1073 = sld [smem:[#allocation6 + $0x2d]]
        %v1074 = vstv %s1073
        %v1075 = vmul.f32 %v1074, %v933
        %v1076 = vmul.f32 %v1074, %v930
        %s1077 = sld [smem:[#allocation6 + $0x2e]]
        %v1078 = vstv %s1077
        %v1079 = vmul.f32 %v1078, %v941
        %v1080 = vmul.f32 %v1078, %v938
        %s1081 = sld [smem:[#allocation6 + $0x2f]]
        %v1082 = vstv %s1081
        %v1083 = vmul.f32 %v1082, %v953
        %v1084 = vmul.f32 %v1082, %v950
        %s1085 = sld [smem:[#allocation6 + $0x30]]
        %v1086 = vstv %s1085
        %v1087 = vmul.f32 %v1086, %v922
        %v1088 = vmul.f32 %v1086, %v924
        %s1089 = sld [smem:[#allocation6 + $0x31]]
        %v1090 = vstv %s1089
        %v1091 = vmul.f32 %v1090, %v919
        %v1092 = vmul.f32 %v1090, %v920
        %s1093 = sld [smem:[#allocation6 + $0x32]]
        %v1094 = vstv %s1093
        %v1095 = vmul.f32 %v1094, %v943
        %v1096 = vmul.f32 %v1094, %v945
        %s1097 = sld [smem:[#allocation6 + $0x33]]
        %v1098 = vstv %s1097
        %v1099 = vmul.f32 %v1098, %v957
        %v1100 = vmul.f32 %v1098, %v960
        %s1101 = sld [smem:[#allocation6 + $0x34]]
        %v1102 = vstv %s1101
        %v1103 = vmul.f32 %v1102, %v963
        %v1104 = vmul.f32 %v1102, %v966
        %s1105 = sld [smem:[#allocation6 + $0x35]]
        %v1106 = vstv %s1105
        %v1107 = vmul.f32 %v1106, %v969
        %v1108 = vmul.f32 %v1106, %v972
        %v1109 = vadd.f32 %v1075, %v1079
        %v1110 = vadd.f32 %v1076, %v1080
        %v1111 = vadd.f32 %v1083, %v1087
        %v1112 = vadd.f32 %v1084, %v1088
        %v1113 = vadd.f32 %v1091, %v1095
        %v1114 = vadd.f32 %v1092, %v1096
        %v1115 = vadd.f32 %v1099, %v1103
        %v1116 = vadd.f32 %v1100, %v1104
        %v1117 = vadd.f32 %v1109, %v1111
        %v1118 = vadd.f32 %v1110, %v1112
        %v1119 = vadd.f32 %v1113, %v1115
        %v1120 = vadd.f32 %v1114, %v1116
        %v1121 = vadd.f32 %v1117, %v1119
        %v1122 = vadd.f32 %v1118, %v1120
        %v1123 = vadd.f32 %v1121, %v1107
        %v1124 = vadd.f32 %v1122, %v1108
        %s1125 = sld [smem:[#allocation7 + $0x5]]
        %v1126 = vstv %s1125
        %v1127 = vadd.f32 %v1123, %v1126
        %v1128 = vadd.f32 %v1124, %v1126
        %vm1129 = vcmp.gt.f32.partialorder %v1127, 0.0
        %vm1130 = vcmp.gt.f32.partialorder %v1128, 0.0
        %v1131 = vmul.f32 %v1127, 0.01
        %v1132 = vmul.f32 %v1128, 0.01
        %v1133 = vsel %vm1129, %v1127, %v1131
        %v1134 = vsel %vm1130, %v1128, %v1132
        %v1135 = vsel %vm303, %v1133, 0.0
        %v1136 = vsel %vm304, %v1134, 0.0
        %s1137 = sld [smem:[#allocation9 + $0x2d]]
        %v1138 = vstv %s1137
        %v1139 = vmul.f32 %v1138, %v1135
        %v1140 = vmul.f32 %v1138, %v1136
        %v1141 = vadd.f32 %v1039, %v1139
        %v1142 = vadd.f32 %v1040, %v1140
        %s1143 = sld [smem:[#allocation9 + $0x2e]]
        %v1144 = vstv %s1143
        %v1145 = vmul.f32 %v1144, %v1135
        %v1146 = vmul.f32 %v1144, %v1136
        %v1147 = vadd.f32 %v1043, %v1145
        %v1148 = vadd.f32 %v1044, %v1146
        %s1149 = sld [smem:[#allocation9 + $0x2f]]
        %v1150 = vstv %s1149
        %v1151 = vmul.f32 %v1150, %v1135
        %v1152 = vmul.f32 %v1150, %v1136
        %v1153 = vadd.f32 %v1047, %v1151
        %v1154 = vadd.f32 %v1048, %v1152
        %s1155 = sld [smem:[#allocation9 + $0x30]]
        %v1156 = vstv %s1155
        %v1157 = vmul.f32 %v1156, %v1135
        %v1158 = vmul.f32 %v1156, %v1136
        %v1159 = vadd.f32 %v1051, %v1157
        %v1160 = vadd.f32 %v1052, %v1158
        %s1161 = sld [smem:[#allocation9 + $0x31]]
        %v1162 = vstv %s1161
        %v1163 = vmul.f32 %v1162, %v1135
        %v1164 = vmul.f32 %v1162, %v1136
        %v1165 = vadd.f32 %v1055, %v1163
        %v1166 = vadd.f32 %v1056, %v1164
        %s1167 = sld [smem:[#allocation9 + $0x32]]
        %v1168 = vstv %s1167
        %v1169 = vmul.f32 %v1168, %v1135
        %v1170 = vmul.f32 %v1168, %v1136
        %v1171 = vadd.f32 %v1059, %v1169
        %v1172 = vadd.f32 %v1060, %v1170
        %s1173 = sld [smem:[#allocation9 + $0x33]]
        %v1174 = vstv %s1173
        %v1175 = vmul.f32 %v1174, %v1135
        %v1176 = vmul.f32 %v1174, %v1136
        %v1177 = vadd.f32 %v1063, %v1175
        %v1178 = vadd.f32 %v1064, %v1176
        %s1179 = sld [smem:[#allocation9 + $0x34]]
        %v1180 = vstv %s1179
        %v1181 = vmul.f32 %v1180, %v1135
        %v1182 = vmul.f32 %v1180, %v1136
        %v1183 = vadd.f32 %v1067, %v1181
        %v1184 = vadd.f32 %v1068, %v1182
        %s1185 = sld [smem:[#allocation9 + $0x35]]
        %v1186 = vstv %s1185
        %v1187 = vmul.f32 %v1186, %v1135
        %v1188 = vmul.f32 %v1186, %v1136
        %v1189 = vadd.f32 %v1071, %v1187
        %v1190 = vadd.f32 %v1072, %v1188
        %s1191 = sld [smem:[#allocation6 + $0x36]]
        %v1192 = vstv %s1191
        %v1193 = vmul.f32 %v1192, %v933
        %v1194 = vmul.f32 %v1192, %v930
        %s1195 = sld [smem:[#allocation6 + $0x37]]
        %v1196 = vstv %s1195
        %v1197 = vmul.f32 %v1196, %v941
        %v1198 = vmul.f32 %v1196, %v938
        %s1199 = sld [smem:[#allocation6 + $0x38]]
        %v1200 = vstv %s1199
        %v1201 = vmul.f32 %v1200, %v953
        %v1202 = vmul.f32 %v1200, %v950
        %s1203 = sld [smem:[#allocation6 + $0x39]]
        %v1204 = vstv %s1203
        %v1205 = vmul.f32 %v1204, %v922
        %v1206 = vmul.f32 %v1204, %v924
        %s1207 = sld [smem:[#allocation6 + $0x3a]]
        %v1208 = vstv %s1207
        %v1209 = vmul.f32 %v1208, %v919
        %v1210 = vmul.f32 %v1208, %v920
        %s1211 = sld [smem:[#allocation6 + $0x3b]]
        %v1212 = vstv %s1211
        %v1213 = vmul.f32 %v1212, %v943
        %v1214 = vmul.f32 %v1212, %v945
        %s1215 = sld [smem:[#allocation6 + $0x3c]]
        %v1216 = vstv %s1215
        %v1217 = vmul.f32 %v1216, %v957
        %v1218 = vmul.f32 %v1216, %v960
        %s1219 = sld [smem:[#allocation6 + $0x3d]]
        %v1220 = vstv %s1219
        %v1221 = vmul.f32 %v1220, %v963
        %v1222 = vmul.f32 %v1220, %v966
        %s1223 = sld [smem:[#allocation6 + $0x3e]]
        %v1224 = vstv %s1223
        %v1225 = vmul.f32 %v1224, %v969
        %v1226 = vmul.f32 %v1224, %v972
        %v1227 = vadd.f32 %v1193, %v1197
        %v1228 = vadd.f32 %v1194, %v1198
        %v1229 = vadd.f32 %v1201, %v1205
        %v1230 = vadd.f32 %v1202, %v1206
        %v1231 = vadd.f32 %v1209, %v1213
        %v1232 = vadd.f32 %v1210, %v1214
        %v1233 = vadd.f32 %v1217, %v1221
        %v1234 = vadd.f32 %v1218, %v1222
        %v1235 = vadd.f32 %v1227, %v1229
        %v1236 = vadd.f32 %v1228, %v1230
        %v1237 = vadd.f32 %v1231, %v1233
        %v1238 = vadd.f32 %v1232, %v1234
        %v1239 = vadd.f32 %v1235, %v1237
        %v1240 = vadd.f32 %v1236, %v1238
        %v1241 = vadd.f32 %v1239, %v1225
        %v1242 = vadd.f32 %v1240, %v1226
        %s1243 = sld [smem:[#allocation7 + $0x6]]
        %v1244 = vstv %s1243
        %v1245 = vadd.f32 %v1241, %v1244
        %v1246 = vadd.f32 %v1242, %v1244
        %vm1247 = vcmp.gt.f32.partialorder %v1245, 0.0
        %vm1248 = vcmp.gt.f32.partialorder %v1246, 0.0
        %v1249 = vmul.f32 %v1245, 0.01
        %v1250 = vmul.f32 %v1246, 0.01
        %v1251 = vsel %vm1247, %v1245, %v1249
        %v1252 = vsel %vm1248, %v1246, %v1250
        %v1253 = vsel %vm303, %v1251, 0.0
        %v1254 = vsel %vm304, %v1252, 0.0
        %s1255 = sld [smem:[#allocation9 + $0x36]]
        %v1256 = vstv %s1255
        %v1257 = vmul.f32 %v1256, %v1253
        %v1258 = vmul.f32 %v1256, %v1254
        %v1259 = vadd.f32 %v1141, %v1257
        %v1260 = vadd.f32 %v1142, %v1258
        %s1261 = sld [smem:[#allocation9 + $0x37]]
        %v1262 = vstv %s1261
        %v1263 = vmul.f32 %v1262, %v1253
        %v1264 = vmul.f32 %v1262, %v1254
        %v1265 = vadd.f32 %v1147, %v1263
        %v1266 = vadd.f32 %v1148, %v1264
        %s1267 = sld [smem:[#allocation9 + $0x38]]
        %v1268 = vstv %s1267
        %v1269 = vmul.f32 %v1268, %v1253
        %v1270 = vmul.f32 %v1268, %v1254
        %v1271 = vadd.f32 %v1153, %v1269
        %v1272 = vadd.f32 %v1154, %v1270
        %s1273 = sld [smem:[#allocation9 + $0x39]]
        %v1274 = vstv %s1273
        %v1275 = vmul.f32 %v1274, %v1253
        %v1276 = vmul.f32 %v1274, %v1254
        %v1277 = vadd.f32 %v1159, %v1275
        %v1278 = vadd.f32 %v1160, %v1276
        %s1279 = sld [smem:[#allocation9 + $0x3a]]
        %v1280 = vstv %s1279
        %v1281 = vmul.f32 %v1280, %v1253
        %v1282 = vmul.f32 %v1280, %v1254
        %v1283 = vadd.f32 %v1165, %v1281
        %v1284 = vadd.f32 %v1166, %v1282
        %s1285 = sld [smem:[#allocation9 + $0x3b]]
        %v1286 = vstv %s1285
        %v1287 = vmul.f32 %v1286, %v1253
        %v1288 = vmul.f32 %v1286, %v1254
        %v1289 = vadd.f32 %v1171, %v1287
        %v1290 = vadd.f32 %v1172, %v1288
        %s1291 = sld [smem:[#allocation9 + $0x3c]]
        %v1292 = vstv %s1291
        %v1293 = vmul.f32 %v1292, %v1253
        %v1294 = vmul.f32 %v1292, %v1254
        %v1295 = vadd.f32 %v1177, %v1293
        %v1296 = vadd.f32 %v1178, %v1294
        %s1297 = sld [smem:[#allocation9 + $0x3d]]
        %v1298 = vstv %s1297
        %v1299 = vmul.f32 %v1298, %v1253
        %v1300 = vmul.f32 %v1298, %v1254
        %v1301 = vadd.f32 %v1183, %v1299
        %v1302 = vadd.f32 %v1184, %v1300
        %s1303 = sld [smem:[#allocation9 + $0x3e]]
        %v1304 = vstv %s1303
        %v1305 = vmul.f32 %v1304, %v1253
        %v1306 = vmul.f32 %v1304, %v1254
        %v1307 = vadd.f32 %v1189, %v1305
        %v1308 = vadd.f32 %v1190, %v1306
        %s1309 = sld [smem:[#allocation6 + $0x3f]]
        %v1310 = vstv %s1309
        %v1311 = vmul.f32 %v1310, %v933
        %v1312 = vmul.f32 %v1310, %v930
        %s1313 = sld [smem:[#allocation6 + $0x40]]
        %v1314 = vstv %s1313
        %v1315 = vmul.f32 %v1314, %v941
        %v1316 = vmul.f32 %v1314, %v938
        %s1317 = sld [smem:[#allocation6 + $0x41]]
        %v1318 = vstv %s1317
        %v1319 = vmul.f32 %v1318, %v953
        %v1320 = vmul.f32 %v1318, %v950
        %s1321 = sld [smem:[#allocation6 + $0x42]]
        %v1322 = vstv %s1321
        %v1323 = vmul.f32 %v1322, %v922
        %v1324 = vmul.f32 %v1322, %v924
        %s1325 = sld [smem:[#allocation6 + $0x43]]
        %v1326 = vstv %s1325
        %v1327 = vmul.f32 %v1326, %v919
        %v1328 = vmul.f32 %v1326, %v920
        %s1329 = sld [smem:[#allocation6 + $0x44]]
        %v1330 = vstv %s1329
        %v1331 = vmul.f32 %v1330, %v943
        %v1332 = vmul.f32 %v1330, %v945
        %s1333 = sld [smem:[#allocation6 + $0x45]]
        %v1334 = vstv %s1333
        %v1335 = vmul.f32 %v1334, %v957
        %v1336 = vmul.f32 %v1334, %v960
        %s1337 = sld [smem:[#allocation6 + $0x46]]
        %v1338 = vstv %s1337
        %v1339 = vmul.f32 %v1338, %v963
        %v1340 = vmul.f32 %v1338, %v966
        %s1341 = sld [smem:[#allocation6 + $0x47]]
        %v1342 = vstv %s1341
        %v1343 = vmul.f32 %v1342, %v969
        %v1344 = vmul.f32 %v1342, %v972
        %v1345 = vadd.f32 %v1311, %v1315
        %v1346 = vadd.f32 %v1312, %v1316
        %v1347 = vadd.f32 %v1319, %v1323
        %v1348 = vadd.f32 %v1320, %v1324
        %v1349 = vadd.f32 %v1327, %v1331
        %v1350 = vadd.f32 %v1328, %v1332
        %v1351 = vadd.f32 %v1335, %v1339
        %v1352 = vadd.f32 %v1336, %v1340
        %v1353 = vadd.f32 %v1345, %v1347
        %v1354 = vadd.f32 %v1346, %v1348
        %v1355 = vadd.f32 %v1349, %v1351
        %v1356 = vadd.f32 %v1350, %v1352
        %v1357 = vadd.f32 %v1353, %v1355
        %v1358 = vadd.f32 %v1354, %v1356
        %v1359 = vadd.f32 %v1357, %v1343
        %v1360 = vadd.f32 %v1358, %v1344
        %s1361 = sld [smem:[#allocation7 + $0x7]]
        %v1362 = vstv %s1361
        %v1363 = vadd.f32 %v1359, %v1362
        %v1364 = vadd.f32 %v1360, %v1362
        %vm1365 = vcmp.gt.f32.partialorder %v1363, 0.0
        %vm1366 = vcmp.gt.f32.partialorder %v1364, 0.0
        %v1367 = vmul.f32 %v1363, 0.01
        %v1368 = vmul.f32 %v1364, 0.01
        %v1369 = vsel %vm1365, %v1363, %v1367
        %v1370 = vsel %vm1366, %v1364, %v1368
        %v1371 = vsel %vm303, %v1369, 0.0
        %v1372 = vsel %vm304, %v1370, 0.0
        %s1373 = sld [smem:[#allocation9 + $0x3f]]
        %v1374 = vstv %s1373
        %v1375 = vmul.f32 %v1374, %v1371
        %v1376 = vmul.f32 %v1374, %v1372
        %v1377 = vadd.f32 %v1259, %v1375
        %v1378 = vadd.f32 %v1260, %v1376
        %s1379 = sld [smem:[#allocation9 + $0x40]]
        %v1380 = vstv %s1379
        %v1381 = vmul.f32 %v1380, %v1371
        %v1382 = vmul.f32 %v1380, %v1372
        %v1383 = vadd.f32 %v1265, %v1381
        %v1384 = vadd.f32 %v1266, %v1382
        %s1385 = sld [smem:[#allocation9 + $0x41]]
        %v1386 = vstv %s1385
        %v1387 = vmul.f32 %v1386, %v1371
        %v1388 = vmul.f32 %v1386, %v1372
        %v1389 = vadd.f32 %v1271, %v1387
        %v1390 = vadd.f32 %v1272, %v1388
        %s1391 = sld [smem:[#allocation9 + $0x42]]
        %v1392 = vstv %s1391
        %v1393 = vmul.f32 %v1392, %v1371
        %v1394 = vmul.f32 %v1392, %v1372
        %v1395 = vadd.f32 %v1277, %v1393
        %v1396 = vadd.f32 %v1278, %v1394
        %s1397 = sld [smem:[#allocation9 + $0x43]]
        %v1398 = vstv %s1397
        %v1399 = vmul.f32 %v1398, %v1371
        %v1400 = vmul.f32 %v1398, %v1372
        %v1401 = vadd.f32 %v1283, %v1399
        %v1402 = vadd.f32 %v1284, %v1400
        %s1403 = sld [smem:[#allocation9 + $0x44]]
        %v1404 = vstv %s1403
        %v1405 = vmul.f32 %v1404, %v1371
        %v1406 = vmul.f32 %v1404, %v1372
        %v1407 = vadd.f32 %v1289, %v1405
        %v1408 = vadd.f32 %v1290, %v1406
        %s1409 = sld [smem:[#allocation9 + $0x45]]
        %v1410 = vstv %s1409
        %v1411 = vmul.f32 %v1410, %v1371
        %v1412 = vmul.f32 %v1410, %v1372
        %v1413 = vadd.f32 %v1295, %v1411
        %v1414 = vadd.f32 %v1296, %v1412
        %s1415 = sld [smem:[#allocation9 + $0x46]]
        %v1416 = vstv %s1415
        %v1417 = vmul.f32 %v1416, %v1371
        %v1418 = vmul.f32 %v1416, %v1372
        %v1419 = vadd.f32 %v1301, %v1417
        %v1420 = vadd.f32 %v1302, %v1418
        %s1421 = sld [smem:[#allocation9 + $0x47]]
        %v1422 = vstv %s1421
        %v1423 = vmul.f32 %v1422, %v1371
        %v1424 = vmul.f32 %v1422, %v1372
        %v1425 = vadd.f32 %v1307, %v1423
        %v1426 = vadd.f32 %v1308, %v1424
        %1427 = vrot.lane.b32.xlu0 %v1377, 1
        %v1428 = vpop.permute.xlu0 %1427
        %1429 = vrot.lane.b32.xlu0 %v1378, 1
        %v1430 = vpop.permute.xlu0 %1429
        %v1433 = vrot.slane %v1428, 7
        %v1434 = vrot.slane %v1430, 7
        %v1435 = vsel %vm319, %v1433, %v1434
        %v1438 = vsel %vm319, 0.0, %v1433
        %v1441 = vrot.slane %v1383, 7
        %v1442 = vrot.slane %v1384, 7
        %v1443 = vsel %vm319, %v1441, %v1442
        %v1446 = vsel %vm319, 0.0, %v1441
        %1447 = vrot.lane.b32.xlu0 %v1389, 127
        %v1448 = vpop.permute.xlu0 %1447
        %1449 = vrot.lane.b32.xlu0 %v1390, 127
        %v1450 = vpop.permute.xlu0 %1449
        %v1453 = vrot.slane %v1448, 7
        %v1454 = vrot.slane %v1450, 7
        %v1455 = vsel %vm319, %v1453, %v1454
        %v1458 = vsel %vm319, 0.0, %v1453
        %1459 = vrot.lane.b32.xlu0 %v1395, 1
        %v1460 = vpop.permute.xlu0 %1459
        %1461 = vrot.lane.b32.xlu0 %v1396, 1
        %v1462 = vpop.permute.xlu0 %1461
        %1463 = vrot.lane.b32.xlu0 %v1407, 127
        %v1464 = vpop.permute.xlu0 %1463
        %1465 = vrot.lane.b32.xlu0 %v1408, 127
        %v1466 = vpop.permute.xlu0 %1465
        %1467 = vrot.lane.b32.xlu0 %v1413, 1
        %v1468 = vpop.permute.xlu0 %1467
        %1469 = vrot.lane.b32.xlu0 %v1414, 1
        %v1470 = vpop.permute.xlu0 %1469
        %v1473 = vrot.slane %v1468, 1
        %v1474 = vrot.slane %v1470, 1
        %v1475 = vsel %vm346, %v1473, %v1474
        %v1478 = vsel %vm346, %v1474, 0.0
        %v1481 = vrot.slane %v1419, 1
        %v1482 = vrot.slane %v1420, 1
        %v1483 = vsel %vm346, %v1481, %v1482
        %v1486 = vsel %vm346, %v1482, 0.0
        %1487 = vrot.lane.b32.xlu0 %v1425, 127
        %v1488 = vpop.permute.xlu0 %1487
        %1489 = vrot.lane.b32.xlu0 %v1426, 127
        %v1490 = vpop.permute.xlu0 %1489
        %v1493 = vrot.slane %v1488, 1
        %v1494 = vrot.slane %v1490, 1
        %v1495 = vsel %vm346, %v1493, %v1494
        %v1498 = vsel %vm346, %v1494, 0.0
        %v1499 = vadd.f32 %v1438, %v1446
        %v1500 = vadd.f32 %v1435, %v1443
        %v1501 = vadd.f32 %v1458, %v1460
        %v1502 = vadd.f32 %v1455, %v1462
        %v1503 = vadd.f32 %v1401, %v1464
        %v1504 = vadd.f32 %v1402, %v1466
        %v1505 = vadd.f32 %v1475, %v1483
        %v1506 = vadd.f32 %v1478, %v1486
        %v1507 = vadd.f32 %v1499, %v1501
        %v1508 = vadd.f32 %v1500, %v1502
        %v1509 = vadd.f32 %v1503, %v1505
        %v1510 = vadd.f32 %v1504, %v1506
        %v1511 = vadd.f32 %v1507, %v1509
        %v1512 = vadd.f32 %v1508, %v1510
        %v1513 = vadd.f32 %v1511, %v1495
        %v1514 = vadd.f32 %v1512, %v1498
        %v1515 = vadd.f32 %v913, %v1513
        %v1516 = vadd.f32 %v914, %v1514
        %s1517 = sld [smem:[#allocation10 + $0x1]]
        %v1518 = vstv %s1517
        %v1519 = vadd.f32 %v1515, %v1518
        %v1520 = vadd.f32 %v1516, %v1518
        %v1521 = vsel %vm303, %v1519, 0.0
        %v1522 = vsel %vm304, %v1520, 0.0
        %vm1523 = vcmp.gt.f32.partialorder %v1521, 0.0
        %vm1524 = vcmp.gt.f32.partialorder %v1522, 0.0
        %v1525 = vmul.f32 %v1521, 0.01
        %v1526 = vmul.f32 %v1522, 0.01
        %v1527 = vsel %vm1523, %v1521, %v1525
        %v1528 = vsel %vm1524, %v1522, %v1526
        %1529 = vrot.lane.b32.xlu0 %v1527, 5
        %v1530 = vpop.permute.xlu0 %1529
        %1531 = vrot.lane.b32.xlu0 %v1528, 5
        %v1532 = vpop.permute.xlu0 %1531
        %v1535 = vrot.slane %v1530, 3
        %v1536 = vrot.slane %v1532, 3
        %v1537 = vsel %vm954, %v1535, %v1536
        %v1540 = vsel %vm954, 0.0, %v1535
        %v1543 = vrot.slane %v1527, 3
        %v1544 = vrot.slane %v1528, 3
        %v1545 = vsel %vm954, %v1543, %v1544
        %v1548 = vsel %vm954, 0.0, %v1543
        %1549 = vrot.lane.b32.xlu0 %v1527, 123
        %v1550 = vpop.permute.xlu0 %1549
        %1551 = vrot.lane.b32.xlu0 %v1528, 123
        %v1552 = vpop.permute.xlu0 %1551
        %v1555 = vrot.slane %v1550, 3
        %v1556 = vrot.slane %v1552, 3
        %v1557 = vsel %vm954, %v1555, %v1556
        %v1560 = vsel %vm954, 0.0, %v1555
        %v1561 = vrot.slane %v1530, 5
        %v1562 = vrot.slane %v1532, 5
        %v1563 = vsel %vm927, %v1561, %v1562
        %v1566 = vsel %vm927, %v1562, 0.0
        %v1567 = vrot.slane %v1527, 5
        %v1568 = vrot.slane %v1528, 5
        %v1569 = vsel %vm927, %v1567, %v1568
        %v1572 = vsel %vm927, %v1568, 0.0
        %v1573 = vrot.slane %v1550, 5
        %v1574 = vrot.slane %v1552, 5
        %v1575 = vsel %vm927, %v1573, %v1574
        %v1578 = vsel %vm927, %v1574, 0.0
        %s1579 = sld [smem:[#allocation6 + $0x48]]
        %v1580 = vstv %s1579
        %v1581 = vmul.f32 %v1580, %v1540
        %v1582 = vmul.f32 %v1580, %v1537
        %s1583 = sld [smem:[#allocation6 + $0x49]]
        %v1584 = vstv %s1583
        %v1585 = vmul.f32 %v1584, %v1548
        %v1586 = vmul.f32 %v1584, %v1545
        %s1587 = sld [smem:[#allocation6 + $0x4a]]
        %v1588 = vstv %s1587
        %v1589 = vmul.f32 %v1588, %v1560
        %v1590 = vmul.f32 %v1588, %v1557
        %s1591 = sld [smem:[#allocation6 + $0x4b]]
        %v1592 = vstv %s1591
        %v1593 = vmul.f32 %v1592, %v1530
        %v1594 = vmul.f32 %v1592, %v1532
        %s1595 = sld [smem:[#allocation6 + $0x4c]]
        %v1596 = vstv %s1595
        %v1597 = vmul.f32 %v1596, %v1527
        %v1598 = vmul.f32 %v1596, %v1528
        %s1599 = sld [smem:[#allocation6 + $0x4d]]
        %v1600 = vstv %s1599
        %v1601 = vmul.f32 %v1600, %v1550
        %v1602 = vmul.f32 %v1600, %v1552
        %s1603 = sld [smem:[#allocation6 + $0x4e]]
        %v1604 = vstv %s1603
        %v1605 = vmul.f32 %v1604, %v1563
        %v1606 = vmul.f32 %v1604, %v1566
        %s1607 = sld [smem:[#allocation6 + $0x4f]]
        %v1608 = vstv %s1607
        %v1609 = vmul.f32 %v1608, %v1569
        %v1610 = vmul.f32 %v1608, %v1572
        %s1611 = sld [smem:[#allocation6 + $0x50]]
        %v1612 = vstv %s1611
        %v1613 = vmul.f32 %v1612, %v1575
        %v1614 = vmul.f32 %v1612, %v1578
        %v1615 = vadd.f32 %v1581, %v1585
        %v1616 = vadd.f32 %v1582, %v1586
        %v1617 = vadd.f32 %v1589, %v1593
        %v1618 = vadd.f32 %v1590, %v1594
        %v1619 = vadd.f32 %v1597, %v1601
        %v1620 = vadd.f32 %v1598, %v1602
        %v1621 = vadd.f32 %v1605, %v1609
        %v1622 = vadd.f32 %v1606, %v1610
        %v1623 = vadd.f32 %v1615, %v1617
        %v1624 = vadd.f32 %v1616, %v1618
        %v1625 = vadd.f32 %v1619, %v1621
        %v1626 = vadd.f32 %v1620, %v1622
        %v1627 = vadd.f32 %v1623, %v1625
        %v1628 = vadd.f32 %v1624, %v1626
        %v1629 = vadd.f32 %v1627, %v1613
        %v1630 = vadd.f32 %v1628, %v1614
        %s1631 = sld [smem:[#allocation7 + $0x8]]
        %v1632 = vstv %s1631
        %v1633 = vadd.f32 %v1629, %v1632
        %v1634 = vadd.f32 %v1630, %v1632
        %vm1635 = vcmp.gt.f32.partialorder %v1633, 0.0
        %vm1636 = vcmp.gt.f32.partialorder %v1634, 0.0
        %v1637 = vmul.f32 %v1633, 0.01
        %v1638 = vmul.f32 %v1634, 0.01
        %v1639 = vsel %vm1635, %v1633, %v1637
        %v1640 = vsel %vm1636, %v1634, %v1638
        %v1641 = vsel %vm303, %v1639, 0.0
        %v1642 = vsel %vm304, %v1640, 0.0
        %s1643 = sld [smem:[#allocation9 + $0x48]]
        %v1644 = vstv %s1643
        %v1645 = vmul.f32 %v1644, %v1641
        %v1646 = vmul.f32 %v1644, %v1642
        %s1647 = sld [smem:[#allocation9 + $0x49]]
        %v1648 = vstv %s1647
        %v1649 = vmul.f32 %v1648, %v1641
        %v1650 = vmul.f32 %v1648, %v1642
        %s1651 = sld [smem:[#allocation9 + $0x4a]]
        %v1652 = vstv %s1651
        %v1653 = vmul.f32 %v1652, %v1641
        %v1654 = vmul.f32 %v1652, %v1642
        %s1655 = sld [smem:[#allocation9 + $0x4b]]
        %v1656 = vstv %s1655
        %v1657 = vmul.f32 %v1656, %v1641
        %v1658 = vmul.f32 %v1656, %v1642
        %s1659 = sld [smem:[#allocation9 + $0x4c]]
        %v1660 = vstv %s1659
        %v1661 = vmul.f32 %v1660, %v1641
        %v1662 = vmul.f32 %v1660, %v1642
        %s1663 = sld [smem:[#allocation9 + $0x4d]]
        %v1664 = vstv %s1663
        %v1665 = vmul.f32 %v1664, %v1641
        %v1666 = vmul.f32 %v1664, %v1642
        %s1667 = sld [smem:[#allocation9 + $0x4e]]
        %v1668 = vstv %s1667
        %v1669 = vmul.f32 %v1668, %v1641
        %v1670 = vmul.f32 %v1668, %v1642
        %s1671 = sld [smem:[#allocation9 + $0x4f]]
        %v1672 = vstv %s1671
        %v1673 = vmul.f32 %v1672, %v1641
        %v1674 = vmul.f32 %v1672, %v1642
        %s1675 = sld [smem:[#allocation9 + $0x50]]
        %v1676 = vstv %s1675
        %v1677 = vmul.f32 %v1676, %v1641
        %v1678 = vmul.f32 %v1676, %v1642
        %s1679 = sld [smem:[#allocation6 + $0x51]]
        %v1680 = vstv %s1679
        %v1681 = vmul.f32 %v1680, %v1540
        %v1682 = vmul.f32 %v1680, %v1537
        %s1683 = sld [smem:[#allocation6 + $0x52]]
        %v1684 = vstv %s1683
        %v1685 = vmul.f32 %v1684, %v1548
        %v1686 = vmul.f32 %v1684, %v1545
        %s1687 = sld [smem:[#allocation6 + $0x53]]
        %v1688 = vstv %s1687
        %v1689 = vmul.f32 %v1688, %v1560
        %v1690 = vmul.f32 %v1688, %v1557
        %s1691 = sld [smem:[#allocation6 + $0x54]]
        %v1692 = vstv %s1691
        %v1693 = vmul.f32 %v1692, %v1530
        %v1694 = vmul.f32 %v1692, %v1532
        %s1695 = sld [smem:[#allocation6 + $0x55]]
        %v1696 = vstv %s1695
        %v1697 = vmul.f32 %v1696, %v1527
        %v1698 = vmul.f32 %v1696, %v1528
        %s1699 = sld [smem:[#allocation6 + $0x56]]
        %v1700 = vstv %s1699
        %v1701 = vmul.f32 %v1700, %v1550
        %v1702 = vmul.f32 %v1700, %v1552
        %s1703 = sld [smem:[#allocation6 + $0x57]]
        %v1704 = vstv %s1703
        %v1705 = vmul.f32 %v1704, %v1563
        %v1706 = vmul.f32 %v1704, %v1566
        %s1707 = sld [smem:[#allocation6 + $0x58]]
        %v1708 = vstv %s1707
        %v1709 = vmul.f32 %v1708, %v1569
        %v1710 = vmul.f32 %v1708, %v1572
        %s1711 = sld [smem:[#allocation6 + $0x59]]
        %v1712 = vstv %s1711
        %v1713 = vmul.f32 %v1712, %v1575
        %v1714 = vmul.f32 %v1712, %v1578
        %v1715 = vadd.f32 %v1681, %v1685
        %v1716 = vadd.f32 %v1682, %v1686
        %v1717 = vadd.f32 %v1689, %v1693
        %v1718 = vadd.f32 %v1690, %v1694
        %v1719 = vadd.f32 %v1697, %v1701
        %v1720 = vadd.f32 %v1698, %v1702
        %v1721 = vadd.f32 %v1705, %v1709
        %v1722 = vadd.f32 %v1706, %v1710
        %v1723 = vadd.f32 %v1715, %v1717
        %v1724 = vadd.f32 %v1716, %v1718
        %v1725 = vadd.f32 %v1719, %v1721
        %v1726 = vadd.f32 %v1720, %v1722
        %v1727 = vadd.f32 %v1723, %v1725
        %v1728 = vadd.f32 %v1724, %v1726
        %v1729 = vadd.f32 %v1727, %v1713
        %v1730 = vadd.f32 %v1728, %v1714
        %s1731 = sld [smem:[#allocation7 + $0x9]]
        %v1732 = vstv %s1731
        %v1733 = vadd.f32 %v1729, %v1732
        %v1734 = vadd.f32 %v1730, %v1732
        %vm1735 = vcmp.gt.f32.partialorder %v1733, 0.0
        %vm1736 = vcmp.gt.f32.partialorder %v1734, 0.0
        %v1737 = vmul.f32 %v1733, 0.01
        %v1738 = vmul.f32 %v1734, 0.01
        %v1739 = vsel %vm1735, %v1733, %v1737
        %v1740 = vsel %vm1736, %v1734, %v1738
        %v1741 = vsel %vm303, %v1739, 0.0
        %v1742 = vsel %vm304, %v1740, 0.0
        %s1743 = sld [smem:[#allocation9 + $0x51]]
        %v1744 = vstv %s1743
        %v1745 = vmul.f32 %v1744, %v1741
        %v1746 = vmul.f32 %v1744, %v1742
        %v1747 = vadd.f32 %v1645, %v1745
        %v1748 = vadd.f32 %v1646, %v1746
        %s1749 = sld [smem:[#allocation9 + $0x52]]
        %v1750 = vstv %s1749
        %v1751 = vmul.f32 %v1750, %v1741
        %v1752 = vmul.f32 %v1750, %v1742
        %v1753 = vadd.f32 %v1649, %v1751
        %v1754 = vadd.f32 %v1650, %v1752
        %s1755 = sld [smem:[#allocation9 + $0x53]]
        %v1756 = vstv %s1755
        %v1757 = vmul.f32 %v1756, %v1741
        %v1758 = vmul.f32 %v1756, %v1742
        %v1759 = vadd.f32 %v1653, %v1757
        %v1760 = vadd.f32 %v1654, %v1758
        %s1761 = sld [smem:[#allocation9 + $0x54]]
        %v1762 = vstv %s1761
        %v1763 = vmul.f32 %v1762, %v1741
        %v1764 = vmul.f32 %v1762, %v1742
        %v1765 = vadd.f32 %v1657, %v1763
        %v1766 = vadd.f32 %v1658, %v1764
        %s1767 = sld [smem:[#allocation9 + $0x55]]
        %v1768 = vstv %s1767
        %v1769 = vmul.f32 %v1768, %v1741
        %v1770 = vmul.f32 %v1768, %v1742
        %v1771 = vadd.f32 %v1661, %v1769
        %v1772 = vadd.f32 %v1662, %v1770
        %s1773 = sld [smem:[#allocation9 + $0x56]]
        %v1774 = vstv %s1773
        %v1775 = vmul.f32 %v1774, %v1741
        %v1776 = vmul.f32 %v1774, %v1742
        %v1777 = vadd.f32 %v1665, %v1775
        %v1778 = vadd.f32 %v1666, %v1776
        %s1779 = sld [smem:[#allocation9 + $0x57]]
        %v1780 = vstv %s1779
        %v1781 = vmul.f32 %v1780, %v1741
        %v1782 = vmul.f32 %v1780, %v1742
        %v1783 = vadd.f32 %v1669, %v1781
        %v1784 = vadd.f32 %v1670, %v1782
        %s1785 = sld [smem:[#allocation9 + $0x58]]
        %v1786 = vstv %s1785
        %v1787 = vmul.f32 %v1786, %v1741
        %v1788 = vmul.f32 %v1786, %v1742
        %v1789 = vadd.f32 %v1673, %v1787
        %v1790 = vadd.f32 %v1674, %v1788
        %s1791 = sld [smem:[#allocation9 + $0x59]]
        %v1792 = vstv %s1791
        %v1793 = vmul.f32 %v1792, %v1741
        %v1794 = vmul.f32 %v1792, %v1742
        %v1795 = vadd.f32 %v1677, %v1793
        %v1796 = vadd.f32 %v1678, %v1794
        %s1797 = sld [smem:[#allocation6 + $0x5a]]
        %v1798 = vstv %s1797
        %v1799 = vmul.f32 %v1798, %v1540
        %v1800 = vmul.f32 %v1798, %v1537
        %s1801 = sld [smem:[#allocation6 + $0x5b]]
        %v1802 = vstv %s1801
        %v1803 = vmul.f32 %v1802, %v1548
        %v1804 = vmul.f32 %v1802, %v1545
        %s1805 = sld [smem:[#allocation6 + $0x5c]]
        %v1806 = vstv %s1805
        %v1807 = vmul.f32 %v1806, %v1560
        %v1808 = vmul.f32 %v1806, %v1557
        %s1809 = sld [smem:[#allocation6 + $0x5d]]
        %v1810 = vstv %s1809
        %v1811 = vmul.f32 %v1810, %v1530
        %v1812 = vmul.f32 %v1810, %v1532
        %s1813 = sld [smem:[#allocation6 + $0x5e]]
        %v1814 = vstv %s1813
        %v1815 = vmul.f32 %v1814, %v1527
        %v1816 = vmul.f32 %v1814, %v1528
        %s1817 = sld [smem:[#allocation6 + $0x5f]]
        %v1818 = vstv %s1817
        %v1819 = vmul.f32 %v1818, %v1550
        %v1820 = vmul.f32 %v1818, %v1552
        %s1821 = sld [smem:[#allocation6 + $0x60]]
        %v1822 = vstv %s1821
        %v1823 = vmul.f32 %v1822, %v1563
        %v1824 = vmul.f32 %v1822, %v1566
        %s1825 = sld [smem:[#allocation6 + $0x61]]
        %v1826 = vstv %s1825
        %v1827 = vmul.f32 %v1826, %v1569
        %v1828 = vmul.f32 %v1826, %v1572
        %s1829 = sld [smem:[#allocation6 + $0x62]]
        %v1830 = vstv %s1829
        %v1831 = vmul.f32 %v1830, %v1575
        %v1832 = vmul.f32 %v1830, %v1578
        %v1833 = vadd.f32 %v1799, %v1803
        %v1834 = vadd.f32 %v1800, %v1804
        %v1835 = vadd.f32 %v1807, %v1811
        %v1836 = vadd.f32 %v1808, %v1812
        %v1837 = vadd.f32 %v1815, %v1819
        %v1838 = vadd.f32 %v1816, %v1820
        %v1839 = vadd.f32 %v1823, %v1827
        %v1840 = vadd.f32 %v1824, %v1828
        %v1841 = vadd.f32 %v1833, %v1835
        %v1842 = vadd.f32 %v1834, %v1836
        %v1843 = vadd.f32 %v1837, %v1839
        %v1844 = vadd.f32 %v1838, %v1840
        %v1845 = vadd.f32 %v1841, %v1843
        %v1846 = vadd.f32 %v1842, %v1844
        %v1847 = vadd.f32 %v1845, %v1831
        %v1848 = vadd.f32 %v1846, %v1832
        %s1849 = sld [smem:[#allocation7 + $0xa]]
        %v1850 = vstv %s1849
        %v1851 = vadd.f32 %v1847, %v1850
        %v1852 = vadd.f32 %v1848, %v1850
        %vm1853 = vcmp.gt.f32.partialorder %v1851, 0.0
        %vm1854 = vcmp.gt.f32.partialorder %v1852, 0.0
        %v1855 = vmul.f32 %v1851, 0.01
        %v1856 = vmul.f32 %v1852, 0.01
        %v1857 = vsel %vm1853, %v1851, %v1855
        %v1858 = vsel %vm1854, %v1852, %v1856
        %v1859 = vsel %vm303, %v1857, 0.0
        %v1860 = vsel %vm304, %v1858, 0.0
        %s1861 = sld [smem:[#allocation9 + $0x5a]]
        %v1862 = vstv %s1861
        %v1863 = vmul.f32 %v1862, %v1859
        %v1864 = vmul.f32 %v1862, %v1860
        %v1865 = vadd.f32 %v1747, %v1863
        %v1866 = vadd.f32 %v1748, %v1864
        %s1867 = sld [smem:[#allocation9 + $0x5b]]
        %v1868 = vstv %s1867
        %v1869 = vmul.f32 %v1868, %v1859
        %v1870 = vmul.f32 %v1868, %v1860
        %v1871 = vadd.f32 %v1753, %v1869
        %v1872 = vadd.f32 %v1754, %v1870
        %s1873 = sld [smem:[#allocation9 + $0x5c]]
        %v1874 = vstv %s1873
        %v1875 = vmul.f32 %v1874, %v1859
        %v1876 = vmul.f32 %v1874, %v1860
        %v1877 = vadd.f32 %v1759, %v1875
        %v1878 = vadd.f32 %v1760, %v1876
        %s1879 = sld [smem:[#allocation9 + $0x5d]]
        %v1880 = vstv %s1879
        %v1881 = vmul.f32 %v1880, %v1859
        %v1882 = vmul.f32 %v1880, %v1860
        %v1883 = vadd.f32 %v1765, %v1881
        %v1884 = vadd.f32 %v1766, %v1882
        %s1885 = sld [smem:[#allocation9 + $0x5e]]
        %v1886 = vstv %s1885
        %v1887 = vmul.f32 %v1886, %v1859
        %v1888 = vmul.f32 %v1886, %v1860
        %v1889 = vadd.f32 %v1771, %v1887
        %v1890 = vadd.f32 %v1772, %v1888
        %s1891 = sld [smem:[#allocation9 + $0x5f]]
        %v1892 = vstv %s1891
        %v1893 = vmul.f32 %v1892, %v1859
        %v1894 = vmul.f32 %v1892, %v1860
        %v1895 = vadd.f32 %v1777, %v1893
        %v1896 = vadd.f32 %v1778, %v1894
        %s1897 = sld [smem:[#allocation9 + $0x60]]
        %v1898 = vstv %s1897
        %v1899 = vmul.f32 %v1898, %v1859
        %v1900 = vmul.f32 %v1898, %v1860
        %v1901 = vadd.f32 %v1783, %v1899
        %v1902 = vadd.f32 %v1784, %v1900
        %s1903 = sld [smem:[#allocation9 + $0x61]]
        %v1904 = vstv %s1903
        %v1905 = vmul.f32 %v1904, %v1859
        %v1906 = vmul.f32 %v1904, %v1860
        %v1907 = vadd.f32 %v1789, %v1905
        %v1908 = vadd.f32 %v1790, %v1906
        %s1909 = sld [smem:[#allocation9 + $0x62]]
        %v1910 = vstv %s1909
        %v1911 = vmul.f32 %v1910, %v1859
        %v1912 = vmul.f32 %v1910, %v1860
        %v1913 = vadd.f32 %v1795, %v1911
        %v1914 = vadd.f32 %v1796, %v1912
        %s1915 = sld [smem:[#allocation6 + $0x63]]
        %v1916 = vstv %s1915
        %v1917 = vmul.f32 %v1916, %v1540
        %v1918 = vmul.f32 %v1916, %v1537
        %s1919 = sld [smem:[#allocation6 + $0x64]]
        %v1920 = vstv %s1919
        %v1921 = vmul.f32 %v1920, %v1548
        %v1922 = vmul.f32 %v1920, %v1545
        %s1923 = sld [smem:[#allocation6 + $0x65]]
        %v1924 = vstv %s1923
        %v1925 = vmul.f32 %v1924, %v1560
        %v1926 = vmul.f32 %v1924, %v1557
        %s1927 = sld [smem:[#allocation6 + $0x66]]
        %v1928 = vstv %s1927
        %v1929 = vmul.f32 %v1928, %v1530
        %v1930 = vmul.f32 %v1928, %v1532
        %s1931 = sld [smem:[#allocation6 + $0x67]]
        %v1932 = vstv %s1931
        %v1933 = vmul.f32 %v1932, %v1527
        %v1934 = vmul.f32 %v1932, %v1528
        %s1935 = sld [smem:[#allocation6 + $0x68]]
        %v1936 = vstv %s1935
        %v1937 = vmul.f32 %v1936, %v1550
        %v1938 = vmul.f32 %v1936, %v1552
        %s1939 = sld [smem:[#allocation6 + $0x69]]
        %v1940 = vstv %s1939
        %v1941 = vmul.f32 %v1940, %v1563
        %v1942 = vmul.f32 %v1940, %v1566
        %s1943 = sld [smem:[#allocation6 + $0x6a]]
        %v1944 = vstv %s1943
        %v1945 = vmul.f32 %v1944, %v1569
        %v1946 = vmul.f32 %v1944, %v1572
        %s1947 = sld [smem:[#allocation6 + $0x6b]]
        %v1948 = vstv %s1947
        %v1949 = vmul.f32 %v1948, %v1575
        %v1950 = vmul.f32 %v1948, %v1578
        %v1951 = vadd.f32 %v1917, %v1921
        %v1952 = vadd.f32 %v1918, %v1922
        %v1953 = vadd.f32 %v1925, %v1929
        %v1954 = vadd.f32 %v1926, %v1930
        %v1955 = vadd.f32 %v1933, %v1937
        %v1956 = vadd.f32 %v1934, %v1938
        %v1957 = vadd.f32 %v1941, %v1945
        %v1958 = vadd.f32 %v1942, %v1946
        %v1959 = vadd.f32 %v1951, %v1953
        %v1960 = vadd.f32 %v1952, %v1954
        %v1961 = vadd.f32 %v1955, %v1957
        %v1962 = vadd.f32 %v1956, %v1958
        %v1963 = vadd.f32 %v1959, %v1961
        %v1964 = vadd.f32 %v1960, %v1962
        %v1965 = vadd.f32 %v1963, %v1949
        %v1966 = vadd.f32 %v1964, %v1950
        %s1967 = sld [smem:[#allocation7 + $0xb]]
        %v1968 = vstv %s1967
        %v1969 = vadd.f32 %v1965, %v1968
        %v1970 = vadd.f32 %v1966, %v1968
        %vm1971 = vcmp.gt.f32.partialorder %v1969, 0.0
        %vm1972 = vcmp.gt.f32.partialorder %v1970, 0.0
        %v1973 = vmul.f32 %v1969, 0.01
        %v1974 = vmul.f32 %v1970, 0.01
        %v1975 = vsel %vm1971, %v1969, %v1973
        %v1976 = vsel %vm1972, %v1970, %v1974
        %v1977 = vsel %vm303, %v1975, 0.0
        %v1978 = vsel %vm304, %v1976, 0.0
        %s1979 = sld [smem:[#allocation9 + $0x63]]
        %v1980 = vstv %s1979
        %v1981 = vmul.f32 %v1980, %v1977
        %v1982 = vmul.f32 %v1980, %v1978
        %v1983 = vadd.f32 %v1865, %v1981
        %v1984 = vadd.f32 %v1866, %v1982
        %s1985 = sld [smem:[#allocation9 + $0x64]]
        %v1986 = vstv %s1985
        %v1987 = vmul.f32 %v1986, %v1977
        %v1988 = vmul.f32 %v1986, %v1978
        %v1989 = vadd.f32 %v1871, %v1987
        %v1990 = vadd.f32 %v1872, %v1988
        %s1991 = sld [smem:[#allocation9 + $0x65]]
        %v1992 = vstv %s1991
        %v1993 = vmul.f32 %v1992, %v1977
        %v1994 = vmul.f32 %v1992, %v1978
        %v1995 = vadd.f32 %v1877, %v1993
        %v1996 = vadd.f32 %v1878, %v1994
        %s1997 = sld [smem:[#allocation9 + $0x66]]
        %v1998 = vstv %s1997
        %v1999 = vmul.f32 %v1998, %v1977
        %v2000 = vmul.f32 %v1998, %v1978
        %v2001 = vadd.f32 %v1883, %v1999
        %v2002 = vadd.f32 %v1884, %v2000
        %s2003 = sld [smem:[#allocation9 + $0x67]]
        %v2004 = vstv %s2003
        %v2005 = vmul.f32 %v2004, %v1977
        %v2006 = vmul.f32 %v2004, %v1978
        %v2007 = vadd.f32 %v1889, %v2005
        %v2008 = vadd.f32 %v1890, %v2006
        %s2009 = sld [smem:[#allocation9 + $0x68]]
        %v2010 = vstv %s2009
        %v2011 = vmul.f32 %v2010, %v1977
        %v2012 = vmul.f32 %v2010, %v1978
        %v2013 = vadd.f32 %v1895, %v2011
        %v2014 = vadd.f32 %v1896, %v2012
        %s2015 = sld [smem:[#allocation9 + $0x69]]
        %v2016 = vstv %s2015
        %v2017 = vmul.f32 %v2016, %v1977
        %v2018 = vmul.f32 %v2016, %v1978
        %v2019 = vadd.f32 %v1901, %v2017
        %v2020 = vadd.f32 %v1902, %v2018
        %s2021 = sld [smem:[#allocation9 + $0x6a]]
        %v2022 = vstv %s2021
        %v2023 = vmul.f32 %v2022, %v1977
        %v2024 = vmul.f32 %v2022, %v1978
        %v2025 = vadd.f32 %v1907, %v2023
        %v2026 = vadd.f32 %v1908, %v2024
        %s2027 = sld [smem:[#allocation9 + $0x6b]]
        %v2028 = vstv %s2027
        %v2029 = vmul.f32 %v2028, %v1977
        %v2030 = vmul.f32 %v2028, %v1978
        %v2031 = vadd.f32 %v1913, %v2029
        %v2032 = vadd.f32 %v1914, %v2030
        %2033 = vrot.lane.b32.xlu0 %v1983, 1
        %v2034 = vpop.permute.xlu0 %2033
        %2035 = vrot.lane.b32.xlu0 %v1984, 1
        %v2036 = vpop.permute.xlu0 %2035
        %v2039 = vrot.slane %v2034, 7
        %v2040 = vrot.slane %v2036, 7
        %v2041 = vsel %vm319, %v2039, %v2040
        %v2044 = vsel %vm319, 0.0, %v2039
        %v2047 = vrot.slane %v1989, 7
        %v2048 = vrot.slane %v1990, 7
        %v2049 = vsel %vm319, %v2047, %v2048
        %v2052 = vsel %vm319, 0.0, %v2047
        %2053 = vrot.lane.b32.xlu0 %v1995, 127
        %v2054 = vpop.permute.xlu0 %2053
        %2055 = vrot.lane.b32.xlu0 %v1996, 127
        %v2056 = vpop.permute.xlu0 %2055
        %v2059 = vrot.slane %v2054, 7
        %v2060 = vrot.slane %v2056, 7
        %v2061 = vsel %vm319, %v2059, %v2060
        %v2064 = vsel %vm319, 0.0, %v2059
        %2065 = vrot.lane.b32.xlu0 %v2001, 1
        %v2066 = vpop.permute.xlu0 %2065
        %2067 = vrot.lane.b32.xlu0 %v2002, 1
        %v2068 = vpop.permute.xlu0 %2067
        %2069 = vrot.lane.b32.xlu0 %v2013, 127
        %v2070 = vpop.permute.xlu0 %2069
        %2071 = vrot.lane.b32.xlu0 %v2014, 127
        %v2072 = vpop.permute.xlu0 %2071
        %2073 = vrot.lane.b32.xlu0 %v2019, 1
        %v2074 = vpop.permute.xlu0 %2073
        %2075 = vrot.lane.b32.xlu0 %v2020, 1
        %v2076 = vpop.permute.xlu0 %2075
        %v2079 = vrot.slane %v2074, 1
        %v2080 = vrot.slane %v2076, 1
        %v2081 = vsel %vm346, %v2079, %v2080
        %v2084 = vsel %vm346, %v2080, 0.0
        %v2087 = vrot.slane %v2025, 1
        %v2088 = vrot.slane %v2026, 1
        %v2089 = vsel %vm346, %v2087, %v2088
        %v2092 = vsel %vm346, %v2088, 0.0
        %2093 = vrot.lane.b32.xlu0 %v2031, 127
        %v2094 = vpop.permute.xlu0 %2093
        %2095 = vrot.lane.b32.xlu0 %v2032, 127
        %v2096 = vpop.permute.xlu0 %2095
        %v2099 = vrot.slane %v2094, 1
        %v2100 = vrot.slane %v2096, 1
        %v2101 = vsel %vm346, %v2099, %v2100
        %v2104 = vsel %vm346, %v2100, 0.0
        %v2105 = vadd.f32 %v2044, %v2052
        %v2106 = vadd.f32 %v2041, %v2049
        %v2107 = vadd.f32 %v2064, %v2066
        %v2108 = vadd.f32 %v2061, %v2068
        %v2109 = vadd.f32 %v2007, %v2070
        %v2110 = vadd.f32 %v2008, %v2072
        %v2111 = vadd.f32 %v2081, %v2089
        %v2112 = vadd.f32 %v2084, %v2092
        %v2113 = vadd.f32 %v2105, %v2107
        %v2114 = vadd.f32 %v2106, %v2108
        %v2115 = vadd.f32 %v2109, %v2111
        %v2116 = vadd.f32 %v2110, %v2112
        %v2117 = vadd.f32 %v2113, %v2115
        %v2118 = vadd.f32 %v2114, %v2116
        %v2119 = vadd.f32 %v2117, %v2101
        %v2120 = vadd.f32 %v2118, %v2104
        %v2121 = vadd.f32 %v1521, %v2119
        %v2122 = vadd.f32 %v1522, %v2120
        %s2123 = sld [smem:[#allocation10 + $0x2]]
        %v2124 = vstv %s2123
        %v2125 = vadd.f32 %v2121, %v2124
        %v2126 = vadd.f32 %v2122, %v2124
        %v2127 = vsel %vm303, %v2125, 0.0
        %v2128 = vsel %vm304, %v2126, 0.0
        %2129 = vst [vmem:[%s294] sm:$0xff] %v2127
        %2130 = vst [vmem:[%s294 + $0x8] sm:$0xff] %v2128
        %s2131 = sand.u32 %s143, 1
        %s2132 = scalar_lea.sflag [#allocation4], %s2131
        %s2133 = sand.u32 %s143, 1
        %s2134 = smul.addr %s2133, 16
        %s2135 = scalar_lea.vmem [#allocation12], %s2134
        // Predicated region
        $region61: #{tpu_custom_call.1} parent=39 // pred_check
          %p2136 = pneg %p153
        $region62: #{tpu_custom_call.1} parent=39 // pred_check_branch
          %2138 = sbr.rel (%p2136) target = $region64
        $region63: #{tpu_custom_call.1} parent=39 // pred_region
          %s2140 = ssub.s32 256, 256
          %2141 = vsyncadd %s2132, %s2140
          %s2142 = smul.addr %s25, 2
          %s2143 = smul.addr %s2142, 128
          %s2144 = scalar_lea.hbm %s5, %s2143
          %s2145 = sshll.u32 %s2135, 4
          %s2146 = int_to_ptr.vmem [resolvable:$true] %s2145
          %2151 = dma.vmem_to_hbm [thread:$0]  %s2146, 256, %s2144, %s2132, 128, 128, 8
        $region64: #{tpu_custom_call.1} parent=39 // pred_fallthru
          _
      $region40: #{tpu_custom_call.1} parent=5 // pred_fallthru
        _
      %p2152 = scmp.le.s32.totalorder 2, %s20
      // Predicated region
      $region65: #{tpu_custom_call.1} parent=5 // pred_check
        %p2153 = pneg %p2152
      $region66: #{tpu_custom_call.1} parent=5 // pred_check_branch
        %2155 = sbr.rel (%p2153) target = $region68
      $region67: #{tpu_custom_call.1} parent=5 // pred_region
        %s2156 = ssub.s32 %s20, 2
        // Predicated region
        $region69: #{tpu_custom_call.1} parent=67 // pred_check
          %p2157 = pneg %p159
        $region70: #{tpu_custom_call.1} parent=67 // pred_check_branch
          %2159 = sbr.rel (%p2157) target = $region72
        $region71: #{tpu_custom_call.1} parent=67 // pred_region
          %s2160 = sand.u32 %s144, 1
          %s2161 = scalar_lea.sflag [#allocation4], %s2160
          %s2162 = sand.u32 %s144, 1
          %s2163 = smul.addr %s2162, 16
          %s2164 = scalar_lea.vmem [#allocation12], %s2163
          %2165 = dma.done %s2161, 256
        $region72: #{tpu_custom_call.1} parent=67 // pred_fallthru
          _
      $region68: #{tpu_custom_call.1} parent=5 // pred_fallthru
        _
    $region6: #{tpu_custom_call.1} parent=1 // loop_footer
      %s24 = sadd.s32 1, %s20
    $region7: #{tpu_custom_call.1} parent=1 // loop_footer_branch
      %19 = sbr.rel target = $region3
    $region8: #{tpu_custom_call.1} parent=1 // loop_exit
      _
    %2166 = vsyncpa [#allocation3], 1
    %s2167 = scalar_lea.sflag [#allocation3], 1
    %2168 = vsyncpa %s2167, 1
    %2169 = vsyncpa [#allocation4], 1
    %s2170 = scalar_lea.sflag [#allocation4], 1
    %2171 = vsyncpa %s2170, 1
    %2172 = vsyncpa [#allocation5], 1
    %s2173 = scalar_lea.sflag [#allocation5], 1
    %2174 = vsyncpa %s2173, 1
    %2175 = vsyncpa [#allocation8], 1
    %2176 = vsyncpa [#allocation11], 1

</llo_original>
